<compile_context>
chip_gen: v7x
topology: tpu7x:2x2x1
jax: 0.10.0
libtpu: 0.0.40
codegen_flags: <defaults>
</compile_context>

<pallas_src>
from functools import partial

import jax
import jax.numpy as jnp
from jax.experimental import pallas as pl
from jax.experimental.pallas import tpu as pltpu

NUM_CLASSES = 10          # `num_classes` is undefined in the reference module; fixed here.
_BACKBONE_OUT = 1000      # EfficientNet-b4 classifier width
_F1 = 1024                # 1000 padded to a 128 multiple
_H1 = 512
_H2 = 128
_OUT_PAD = 128            # num_classes padded to a lane-dense width
_BM = 128                 # batch-tile rows per grid step


def _dropout_half(h, salt):
    """Dropout(p=0.5), train mode: Bernoulli(0.5) keep-mask scaled by 1/(1-p)=2.

    Counter-based int32 hash of (position, salt); runs purely on the VPU, so it is
    portable across chips and interpret mode (no hardware-PRNG dependency).
    """
    rows, cols = h.shape
    r = jax.lax.broadcasted_iota(jnp.int32, (rows, cols), 0)
    c = jax.lax.broadcasted_iota(jnp.int32, (rows, cols), 1)
    x = r * jnp.int32(cols) + c + salt
    # lowbias-style 32-bit mixer (wraparound int32 arithmetic is well-defined in XLA).
    x = ((x >> 16) ^ x) * jnp.int32(0x45D9F3B)
    x = ((x >> 16) ^ x) * jnp.int32(0x45D9F3B)
    x = (x >> 16) ^ x
    keep = jnp.where((x & 1) != 0, jnp.float32(2.0), jnp.float32(0.0))
    return h * keep


def _mlp_kernel(seed_ref, feat_ref, wb_ref, bb_ref, w1_ref, b1_ref,
                w2_ref, b2_ref, w3_ref, b3_ref, out_ref, *, training):
    # Per-grid-step salt so every batch tile draws an independent dropout mask.
    salt = seed_ref[0] * jnp.int32(1000003) + pl.program_id(0) * jnp.int32(7919)

    feat = feat_ref[...]                                              # [BM, Cp] f32

    # ---- backbone stand-in (part 2): Linear(C -> 1000), padded to 1024 ----
    z = jnp.dot(feat.astype(jnp.bfloat16), wb_ref[...],
                preferred_element_type=jnp.float32) + bb_ref[...]     # [BM, 1024] f32

    # ---- head: Linear(1000, 512) -> ReLU -> Dropout(0.5) ----
    h = jnp.dot(z.astype(jnp.bfloat16), w1_ref[...],
                preferred_element_type=jnp.float32) + b1_ref[...]     # [BM, 512] f32
    h = jnp.maximum(h, 0.0)
    if training:
        h = _dropout_half(h, salt + jnp.int32(0x0157))

    # ---- Linear(512, 128) -> ReLU -> Dropout(0.5) ----
    h = jnp.dot(h.astype(jnp.bfloat16), w2_ref[...],
                preferred_element_type=jnp.float32) + b2_ref[...]     # [BM, 128] f32
    h = jnp.maximum(h, 0.0)
    if training:
        h = _dropout_half(h, salt + jnp.int32(0x2B67))

    # ---- Linear(128, num_classes), computed into a lane-dense 128-wide block ----
    out = jnp.dot(h.astype(jnp.bfloat16), w3_ref[...],
                  preferred_element_type=jnp.float32) + b3_ref[...]   # [BM, 128] f32
    out_ref[...] = out.astype(out_ref.dtype)


def efficient_noisy(x, params, seed=0, training=True):
    """x: [B, C, H, W] float32 (NCHW). params: (wb, bb, w1, b1, w2, b2, w3, b3)."""
    wb, bb, w1, b1, w2, b2, w3, b3 = params
    B, C, H, W = x.shape

    # Backbone stand-in (part 1): global average pool, hoisted out of the kernel so
    # only [B, C] (not [B, C, H*W]) is DMA'd into VMEM.
    feat = jnp.mean(x.astype(jnp.float32), axis=(2, 3))               # [B, C]

    Bp = ((B + _BM - 1) // _BM) * _BM
    Cp = ((C + 127) // 128) * 128

    # Zero-pad to lane-dense shapes (numerically identical: padded rows/cols are zero).
    featp = jnp.zeros((Bp, Cp), jnp.float32).at[:B, :C].set(feat)
    wbp = jnp.zeros((Cp, _F1), jnp.bfloat16).at[:C, :_BACKBONE_OUT].set(wb.astype(jnp.bfloat16))
    bbp = jnp.zeros((1, _F1), jnp.float32).at[:, :_BACKBONE_OUT].set(bb.astype(jnp.float32))
    w1p = jnp.zeros((_F1, _H1), jnp.bfloat16).at[:_BACKBONE_OUT, :].set(w1.astype(jnp.bfloat16))
    b1p = b1.astype(jnp.float32).reshape(1, _H1)
    w2p = w2.astype(jnp.bfloat16)
    b2p = b2.astype(jnp.float32).reshape(1, _H2)
    w3p = jnp.zeros((_H2, _OUT_PAD), jnp.bfloat16).at[:, :NUM_CLASSES].set(w3.astype(jnp.bfloat16))
    b3p = jnp.zeros((1, _OUT_PAD), jnp.float32).at[:, :NUM_CLASSES].set(b3.astype(jnp.float32))

    seed_arr = jnp.array([seed], dtype=jnp.int32)
    grid = (Bp // _BM,)

    out = pl.pallas_call(
        partial(_mlp_kernel, training=training),
        out_shape=jax.ShapeDtypeStruct((Bp, _OUT_PAD), jnp.float32),
        grid_spec=pltpu.PrefetchScalarGridSpec(
            num_scalar_prefetch=1,                       # seed -> SMEM
            grid=grid,
            in_specs=[
                pl.BlockSpec((_BM, Cp), lambda i, s: (i, 0)),       # feature tile per step
                pl.BlockSpec((Cp, _F1), lambda i, s: (0, 0)),       # weights pinned -> VMEM-resident
                pl.BlockSpec((1, _F1), lambda i, s: (0, 0)),
                pl.BlockSpec((_F1, _H1), lambda i, s: (0, 0)),
                pl.BlockSpec((1, _H1), lambda i, s: (0, 0)),
                pl.BlockSpec((_H1, _H2), lambda i, s: (0, 0)),
                pl.BlockSpec((1, _H2), lambda i, s: (0, 0)),
                pl.BlockSpec((_H2, _OUT_PAD), lambda i, s: (0, 0)),
                pl.BlockSpec((1, _OUT_PAD), lambda i, s: (0, 0)),
            ],
            out_specs=pl.BlockSpec((_BM, _OUT_PAD), lambda i, s: (i, 0)),
        ),
        compiler_params=pltpu.CompilerParams(
            dimension_semantics=("parallel",),           # batch tiles independent (v7x 2nd TC)
            vmem_limit_bytes=32 * 1024 * 1024,           # explicit budget; ~3 MiB actually used
        ),
    )(seed_arr, featp, wbp, bbp, w1p, b1p, w2p, b2p, w3p, b3p)

    return out[:B, :NUM_CLASSES]


def _init_linear(key, fan_in, fan_out):
    """PyTorch nn.Linear default init: U(-1/sqrt(fan_in), 1/sqrt(fan_in)).
    Weight stored as [in, out] (already transposed for x @ W)."""
    kw, kb = jax.random.split(key)
    bound = 1.0 / (fan_in ** 0.5)
    w = jax.random.uniform(kw, (fan_in, fan_out), jnp.float32, -bound, bound)
    b = jax.random.uniform(kb, (1, fan_out), jnp.float32, -bound, bound)
    return w, b


if __name__ == "__main__":
    key = jax.random.PRNGKey(0)
    kx, kb, k1, k2, k3 = jax.random.split(key, 5)

    B, C, H, W = 2, 4, 16, 16
    x = jax.random.normal(kx, (B, C, H, W), dtype=jnp.float32)

    wb, bb = _init_linear(kb, C, _BACKBONE_OUT)       # backbone stand-in: C -> 1000
    w1, b1 = _init_linear(k1, _BACKBONE_OUT, _H1)
    w2, b2 = _init_linear(k2, _H1, _H2)
    w3, b3 = _init_linear(k3, _H2, NUM_CLASSES)

    out = efficient_noisy(x, (wb, bb, w1, b1, w2, b2, w3, b3), seed=0, training=True)
    out = jax.block_until_ready(out)

    assert out.shape == (B, NUM_CLASSES)
    assert out.dtype == jnp.float32
    print("KERNEL_OK")
</pallas_src>

<mosaic_0001>
module attributes {stable_mosaic.version = 11 : i64} {
  func.func @_mlp_kernel(%arg0: i32, %arg1: memref<1xi32, #tpu.memory_space<smem>>, %arg2: memref<128x128xf32, #tpu.memory_space<vmem>>, %arg3: memref<128x1024xbf16, #tpu.memory_space<vmem>>, %arg4: memref<1x1024xf32, #tpu.memory_space<vmem>>, %arg5: memref<1024x512xbf16, #tpu.memory_space<vmem>>, %arg6: memref<1x512xf32, #tpu.memory_space<vmem>>, %arg7: memref<512x128xbf16, #tpu.memory_space<vmem>>, %arg8: memref<1x128xf32, #tpu.memory_space<vmem>>, %arg9: memref<128x128xbf16, #tpu.memory_space<vmem>>, %arg10: memref<1x128xf32, #tpu.memory_space<vmem>>, %arg11: memref<128x128xf32, #tpu.memory_space<vmem>>) attributes {dimension_semantics = [#tpu.dimension_semantics<parallel>], iteration_bounds = array<i64: 1>, scalar_prefetch = 1 : i64, scratch_operands = 0 : i64, tpu.core_type = #tpu.core_type<tc>, window_params = [{transform_indices = @transform_0, window_bounds = array<i64: 128, 128>}, {pipeline_mode = #tpu.pipeline_mode<synchronous>, transform_indices = @transform_1, window_bounds = array<i64: 128, 1024>}, {pipeline_mode = #tpu.pipeline_mode<synchronous>, transform_indices = @transform_2, window_bounds = array<i64: 1, 1024>}, {pipeline_mode = #tpu.pipeline_mode<synchronous>, transform_indices = @transform_3, window_bounds = array<i64: 1024, 512>}, {pipeline_mode = #tpu.pipeline_mode<synchronous>, transform_indices = @transform_4, window_bounds = array<i64: 1, 512>}, {pipeline_mode = #tpu.pipeline_mode<synchronous>, transform_indices = @transform_5, window_bounds = array<i64: 512, 128>}, {pipeline_mode = #tpu.pipeline_mode<synchronous>, transform_indices = @transform_6, window_bounds = array<i64: 1, 128>}, {pipeline_mode = #tpu.pipeline_mode<synchronous>, transform_indices = @transform_7, window_bounds = array<i64: 128, 128>}, {pipeline_mode = #tpu.pipeline_mode<synchronous>, transform_indices = @transform_8, window_bounds = array<i64: 1, 128>}, {transform_indices = @transform_9, window_bounds = array<i64: 128, 128>}]} {
    %c0 = arith.constant 0 : index
    %0 = memref.load %arg1[%c0] : memref<1xi32, #tpu.memory_space<smem>>
    %c1000003_i32 = arith.constant 1000003 : i32
    %1 = arith.muli %0, %c1000003_i32 : i32
    %c7919_i32 = arith.constant 7919 : i32
    %2 = arith.muli %arg0, %c7919_i32 : i32
    %3 = arith.addi %1, %2 : i32
    %c0_0 = arith.constant 0 : index
    %c0_1 = arith.constant 0 : index
    %4 = vector.load %arg2[%c0_0, %c0_1] : memref<128x128xf32, #tpu.memory_space<vmem>>, vector<128x128xf32>
    %5 = arith.truncf %4 : vector<128x128xf32> to vector<128x128xbf16>
    %c0_2 = arith.constant 0 : index
    %c0_3 = arith.constant 0 : index
    %6 = vector.load %arg3[%c0_2, %c0_3] : memref<128x1024xbf16, #tpu.memory_space<vmem>>, vector<128x1024xbf16>
    %cst = arith.constant dense<0.000000e+00> : vector<128x1024xf32>
    %7 = tpu.matmul %5, %6, %cst {dimension_numbers = #tpu.dot_dimension_numbers<[1], [0], [0], [1], [0, 0, 1, 1], [], []>} : vector<128x128xbf16>, vector<128x1024xbf16>, vector<128x1024xf32> -> vector<128x1024xf32>
    %c0_4 = arith.constant 0 : index
    %c0_5 = arith.constant 0 : index
    %8 = vector.load %arg4[%c0_4, %c0_5] : memref<1x1024xf32, #tpu.memory_space<vmem>>, vector<1x1024xf32>
    %9 = vector.broadcast %8 : vector<1x1024xf32> to vector<128x1024xf32>
    %10 = arith.addf %7, %9 : vector<128x1024xf32>
    %11 = arith.truncf %10 : vector<128x1024xf32> to vector<128x1024xbf16>
    %c0_6 = arith.constant 0 : index
    %c0_7 = arith.constant 0 : index
    %12 = vector.load %arg5[%c0_6, %c0_7] : memref<1024x512xbf16, #tpu.memory_space<vmem>>, vector<1024x512xbf16>
    %cst_8 = arith.constant dense<0.000000e+00> : vector<128x512xf32>
    %13 = tpu.matmul %11, %12, %cst_8 {dimension_numbers = #tpu.dot_dimension_numbers<[1], [0], [0], [1], [0, 0, 1, 1], [], []>} : vector<128x1024xbf16>, vector<1024x512xbf16>, vector<128x512xf32> -> vector<128x512xf32>
    %c0_9 = arith.constant 0 : index
    %c0_10 = arith.constant 0 : index
    %14 = vector.load %arg6[%c0_9, %c0_10] : memref<1x512xf32, #tpu.memory_space<vmem>>, vector<1x512xf32>
    %15 = vector.broadcast %14 : vector<1x512xf32> to vector<128x512xf32>
    %16 = arith.addf %13, %15 : vector<128x512xf32>
    %cst_11 = arith.constant 0.000000e+00 : f32
    %17 = vector.broadcast %cst_11 : f32 to vector<128x512xf32>
    %18 = arith.maximumf %16, %17 : vector<128x512xf32>
    %c343_i32 = arith.constant 343 : i32
    %19 = arith.addi %3, %c343_i32 : i32
    %20 = tpu.iota {dimensions = array<i32: 0>} : vector<128x512xi32>
    %21 = tpu.iota {dimensions = array<i32: 1>} : vector<128x512xi32>
    %c512_i32 = arith.constant 512 : i32
    %22 = vector.broadcast %c512_i32 : i32 to vector<128x512xi32>
    %23 = arith.muli %20, %22 : vector<128x512xi32>
    %24 = arith.addi %23, %21 : vector<128x512xi32>
    %25 = vector.broadcast %19 : i32 to vector<128x512xi32>
    %26 = arith.addi %24, %25 : vector<128x512xi32>
    %c16_i32 = arith.constant 16 : i32
    %27 = vector.broadcast %c16_i32 : i32 to vector<128x512xi32>
    %28 = arith.shrsi %26, %27 : vector<128x512xi32>
    %29 = arith.xori %28, %26 : vector<128x512xi32>
    %c73244475_i32 = arith.constant 73244475 : i32
    %30 = vector.broadcast %c73244475_i32 : i32 to vector<128x512xi32>
    %31 = arith.muli %29, %30 : vector<128x512xi32>
    %c16_i32_12 = arith.constant 16 : i32
    %32 = vector.broadcast %c16_i32_12 : i32 to vector<128x512xi32>
    %33 = arith.shrsi %31, %32 : vector<128x512xi32>
    %34 = arith.xori %33, %31 : vector<128x512xi32>
    %c73244475_i32_13 = arith.constant 73244475 : i32
    %35 = vector.broadcast %c73244475_i32_13 : i32 to vector<128x512xi32>
    %36 = arith.muli %34, %35 : vector<128x512xi32>
    %c16_i32_14 = arith.constant 16 : i32
    %37 = vector.broadcast %c16_i32_14 : i32 to vector<128x512xi32>
    %38 = arith.shrsi %36, %37 : vector<128x512xi32>
    %39 = arith.xori %38, %36 : vector<128x512xi32>
    %c1_i32 = arith.constant 1 : i32
    %40 = vector.broadcast %c1_i32 : i32 to vector<128x512xi32>
    %41 = arith.andi %39, %40 : vector<128x512xi32>
    %c0_i32 = arith.constant 0 : i32
    %42 = vector.broadcast %c0_i32 : i32 to vector<128x512xi32>
    %43 = arith.cmpi ne, %41, %42 : vector<128x512xi32>
    %cst_15 = arith.constant 2.000000e+00 : f32
    %cst_16 = arith.constant 0.000000e+00 : f32
    %44 = vector.broadcast %cst_15 : f32 to vector<128x512xf32>
    %45 = vector.broadcast %cst_16 : f32 to vector<128x512xf32>
    %46 = arith.select %43, %44, %45 : vector<128x512xi1>, vector<128x512xf32>
    %47 = arith.mulf %18, %46 : vector<128x512xf32>
    %48 = arith.truncf %47 : vector<128x512xf32> to vector<128x512xbf16>
    %c0_17 = arith.constant 0 : index
    %c0_18 = arith.constant 0 : index
    %49 = vector.load %arg7[%c0_17, %c0_18] : memref<512x128xbf16, #tpu.memory_space<vmem>>, vector<512x128xbf16>
    %cst_19 = arith.constant dense<0.000000e+00> : vector<128x128xf32>
    %50 = tpu.matmul %48, %49, %cst_19 {dimension_numbers = #tpu.dot_dimension_numbers<[1], [0], [0], [1], [0, 0, 1, 1], [], []>} : vector<128x512xbf16>, vector<512x128xbf16>, vector<128x128xf32> -> vector<128x128xf32>
    %c0_20 = arith.constant 0 : index
    %c0_21 = arith.constant 0 : index
    %51 = vector.load %arg8[%c0_20, %c0_21] : memref<1x128xf32, #tpu.memory_space<vmem>>, vector<1x128xf32>
    %52 = vector.broadcast %51 : vector<1x128xf32> to vector<128x128xf32>
    %53 = arith.addf %50, %52 : vector<128x128xf32>
    %cst_22 = arith.constant 0.000000e+00 : f32
    %54 = vector.broadcast %cst_22 : f32 to vector<128x128xf32>
    %55 = arith.maximumf %53, %54 : vector<128x128xf32>
    %c11111_i32 = arith.constant 11111 : i32
    %56 = arith.addi %3, %c11111_i32 : i32
    %57 = tpu.iota {dimensions = array<i32: 0>} : vector<128x128xi32>
    %58 = tpu.iota {dimensions = array<i32: 1>} : vector<128x128xi32>
    %c128_i32 = arith.constant 128 : i32
    %59 = vector.broadcast %c128_i32 : i32 to vector<128x128xi32>
    %60 = arith.muli %57, %59 : vector<128x128xi32>
    %61 = arith.addi %60, %58 : vector<128x128xi32>
    %62 = vector.broadcast %56 : i32 to vector<128x128xi32>
    %63 = arith.addi %61, %62 : vector<128x128xi32>
    %c16_i32_23 = arith.constant 16 : i32
    %64 = vector.broadcast %c16_i32_23 : i32 to vector<128x128xi32>
    %65 = arith.shrsi %63, %64 : vector<128x128xi32>
    %66 = arith.xori %65, %63 : vector<128x128xi32>
    %c73244475_i32_24 = arith.constant 73244475 : i32
    %67 = vector.broadcast %c73244475_i32_24 : i32 to vector<128x128xi32>
    %68 = arith.muli %66, %67 : vector<128x128xi32>
    %c16_i32_25 = arith.constant 16 : i32
    %69 = vector.broadcast %c16_i32_25 : i32 to vector<128x128xi32>
    %70 = arith.shrsi %68, %69 : vector<128x128xi32>
    %71 = arith.xori %70, %68 : vector<128x128xi32>
    %c73244475_i32_26 = arith.constant 73244475 : i32
    %72 = vector.broadcast %c73244475_i32_26 : i32 to vector<128x128xi32>
    %73 = arith.muli %71, %72 : vector<128x128xi32>
    %c16_i32_27 = arith.constant 16 : i32
    %74 = vector.broadcast %c16_i32_27 : i32 to vector<128x128xi32>
    %75 = arith.shrsi %73, %74 : vector<128x128xi32>
    %76 = arith.xori %75, %73 : vector<128x128xi32>
    %c1_i32_28 = arith.constant 1 : i32
    %77 = vector.broadcast %c1_i32_28 : i32 to vector<128x128xi32>
    %78 = arith.andi %76, %77 : vector<128x128xi32>
    %c0_i32_29 = arith.constant 0 : i32
    %79 = vector.broadcast %c0_i32_29 : i32 to vector<128x128xi32>
    %80 = arith.cmpi ne, %78, %79 : vector<128x128xi32>
    %cst_30 = arith.constant 2.000000e+00 : f32
    %cst_31 = arith.constant 0.000000e+00 : f32
    %81 = vector.broadcast %cst_30 : f32 to vector<128x128xf32>
    %82 = vector.broadcast %cst_31 : f32 to vector<128x128xf32>
    %83 = arith.select %80, %81, %82 : vector<128x128xi1>, vector<128x128xf32>
    %84 = arith.mulf %55, %83 : vector<128x128xf32>
    %85 = arith.truncf %84 : vector<128x128xf32> to vector<128x128xbf16>
    %c0_32 = arith.constant 0 : index
    %c0_33 = arith.constant 0 : index
    %86 = vector.load %arg9[%c0_32, %c0_33] : memref<128x128xbf16, #tpu.memory_space<vmem>>, vector<128x128xbf16>
    %cst_34 = arith.constant dense<0.000000e+00> : vector<128x128xf32>
    %87 = tpu.matmul %85, %86, %cst_34 {dimension_numbers = #tpu.dot_dimension_numbers<[1], [0], [0], [1], [0, 0, 1, 1], [], []>} : vector<128x128xbf16>, vector<128x128xbf16>, vector<128x128xf32> -> vector<128x128xf32>
    %c0_35 = arith.constant 0 : index
    %c0_36 = arith.constant 0 : index
    %88 = vector.load %arg10[%c0_35, %c0_36] : memref<1x128xf32, #tpu.memory_space<vmem>>, vector<1x128xf32>
    %89 = vector.broadcast %88 : vector<1x128xf32> to vector<128x128xf32>
    %90 = arith.addf %87, %89 : vector<128x128xf32>
    %c0_37 = arith.constant 0 : index
    %c0_38 = arith.constant 0 : index
    %91 = vector.load %arg11[%c0_37, %c0_38] : memref<128x128xf32, #tpu.memory_space<vmem>>, vector<128x128xf32>
    tpu.vector_store %arg11[%c0_37, %c0_38], %90 {strides = array<i32>} : memref<128x128xf32, #tpu.memory_space<vmem>>, vector<128x128xf32>,
    return
  }
  func.func @transform_0(%arg0: i32, %arg1: memref<1xi32, #tpu.memory_space<smem>>) -> (i32, i32) {
    %c0_i32 = arith.constant 0 : i32
    %c0_i32_0 = arith.constant 0 : i32
    return %arg0, %c0_i32 : i32, i32
  }
  func.func @transform_1(%arg0: i32, %arg1: memref<1xi32, #tpu.memory_space<smem>>) -> (i32, i32) {
    %c0_i32 = arith.constant 0 : i32
    %c0_i32_0 = arith.constant 0 : i32
    %c0_i32_1 = arith.constant 0 : i32
    return %c0_i32, %c0_i32_0 : i32, i32
  }
  func.func @transform_2(%arg0: i32, %arg1: memref<1xi32, #tpu.memory_space<smem>>) -> (i32, i32) {
    %c0_i32 = arith.constant 0 : i32
    %c0_i32_0 = arith.constant 0 : i32
    %c0_i32_1 = arith.constant 0 : i32
    return %c0_i32, %c0_i32_0 : i32, i32
  }
  func.func @transform_3(%arg0: i32, %arg1: memref<1xi32, #tpu.memory_space<smem>>) -> (i32, i32) {
    %c0_i32 = arith.constant 0 : i32
    %c0_i32_0 = arith.constant 0 : i32
    %c0_i32_1 = arith.constant 0 : i32
    return %c0_i32, %c0_i32_0 : i32, i32
  }
  func.func @transform_4(%arg0: i32, %arg1: memref<1xi32, #tpu.memory_space<smem>>) -> (i32, i32) {
    %c0_i32 = arith.constant 0 : i32
    %c0_i32_0 = arith.constant 0 : i32
    %c0_i32_1 = arith.constant 0 : i32
    return %c0_i32, %c0_i32_0 : i32, i32
  }
  func.func @transform_5(%arg0: i32, %arg1: memref<1xi32, #tpu.memory_space<smem>>) -> (i32, i32) {
    %c0_i32 = arith.constant 0 : i32
    %c0_i32_0 = arith.constant 0 : i32
    %c0_i32_1 = arith.constant 0 : i32
    return %c0_i32, %c0_i32_0 : i32, i32
  }
  func.func @transform_6(%arg0: i32, %arg1: memref<1xi32, #tpu.memory_space<smem>>) -> (i32, i32) {
    %c0_i32 = arith.constant 0 : i32
    %c0_i32_0 = arith.constant 0 : i32
    %c0_i32_1 = arith.constant 0 : i32
    return %c0_i32, %c0_i32_0 : i32, i32
  }
  func.func @transform_7(%arg0: i32, %arg1: memref<1xi32, #tpu.memory_space<smem>>) -> (i32, i32) {
    %c0_i32 = arith.constant 0 : i32
    %c0_i32_0 = arith.constant 0 : i32
    %c0_i32_1 = arith.constant 0 : i32
    return %c0_i32, %c0_i32_0 : i32, i32
  }
  func.func @transform_8(%arg0: i32, %arg1: memref<1xi32, #tpu.memory_space<smem>>) -> (i32, i32) {
    %c0_i32 = arith.constant 0 : i32
    %c0_i32_0 = arith.constant 0 : i32
    %c0_i32_1 = arith.constant 0 : i32
    return %c0_i32, %c0_i32_0 : i32, i32
  }
  func.func @transform_9(%arg0: i32, %arg1: memref<1xi32, #tpu.memory_space<smem>>) -> (i32, i32) {
    %c0_i32 = arith.constant 0 : i32
    %c0_i32_0 = arith.constant 0 : i32
    return %arg0, %c0_i32 : i32, i32
  }
}

</mosaic_0001>

<llo_original>
// kernel: tpu_custom_call.1
$region0: #{tpu_custom_call.1}
  #allocation0 [shape = 'u32[]', space=smem, size = 0x4, offset = 0x4, fixed_abs, tag = 'smem constant byte address 0x4 - core index']
  #allocation1 [shape = 'u32[144,128]{1,0:T(1,128)}', space=vmem, size = 0x12000, scoped, tag = 'internal scratch']
  #allocation2 [shape = 's32[1]{0}', space=sflag, size = 0x4, scoped, tag = 'scoped memory for tpu_custom_call.1']
  #allocation3 [shape = 's32[1]{0:T(128)S(6)}', space=smem, size = 0x200, scoped, tag = 'prefetched SMEM operand 0']
  %s0 = inlined_call_operand.<no memory space> [shape: s32[1], index: 0, kind: input, shape index: {}]
  %s1 = inlined_call_operand.hbm [shape: f32[128,128], index: 1, kind: input, shape index: {}]
  %s2 = inlined_call_operand.hbm [shape: bf16[128,1024], index: 2, kind: input, shape index: {}]
  %s3 = inlined_call_operand.vmem [shape: f32[1,1024], index: 3, kind: input, shape index: {}]
  %s4 = inlined_call_operand.hbm [shape: bf16[1024,512], index: 4, kind: input, shape index: {}]
  %s5 = inlined_call_operand.vmem [shape: f32[1,512], index: 5, kind: input, shape index: {}]
  %s6 = inlined_call_operand.hbm [shape: bf16[512,128], index: 6, kind: input, shape index: {}]
  %s7 = inlined_call_operand.vmem [shape: f32[1,128], index: 7, kind: input, shape index: {}]
  %s8 = inlined_call_operand.hbm [shape: bf16[128,128], index: 8, kind: input, shape index: {}]
  %s9 = inlined_call_operand.vmem [shape: f32[1,128], index: 9, kind: input, shape index: {}]
  %s10 = inlined_call_operand.hbm [shape: f32[128,128], index: 10, kind: output, shape index: {}]
  %s11 = sld [smem:[#allocation0]]
  $region66: #{tpu_custom_call.1} parent=0
    _
  %s13 = ssub.s32 1, %s11
  %s14 = scalar_select 0, %s13, %s11
  %15 = sst [smem:[#allocation3]] %s0
  $region1: #{tpu_custom_call.1} parent=0
    #allocation4 [shape = 'u8[65536]{0}', space=vmem, size = 0x10000, scoped, tag = 'input window, operand 1, single buffered']
    #allocation5 [shape = 's32[1]{0}', space=sflag, size = 0x4, scoped, tag = 'scoped memory for tpu_custom_call.1']
    #allocation6 [shape = 's32[1]{0}', space=sflag, size = 0x4, scoped, tag = 'scoped memory for tpu_custom_call.1']
    #allocation7 [shape = 'u8[262144]{0}', space=vmem, size = 0x40000, scoped, tag = 'input window, operand 2, single buffered']
    #allocation8 [shape = 's32[1]{0}', space=sflag, size = 0x4, scoped, tag = 'scoped memory for tpu_custom_call.1']
    #allocation9 [shape = 'u8[1048576]{0}', space=vmem, size = 0x100000, scoped, tag = 'input window, operand 4, single buffered']
    #allocation10 [shape = 'u8[131072]{0}', space=vmem, size = 0x20000, scoped, tag = 'input window, operand 6, single buffered']
    #allocation11 [shape = 's32[1]{0}', space=sflag, size = 0x4, scoped, tag = 'scoped memory for tpu_custom_call.1']
    #allocation12 [shape = 'u8[32768]{0}', space=vmem, size = 0x8000, scoped, tag = 'input window, operand 8, single buffered']
    #allocation13 [shape = 'u8[65536]{0}', space=vmem, size = 0x10000, scoped, tag = 'output window, operand 0, single buffered']
    %16 = vsyncpa [#allocation5], 0
    %17 = vsyncpa [#allocation8], 0
    %18 = vsyncpa [#allocation11], 0
    %19 = vsyncpa [#allocation6], 0
    // Predicated region
    $region2: #{tpu_custom_call.1} parent=1 // pred_check
      _
    $region3: #{tpu_custom_call.1} parent=1 // pred_check_branch
      %21 = sbr.rel (0) target = $region5
    $region4: #{tpu_custom_call.1} parent=1 // pred_region
      %s23 = ssub.s32 2048, 2048
      %24 = vsyncadd [#allocation5], %s23
      %s25 = sshll.u32 [#allocation4], 4
      %s26 = int_to_ptr.vmem [resolvable:$true] %s25
      %31 = dma.hbm_to_vmem [thread:$0]  %s1, 2048, %s26, [#allocation5], 128, 128, 8
    $region5: #{tpu_custom_call.1} parent=1 // pred_fallthru
      _
    // Predicated region
    $region6: #{tpu_custom_call.1} parent=1 // pred_check
      _
    $region7: #{tpu_custom_call.1} parent=1 // pred_check_branch
      %33 = sbr.rel (0) target = $region9
    $region8: #{tpu_custom_call.1} parent=1 // pred_region
      %s35 = ssub.s32 8192, 8192
      %36 = vsyncadd [#allocation8], %s35
      %s37 = sshll.u32 [#allocation7], 4
      %s38 = int_to_ptr.vmem [resolvable:$true] %s37
      %43 = dma.hbm_to_vmem [thread:$0]  %s2, 8192, %s38, [#allocation8], 512, 512, 32
    $region9: #{tpu_custom_call.1} parent=1 // pred_fallthru
      _
    // Predicated region
    $region10: #{tpu_custom_call.1} parent=1 // pred_check
      _
    $region11: #{tpu_custom_call.1} parent=1 // pred_check_branch
      %45 = sbr.rel (0) target = $region13
    $region12: #{tpu_custom_call.1} parent=1 // pred_region
      _
    $region13: #{tpu_custom_call.1} parent=1 // pred_fallthru
      _
    // Predicated region
    $region14: #{tpu_custom_call.1} parent=1 // pred_check
      _
    $region15: #{tpu_custom_call.1} parent=1 // pred_check_branch
      %47 = sbr.rel (0) target = $region17
    $region16: #{tpu_custom_call.1} parent=1 // pred_region
      %s49 = ssub.s32 32768, 32768
      %50 = vsyncadd [#allocation8], %s49
      %s51 = sshll.u32 [#allocation9], 4
      %s52 = int_to_ptr.vmem [resolvable:$true] %s51
      %57 = dma.hbm_to_vmem [thread:$0]  %s4, 32768, %s52, [#allocation8], 256, 256, 16
    $region17: #{tpu_custom_call.1} parent=1 // pred_fallthru
      _
    // Predicated region
    $region18: #{tpu_custom_call.1} parent=1 // pred_check
      _
    $region19: #{tpu_custom_call.1} parent=1 // pred_check_branch
      %59 = sbr.rel (0) target = $region21
    $region20: #{tpu_custom_call.1} parent=1 // pred_region
      _
    $region21: #{tpu_custom_call.1} parent=1 // pred_fallthru
      _
    // Predicated region
    $region22: #{tpu_custom_call.1} parent=1 // pred_check
      _
    $region23: #{tpu_custom_call.1} parent=1 // pred_check_branch
      %61 = sbr.rel (0) target = $region25
    $region24: #{tpu_custom_call.1} parent=1 // pred_region
      %s63 = ssub.s32 4096, 4096
      %64 = vsyncadd [#allocation11], %s63
      %s65 = sshll.u32 [#allocation10], 4
      %s66 = int_to_ptr.vmem [resolvable:$true] %s65
      %71 = dma.hbm_to_vmem [thread:$0]  %s6, 4096, %s66, [#allocation11], 64, 64, 4
    $region25: #{tpu_custom_call.1} parent=1 // pred_fallthru
      _
    // Predicated region
    $region26: #{tpu_custom_call.1} parent=1 // pred_check
      _
    $region27: #{tpu_custom_call.1} parent=1 // pred_check_branch
      %73 = sbr.rel (0) target = $region29
    $region28: #{tpu_custom_call.1} parent=1 // pred_region
      _
    $region29: #{tpu_custom_call.1} parent=1 // pred_fallthru
      _
    // Predicated region
    $region30: #{tpu_custom_call.1} parent=1 // pred_check
      _
    $region31: #{tpu_custom_call.1} parent=1 // pred_check_branch
      %75 = sbr.rel (0) target = $region33
    $region32: #{tpu_custom_call.1} parent=1 // pred_region
      %s77 = ssub.s32 1024, 1024
      %78 = vsyncadd [#allocation11], %s77
      %s79 = sshll.u32 [#allocation12], 4
      %s80 = int_to_ptr.vmem [resolvable:$true] %s79
      %85 = dma.hbm_to_vmem [thread:$0]  %s8, 1024, %s80, [#allocation11], 64, 64, 4
    $region33: #{tpu_custom_call.1} parent=1 // pred_fallthru
      _
    // Predicated region
    $region34: #{tpu_custom_call.1} parent=1 // pred_check
      _
    $region35: #{tpu_custom_call.1} parent=1 // pred_check_branch
      %87 = sbr.rel (0) target = $region37
    $region36: #{tpu_custom_call.1} parent=1 // pred_region
      _
    $region37: #{tpu_custom_call.1} parent=1 // pred_fallthru
      _
    // Predicated region
    $region38: #{tpu_custom_call.1} parent=1 // pred_check
      _
    $region39: #{tpu_custom_call.1} parent=1 // pred_check_branch
      %89 = sbr.rel (0) target = $region41
    $region40: #{tpu_custom_call.1} parent=1 // pred_region
      %90 = dma.done [#allocation5], 2048
    $region41: #{tpu_custom_call.1} parent=1 // pred_fallthru
      _
    // Predicated region
    $region42: #{tpu_custom_call.1} parent=1 // pred_check
      _
    $region43: #{tpu_custom_call.1} parent=1 // pred_check_branch
      %92 = sbr.rel (0) target = $region45
    $region44: #{tpu_custom_call.1} parent=1 // pred_region
      %93 = dma.done [#allocation8], 8192
    $region45: #{tpu_custom_call.1} parent=1 // pred_fallthru
      _
    // Predicated region
    $region46: #{tpu_custom_call.1} parent=1 // pred_check
      _
    $region47: #{tpu_custom_call.1} parent=1 // pred_check_branch
      %95 = sbr.rel (0) target = $region49
    $region48: #{tpu_custom_call.1} parent=1 // pred_region
      %96 = dma.done [#allocation8], 32768
    $region49: #{tpu_custom_call.1} parent=1 // pred_fallthru
      _
    // Predicated region
    $region50: #{tpu_custom_call.1} parent=1 // pred_check
      _
    $region51: #{tpu_custom_call.1} parent=1 // pred_check_branch
      %98 = sbr.rel (0) target = $region53
    $region52: #{tpu_custom_call.1} parent=1 // pred_region
      %99 = dma.done [#allocation11], 4096
    $region53: #{tpu_custom_call.1} parent=1 // pred_fallthru
      _
    // Predicated region
    $region54: #{tpu_custom_call.1} parent=1 // pred_check
      _
    $region55: #{tpu_custom_call.1} parent=1 // pred_check_branch
      %101 = sbr.rel (0) target = $region57
    $region56: #{tpu_custom_call.1} parent=1 // pred_region
      %102 = dma.done [#allocation11], 1024
    $region57: #{tpu_custom_call.1} parent=1 // pred_fallthru
      _
    %s104 = sld [smem:[#allocation3]]
    %s105 = smul.u32 %s104, 1000003
    %s106 = smul.u32 0, 7919
    %s107 = sadd.s32 %s105, %s106
    %v108 = vld [vmem:[#allocation4] sm:$0xff]
    %v109 = vld [vmem:[#allocation4 + $0x8] sm:$0xff]
    %v110 = vld [vmem:[#allocation4 + $0x10] sm:$0xff]
    %v111 = vld [vmem:[#allocation4 + $0x18] sm:$0xff]
    %v112 = vld [vmem:[#allocation4 + $0x20] sm:$0xff]
    %v113 = vld [vmem:[#allocation4 + $0x28] sm:$0xff]
    %v114 = vld [vmem:[#allocation4 + $0x30] sm:$0xff]
    %v115 = vld [vmem:[#allocation4 + $0x38] sm:$0xff]
    %v116 = vld [vmem:[#allocation4 + $0x40] sm:$0xff]
    %v117 = vld [vmem:[#allocation4 + $0x48] sm:$0xff]
    %v118 = vld [vmem:[#allocation4 + $0x50] sm:$0xff]
    %v119 = vld [vmem:[#allocation4 + $0x58] sm:$0xff]
    %v120 = vld [vmem:[#allocation4 + $0x60] sm:$0xff]
    %v121 = vld [vmem:[#allocation4 + $0x68] sm:$0xff]
    %v122 = vld [vmem:[#allocation4 + $0x70] sm:$0xff]
    %v123 = vld [vmem:[#allocation4 + $0x78] sm:$0xff]
    %v124 = vpack.c.bf16 %v109, %v108
    %v125 = vpack.c.bf16 %v111, %v110
    %v126 = vpack.c.bf16 %v113, %v112
    %v127 = vpack.c.bf16 %v115, %v114
    %v128 = vpack.c.bf16 %v117, %v116
    %v129 = vpack.c.bf16 %v119, %v118
    %v130 = vpack.c.bf16 %v121, %v120
    %v131 = vpack.c.bf16 %v123, %v122
    %v132 = vld [vmem:[#allocation7] sm:$0xff]
    %v133 = vld [vmem:[#allocation7 + $0x8] sm:$0xff]
    %v134 = vld [vmem:[#allocation7 + $0x10] sm:$0xff]
    %v135 = vld [vmem:[#allocation7 + $0x18] sm:$0xff]
    %v136 = vld [vmem:[#allocation7 + $0x20] sm:$0xff]
    %v137 = vld [vmem:[#allocation7 + $0x28] sm:$0xff]
    %v138 = vld [vmem:[#allocation7 + $0x30] sm:$0xff]
    %v139 = vld [vmem:[#allocation7 + $0x38] sm:$0xff]
    %v140 = vld [vmem:[#allocation7 + $0x40] sm:$0xff]
    %v141 = vld [vmem:[#allocation7 + $0x48] sm:$0xff]
    %v142 = vld [vmem:[#allocation7 + $0x50] sm:$0xff]
    %v143 = vld [vmem:[#allocation7 + $0x58] sm:$0xff]
    %v144 = vld [vmem:[#allocation7 + $0x60] sm:$0xff]
    %v145 = vld [vmem:[#allocation7 + $0x68] sm:$0xff]
    %v146 = vld [vmem:[#allocation7 + $0x70] sm:$0xff]
    %v147 = vld [vmem:[#allocation7 + $0x78] sm:$0xff]
    %v148 = vld [vmem:[#allocation7 + $0x80] sm:$0xff]
    %v149 = vld [vmem:[#allocation7 + $0x88] sm:$0xff]
    %v150 = vld [vmem:[#allocation7 + $0x90] sm:$0xff]
    %v151 = vld [vmem:[#allocation7 + $0x98] sm:$0xff]
    %v152 = vld [vmem:[#allocation7 + $0xa0] sm:$0xff]
    %v153 = vld [vmem:[#allocation7 + $0xa8] sm:$0xff]
    %v154 = vld [vmem:[#allocation7 + $0xb0] sm:$0xff]
    %v155 = vld [vmem:[#allocation7 + $0xb8] sm:$0xff]
    %v156 = vld [vmem:[#allocation7 + $0xc0] sm:$0xff]
    %v157 = vld [vmem:[#allocation7 + $0xc8] sm:$0xff]
    %v158 = vld [vmem:[#allocation7 + $0xd0] sm:$0xff]
    %v159 = vld [vmem:[#allocation7 + $0xd8] sm:$0xff]
    %v160 = vld [vmem:[#allocation7 + $0xe0] sm:$0xff]
    %v161 = vld [vmem:[#allocation7 + $0xe8] sm:$0xff]
    %v162 = vld [vmem:[#allocation7 + $0xf0] sm:$0xff]
    %v163 = vld [vmem:[#allocation7 + $0xf8] sm:$0xff]
    %v164 = vld [vmem:[#allocation7 + $0x100] sm:$0xff]
    %v165 = vld [vmem:[#allocation7 + $0x108] sm:$0xff]
    %v166 = vld [vmem:[#allocation7 + $0x110] sm:$0xff]
    %v167 = vld [vmem:[#allocation7 + $0x118] sm:$0xff]
    %v168 = vld [vmem:[#allocation7 + $0x120] sm:$0xff]
    %v169 = vld [vmem:[#allocation7 + $0x128] sm:$0xff]
    %v170 = vld [vmem:[#allocation7 + $0x130] sm:$0xff]
    %v171 = vld [vmem:[#allocation7 + $0x138] sm:$0xff]
    %v172 = vld [vmem:[#allocation7 + $0x140] sm:$0xff]
    %v173 = vld [vmem:[#allocation7 + $0x148] sm:$0xff]
    %v174 = vld [vmem:[#allocation7 + $0x150] sm:$0xff]
    %v175 = vld [vmem:[#allocation7 + $0x158] sm:$0xff]
    %v176 = vld [vmem:[#allocation7 + $0x160] sm:$0xff]
    %v177 = vld [vmem:[#allocation7 + $0x168] sm:$0xff]
    %v178 = vld [vmem:[#allocation7 + $0x170] sm:$0xff]
    %v179 = vld [vmem:[#allocation7 + $0x178] sm:$0xff]
    %v180 = vld [vmem:[#allocation7 + $0x180] sm:$0xff]
    %v181 = vld [vmem:[#allocation7 + $0x188] sm:$0xff]
    %v182 = vld [vmem:[#allocation7 + $0x190] sm:$0xff]
    %v183 = vld [vmem:[#allocation7 + $0x198] sm:$0xff]
    %v184 = vld [vmem:[#allocation7 + $0x1a0] sm:$0xff]
    %v185 = vld [vmem:[#allocation7 + $0x1a8] sm:$0xff]
    %v186 = vld [vmem:[#allocation7 + $0x1b0] sm:$0xff]
    %v187 = vld [vmem:[#allocation7 + $0x1b8] sm:$0xff]
    %v188 = vld [vmem:[#allocation7 + $0x1c0] sm:$0xff]
    %v189 = vld [vmem:[#allocation7 + $0x1c8] sm:$0xff]
    %v190 = vld [vmem:[#allocation7 + $0x1d0] sm:$0xff]
    %v191 = vld [vmem:[#allocation7 + $0x1d8] sm:$0xff]
    %v192 = vld [vmem:[#allocation7 + $0x1e0] sm:$0xff]
    %v193 = vld [vmem:[#allocation7 + $0x1e8] sm:$0xff]
    %v194 = vld [vmem:[#allocation7 + $0x1f0] sm:$0xff]
    %v195 = vld [vmem:[#allocation7 + $0x1f8] sm:$0xff]
    %v196 = vld [vmem:[%s3] sm:$0xff]
    %v198 = vlaneseq
    %v199 = vshrl.u32 %v198, 7
    %v200 = vsub.s32 0, %v199
    %v201 = vrot.slane %v196, %v200
    %v202 = vlaneseq
    %v203 = vshrl.u32 %v202, 7
    %v204 = vsub.s32 1, %v203
    %v205 = vrot.slane %v196, %v204
    %v206 = vlaneseq
    %v207 = vshrl.u32 %v206, 7
    %v208 = vsub.s32 2, %v207
    %v209 = vrot.slane %v196, %v208
    %v210 = vlaneseq
    %v211 = vshrl.u32 %v210, 7
    %v212 = vsub.s32 3, %v211
    %v213 = vrot.slane %v196, %v212
    %v214 = vlaneseq
    %v215 = vshrl.u32 %v214, 7
    %v216 = vsub.s32 4, %v215
    %v217 = vrot.slane %v196, %v216
    %v218 = vlaneseq
    %v219 = vshrl.u32 %v218, 7
    %v220 = vsub.s32 5, %v219
    %v221 = vrot.slane %v196, %v220
    %v222 = vlaneseq
    %v223 = vshrl.u32 %v222, 7
    %v224 = vsub.s32 6, %v223
    %v225 = vrot.slane %v196, %v224
    %v226 = vlaneseq
    %v227 = vshrl.u32 %v226, 7
    %v228 = vsub.s32 7, %v227
    %v229 = vrot.slane %v196, %v228
    %v302 = vunpack.c.l.b16 %v132
    %v303 = vunpack.c.h.b16 %v132
    %v304 = vunpack.c.l.b16 %v133
    %v305 = vunpack.c.h.b16 %v133
    %v306 = vunpack.c.l.b16 %v134
    %v307 = vunpack.c.h.b16 %v134
    %v308 = vunpack.c.l.b16 %v135
    %v309 = vunpack.c.h.b16 %v135
    %v310 = vunpack.c.l.b16 %v136
    %v311 = vunpack.c.h.b16 %v136
    %v312 = vunpack.c.l.b16 %v137
    %v313 = vunpack.c.h.b16 %v137
    %v314 = vunpack.c.l.b16 %v138
    %v315 = vunpack.c.h.b16 %v138
    %v316 = vunpack.c.l.b16 %v139
    %v317 = vunpack.c.h.b16 %v139
    %v318 = vunpack.c.l.b16 %v140
    %v319 = vunpack.c.h.b16 %v140
    %v320 = vunpack.c.l.b16 %v141
    %v321 = vunpack.c.h.b16 %v141
    %v322 = vunpack.c.l.b16 %v142
    %v323 = vunpack.c.h.b16 %v142
    %v324 = vunpack.c.l.b16 %v143
    %v325 = vunpack.c.h.b16 %v143
    %v326 = vunpack.c.l.b16 %v144
    %v327 = vunpack.c.h.b16 %v144
    %v328 = vunpack.c.l.b16 %v145
    %v329 = vunpack.c.h.b16 %v145
    %v330 = vunpack.c.l.b16 %v146
    %v331 = vunpack.c.h.b16 %v146
    %v332 = vunpack.c.l.b16 %v147
    %v333 = vunpack.c.h.b16 %v147
    %v334 = vunpack.c.l.b16 %v148
    %v335 = vunpack.c.h.b16 %v148
    %v336 = vunpack.c.l.b16 %v149
    %v337 = vunpack.c.h.b16 %v149
    %v338 = vunpack.c.l.b16 %v150
    %v339 = vunpack.c.h.b16 %v150
    %v340 = vunpack.c.l.b16 %v151
    %v341 = vunpack.c.h.b16 %v151
    %v342 = vunpack.c.l.b16 %v152
    %v343 = vunpack.c.h.b16 %v152
    %v344 = vunpack.c.l.b16 %v153
    %v345 = vunpack.c.h.b16 %v153
    %v346 = vunpack.c.l.b16 %v154
    %v347 = vunpack.c.h.b16 %v154
    %v348 = vunpack.c.l.b16 %v155
    %v349 = vunpack.c.h.b16 %v155
    %v350 = vunpack.c.l.b16 %v156
    %v351 = vunpack.c.h.b16 %v156
    %v352 = vunpack.c.l.b16 %v157
    %v353 = vunpack.c.h.b16 %v157
    %v354 = vunpack.c.l.b16 %v158
    %v355 = vunpack.c.h.b16 %v158
    %v356 = vunpack.c.l.b16 %v159
    %v357 = vunpack.c.h.b16 %v159
    %v358 = vunpack.c.l.b16 %v160
    %v359 = vunpack.c.h.b16 %v160
    %v360 = vunpack.c.l.b16 %v161
    %v361 = vunpack.c.h.b16 %v161
    %v362 = vunpack.c.l.b16 %v162
    %v363 = vunpack.c.h.b16 %v162
    %v364 = vunpack.c.l.b16 %v163
    %v365 = vunpack.c.h.b16 %v163
    %v366 = vunpack.c.l.b16 %v164
    %v367 = vunpack.c.h.b16 %v164
    %v368 = vunpack.c.l.b16 %v165
    %v369 = vunpack.c.h.b16 %v165
    %v370 = vunpack.c.l.b16 %v166
    %v371 = vunpack.c.h.b16 %v166
    %v372 = vunpack.c.l.b16 %v167
    %v373 = vunpack.c.h.b16 %v167
    %v374 = vunpack.c.l.b16 %v168
    %v375 = vunpack.c.h.b16 %v168
    %v376 = vunpack.c.l.b16 %v169
    %v377 = vunpack.c.h.b16 %v169
    %v378 = vunpack.c.l.b16 %v170
    %v379 = vunpack.c.h.b16 %v170
    %v380 = vunpack.c.l.b16 %v171
    %v381 = vunpack.c.h.b16 %v171
    %v382 = vunpack.c.l.b16 %v172
    %v383 = vunpack.c.h.b16 %v172
    %v384 = vunpack.c.l.b16 %v173
    %v385 = vunpack.c.h.b16 %v173
    %v386 = vunpack.c.l.b16 %v174
    %v387 = vunpack.c.h.b16 %v174
    %v388 = vunpack.c.l.b16 %v175
    %v389 = vunpack.c.h.b16 %v175
    %v390 = vunpack.c.l.b16 %v176
    %v391 = vunpack.c.h.b16 %v176
    %v392 = vunpack.c.l.b16 %v177
    %v393 = vunpack.c.h.b16 %v177
    %v394 = vunpack.c.l.b16 %v178
    %v395 = vunpack.c.h.b16 %v178
    %v396 = vunpack.c.l.b16 %v179
    %v397 = vunpack.c.h.b16 %v179
    %v398 = vunpack.c.l.b16 %v180
    %v399 = vunpack.c.h.b16 %v180
    %v400 = vunpack.c.l.b16 %v181
    %v401 = vunpack.c.h.b16 %v181
    %v402 = vunpack.c.l.b16 %v182
    %v403 = vunpack.c.h.b16 %v182
    %v404 = vunpack.c.l.b16 %v183
    %v405 = vunpack.c.h.b16 %v183
    %v406 = vunpack.c.l.b16 %v184
    %v407 = vunpack.c.h.b16 %v184
    %v408 = vunpack.c.l.b16 %v185
    %v409 = vunpack.c.h.b16 %v185
    %v410 = vunpack.c.l.b16 %v186
    %v411 = vunpack.c.h.b16 %v186
    %v412 = vunpack.c.l.b16 %v187
    %v413 = vunpack.c.h.b16 %v187
    %v414 = vunpack.c.l.b16 %v188
    %v415 = vunpack.c.h.b16 %v188
    %v416 = vunpack.c.l.b16 %v189
    %v417 = vunpack.c.h.b16 %v189
    %v418 = vunpack.c.l.b16 %v190
    %v419 = vunpack.c.h.b16 %v190
    %v420 = vunpack.c.l.b16 %v191
    %v421 = vunpack.c.h.b16 %v191
    %v422 = vunpack.c.l.b16 %v192
    %v423 = vunpack.c.h.b16 %v192
    %v424 = vunpack.c.l.b16 %v193
    %v425 = vunpack.c.h.b16 %v193
    %v426 = vunpack.c.l.b16 %v194
    %v427 = vunpack.c.h.b16 %v194
    %v428 = vunpack.c.l.b16 %v195
    %v429 = vunpack.c.h.b16 %v195
    %v430 = vpack.c.b16 %v310, %v302
    %v431 = vpack.c.b16 %v311, %v303
    %v432 = vpack.c.b16 %v312, %v304
    %v433 = vpack.c.b16 %v313, %v305
    %v434 = vpack.c.b16 %v314, %v306
    %v435 = vpack.c.b16 %v315, %v307
    %v436 = vpack.c.b16 %v316, %v308
    %v437 = vpack.c.b16 %v317, %v309
    %v438 = vpack.c.b16 %v326, %v318
    %v439 = vpack.c.b16 %v327, %v319
    %v440 = vpack.c.b16 %v328, %v320
    %v441 = vpack.c.b16 %v329, %v321
    %v442 = vpack.c.b16 %v330, %v322
    %v443 = vpack.c.b16 %v331, %v323
    %v444 = vpack.c.b16 %v332, %v324
    %v445 = vpack.c.b16 %v333, %v325
    %v446 = vpack.c.b16 %v342, %v334
    %v447 = vpack.c.b16 %v343, %v335
    %v448 = vpack.c.b16 %v344, %v336
    %v449 = vpack.c.b16 %v345, %v337
    %v450 = vpack.c.b16 %v346, %v338
    %v451 = vpack.c.b16 %v347, %v339
    %v452 = vpack.c.b16 %v348, %v340
    %v453 = vpack.c.b16 %v349, %v341
    %v454 = vpack.c.b16 %v358, %v350
    %v455 = vpack.c.b16 %v359, %v351
    %v456 = vpack.c.b16 %v360, %v352
    %v457 = vpack.c.b16 %v361, %v353
    %v458 = vpack.c.b16 %v362, %v354
    %v459 = vpack.c.b16 %v363, %v355
    %v460 = vpack.c.b16 %v364, %v356
    %v461 = vpack.c.b16 %v365, %v357
    %v462 = vpack.c.b16 %v374, %v366
    %v463 = vpack.c.b16 %v375, %v367
    %v464 = vpack.c.b16 %v376, %v368
    %v465 = vpack.c.b16 %v377, %v369
    %v466 = vpack.c.b16 %v378, %v370
    %v467 = vpack.c.b16 %v379, %v371
    %v468 = vpack.c.b16 %v380, %v372
    %v469 = vpack.c.b16 %v381, %v373
    %v470 = vpack.c.b16 %v390, %v382
    %v471 = vpack.c.b16 %v391, %v383
    %v472 = vpack.c.b16 %v392, %v384
    %v473 = vpack.c.b16 %v393, %v385
    %v474 = vpack.c.b16 %v394, %v386
    %v475 = vpack.c.b16 %v395, %v387
    %v476 = vpack.c.b16 %v396, %v388
    %v477 = vpack.c.b16 %v397, %v389
    %v478 = vpack.c.b16 %v406, %v398
    %v479 = vpack.c.b16 %v407, %v399
    %v480 = vpack.c.b16 %v408, %v400
    %v481 = vpack.c.b16 %v409, %v401
    %v482 = vpack.c.b16 %v410, %v402
    %v483 = vpack.c.b16 %v411, %v403
    %v484 = vpack.c.b16 %v412, %v404
    %v485 = vpack.c.b16 %v413, %v405
    %v486 = vpack.c.b16 %v422, %v414
    %v487 = vpack.c.b16 %v423, %v415
    %v488 = vpack.c.b16 %v424, %v416
    %v489 = vpack.c.b16 %v425, %v417
    %v490 = vpack.c.b16 %v426, %v418
    %v491 = vpack.c.b16 %v427, %v419
    %v492 = vpack.c.b16 %v428, %v420
    %v493 = vpack.c.b16 %v429, %v421
    %558 = vmatprep.subr.bf16.mxu0 %v431
    %559 = vmatpush1.bf16.msra.mxu0 %v430
    %560 = vmatprep.subr.bf16.mxu0 %v439
    %561 = vmatpush1.bf16.msra.mxu0 %v438
    %562 = vmatprep.subr.bf16.mxu0 %v447
    %563 = vmatpush1.bf16.msra.mxu0 %v446
    %564 = vmatprep.subr.bf16.mxu0 %v455
    %565 = vmatpush1.bf16.msra.mxu0 %v454
    %566 = vmatprep.subr.bf16.mxu0 %v463
    %567 = vmatpush1.bf16.msra.mxu0 %v462
    %568 = vmatprep.subr.bf16.mxu0 %v471
    %569 = vmatpush1.bf16.msra.mxu0 %v470
    %570 = vmatprep.subr.bf16.mxu0 %v479
    %571 = vmatpush1.bf16.msra.mxu0 %v478
    %572 = vmatprep.subr.bf16.mxu0 %v487
    %573 = vmatpush1.bf16.msra.mxu0 %v486
    %574 = vmatprep.subr.bf16.mxu0 0
    %575 = vmatpush1.bf16.msra.mxu0 0
    %576 = vmatprep.subr.bf16.mxu0 0
    %577 = vmatpush1.bf16.msra.mxu0 0
    %578 = vmatprep.subr.bf16.mxu0 0
    %579 = vmatpush1.bf16.msra.mxu0 0
    %580 = vmatprep.subr.bf16.mxu0 0
    %581 = vmatpush1.bf16.msra.mxu0 0
    %582 = vmatprep.subr.bf16.mxu0 0
    %583 = vmatpush1.bf16.msra.mxu0 0
    %584 = vmatprep.subr.bf16.mxu0 0
    %585 = vmatpush1.bf16.msra.mxu0 0
    %586 = vmatprep.subr.bf16.mxu0 0
    %587 = vmatpush1.bf16.msra.mxu0 0
    %588 = vmatprep.subr.bf16.mxu0 0
    %589 = vmatpush1.bf16.msra.mxu0 0
    %590 = vmatprep.mubr.bf16.mxu0 0
    %591 = vmatmul.mubr.bf16.gmra.mrb[0].mxu0 %v124
    %v592 = vpop.f32.mrb[0].mxu0
    %v593 = vadd.f32 %v201, %v592
    %v594 = vpop.f32.mrb[0].mxu0
    %v595 = vadd.f32 %v205, %v594
    %v596 = vpop.f32.mrb[0].mxu0
    %v597 = vadd.f32 %v201, %v596
    %v598 = vpop.f32.mrb[0].mxu0
    %v599 = vadd.f32 %v205, %v598
    %600 = vmatprep.mubr.bf16.mxu0 0
    %601 = vmatmul.mubr.bf16.gmra.mrb[0].mxu0 %v125
    %v602 = vpop.f32.mrb[0].mxu0
    %v603 = vadd.f32 %v201, %v602
    %v604 = vpop.f32.mrb[0].mxu0
    %v605 = vadd.f32 %v205, %v604
    %v606 = vpop.f32.mrb[0].mxu0
    %v607 = vadd.f32 %v201, %v606
    %v608 = vpop.f32.mrb[0].mxu0
    %v609 = vadd.f32 %v205, %v608
    %610 = vmatprep.mubr.bf16.mxu0 0
    %611 = vmatmul.mubr.bf16.gmra.mrb[0].mxu0 %v126
    %v612 = vpop.f32.mrb[0].mxu0
    %v613 = vadd.f32 %v201, %v612
    %v614 = vpop.f32.mrb[0].mxu0
    %v615 = vadd.f32 %v205, %v614
    %v616 = vpop.f32.mrb[0].mxu0
    %v617 = vadd.f32 %v201, %v616
    %v618 = vpop.f32.mrb[0].mxu0
    %v619 = vadd.f32 %v205, %v618
    %620 = vmatprep.mubr.bf16.mxu0 0
    %621 = vmatmul.mubr.bf16.gmra.mrb[0].mxu0 %v127
    %v622 = vpop.f32.mrb[0].mxu0
    %v623 = vadd.f32 %v201, %v622
    %v624 = vpop.f32.mrb[0].mxu0
    %v625 = vadd.f32 %v205, %v624
    %v626 = vpop.f32.mrb[0].mxu0
    %v627 = vadd.f32 %v201, %v626
    %v628 = vpop.f32.mrb[0].mxu0
    %v629 = vadd.f32 %v205, %v628
    %630 = vmatprep.mubr.bf16.mxu0 0
    %631 = vmatmul.mubr.bf16.gmra.mrb[0].mxu0 %v128
    %v632 = vpop.f32.mrb[0].mxu0
    %v633 = vadd.f32 %v201, %v632
    %v634 = vpop.f32.mrb[0].mxu0
    %v635 = vadd.f32 %v205, %v634
    %v636 = vpop.f32.mrb[0].mxu0
    %v637 = vadd.f32 %v201, %v636
    %v638 = vpop.f32.mrb[0].mxu0
    %v639 = vadd.f32 %v205, %v638
    %640 = vmatprep.mubr.bf16.mxu0 0
    %641 = vmatmul.mubr.bf16.gmra.mrb[0].mxu0 %v129
    %v642 = vpop.f32.mrb[0].mxu0
    %v643 = vadd.f32 %v201, %v642
    %v644 = vpop.f32.mrb[0].mxu0
    %v645 = vadd.f32 %v205, %v644
    %v646 = vpop.f32.mrb[0].mxu0
    %v647 = vadd.f32 %v201, %v646
    %v648 = vpop.f32.mrb[0].mxu0
    %v649 = vadd.f32 %v205, %v648
    %650 = vmatprep.mubr.bf16.mxu0 0
    %651 = vmatmul.mubr.bf16.gmra.mrb[0].mxu0 %v130
    %v652 = vpop.f32.mrb[0].mxu0
    %v653 = vadd.f32 %v201, %v652
    %v654 = vpop.f32.mrb[0].mxu0
    %v655 = vadd.f32 %v205, %v654
    %v656 = vpop.f32.mrb[0].mxu0
    %v657 = vadd.f32 %v201, %v656
    %v658 = vpop.f32.mrb[0].mxu0
    %v659 = vadd.f32 %v205, %v658
    %660 = vmatprep.mubr.bf16.mxu0 0
    %661 = vmatmul.mubr.bf16.gmra.mrb[0].mxu0 %v131
    %v662 = vpop.f32.mrb[0].mxu0
    %v663 = vadd.f32 %v201, %v662
    %v664 = vpop.f32.mrb[0].mxu0
    %v665 = vadd.f32 %v205, %v664
    %v666 = vpop.f32.mrb[0].mxu0
    %v667 = vadd.f32 %v201, %v666
    %v668 = vpop.f32.mrb[0].mxu0
    %v669 = vadd.f32 %v205, %v668
    %670 = vdwg.mxu0
    %671 = vmatprep.subr.bf16.mxu0 %v433
    %672 = vmatpush1.bf16.msra.mxu0 %v432
    %673 = vmatprep.subr.bf16.mxu0 %v441
    %674 = vmatpush1.bf16.msra.mxu0 %v440
    %675 = vmatprep.subr.bf16.mxu0 %v449
    %676 = vmatpush1.bf16.msra.mxu0 %v448
    %677 = vmatprep.subr.bf16.mxu0 %v457
    %678 = vmatpush1.bf16.msra.mxu0 %v456
    %679 = vmatprep.subr.bf16.mxu0 %v465
    %680 = vmatpush1.bf16.msra.mxu0 %v464
    %681 = vmatprep.subr.bf16.mxu0 %v473
    %682 = vmatpush1.bf16.msra.mxu0 %v472
    %683 = vmatprep.subr.bf16.mxu0 %v481
    %684 = vmatpush1.bf16.msra.mxu0 %v480
    %685 = vmatprep.subr.bf16.mxu0 %v489
    %686 = vmatpush1.bf16.msra.mxu0 %v488
    %687 = vmatprep.subr.bf16.mxu0 0
    %688 = vmatpush1.bf16.msra.mxu0 0
    %689 = vmatprep.subr.bf16.mxu0 0
    %690 = vmatpush1.bf16.msra.mxu0 0
    %691 = vmatprep.subr.bf16.mxu0 0
    %692 = vmatpush1.bf16.msra.mxu0 0
    %693 = vmatprep.subr.bf16.mxu0 0
    %694 = vmatpush1.bf16.msra.mxu0 0
    %695 = vmatprep.subr.bf16.mxu0 0
    %696 = vmatpush1.bf16.msra.mxu0 0
    %697 = vmatprep.subr.bf16.mxu0 0
    %698 = vmatpush1.bf16.msra.mxu0 0
    %699 = vmatprep.subr.bf16.mxu0 0
    %700 = vmatpush1.bf16.msra.mxu0 0
    %701 = vmatprep.subr.bf16.mxu0 0
    %702 = vmatpush1.bf16.msra.mxu0 0
    %703 = vmatprep.mubr.bf16.mxu0 0
    %704 = vmatmul.mubr.bf16.gmra.mrb[0].mxu0 %v124
    %v705 = vpop.f32.mrb[0].mxu0
    %v706 = vadd.f32 %v209, %v705
    %v707 = vpop.f32.mrb[0].mxu0
    %v708 = vadd.f32 %v213, %v707
    %v709 = vpop.f32.mrb[0].mxu0
    %v710 = vadd.f32 %v209, %v709
    %v711 = vpop.f32.mrb[0].mxu0
    %v712 = vadd.f32 %v213, %v711
    %713 = vmatprep.mubr.bf16.mxu0 0
    %714 = vmatmul.mubr.bf16.gmra.mrb[0].mxu0 %v125
    %v715 = vpop.f32.mrb[0].mxu0
    %v716 = vadd.f32 %v209, %v715
    %v717 = vpop.f32.mrb[0].mxu0
    %v718 = vadd.f32 %v213, %v717
    %v719 = vpop.f32.mrb[0].mxu0
    %v720 = vadd.f32 %v209, %v719
    %v721 = vpop.f32.mrb[0].mxu0
    %v722 = vadd.f32 %v213, %v721
    %723 = vmatprep.mubr.bf16.mxu0 0
    %724 = vmatmul.mubr.bf16.gmra.mrb[0].mxu0 %v126
    %v725 = vpop.f32.mrb[0].mxu0
    %v726 = vadd.f32 %v209, %v725
    %v727 = vpop.f32.mrb[0].mxu0
    %v728 = vadd.f32 %v213, %v727
    %v729 = vpop.f32.mrb[0].mxu0
    %v730 = vadd.f32 %v209, %v729
    %v731 = vpop.f32.mrb[0].mxu0
    %v732 = vadd.f32 %v213, %v731
    %733 = vmatprep.mubr.bf16.mxu0 0
    %734 = vmatmul.mubr.bf16.gmra.mrb[0].mxu0 %v127
    %v735 = vpop.f32.mrb[0].mxu0
    %v736 = vadd.f32 %v209, %v735
    %v737 = vpop.f32.mrb[0].mxu0
    %v738 = vadd.f32 %v213, %v737
    %v739 = vpop.f32.mrb[0].mxu0
    %v740 = vadd.f32 %v209, %v739
    %v741 = vpop.f32.mrb[0].mxu0
    %v742 = vadd.f32 %v213, %v741
    %743 = vmatprep.mubr.bf16.mxu0 0
    %744 = vmatmul.mubr.bf16.gmra.mrb[0].mxu0 %v128
    %v745 = vpop.f32.mrb[0].mxu0
    %v746 = vadd.f32 %v209, %v745
    %v747 = vpop.f32.mrb[0].mxu0
    %v748 = vadd.f32 %v213, %v747
    %v749 = vpop.f32.mrb[0].mxu0
    %v750 = vadd.f32 %v209, %v749
    %v751 = vpop.f32.mrb[0].mxu0
    %v752 = vadd.f32 %v213, %v751
    %753 = vmatprep.mubr.bf16.mxu0 0
    %754 = vmatmul.mubr.bf16.gmra.mrb[0].mxu0 %v129
    %v755 = vpop.f32.mrb[0].mxu0
    %v756 = vadd.f32 %v209, %v755
    %v757 = vpop.f32.mrb[0].mxu0
    %v758 = vadd.f32 %v213, %v757
    %v759 = vpop.f32.mrb[0].mxu0
    %v760 = vadd.f32 %v209, %v759
    %v761 = vpop.f32.mrb[0].mxu0
    %v762 = vadd.f32 %v213, %v761
    %763 = vmatprep.mubr.bf16.mxu0 0
    %764 = vmatmul.mubr.bf16.gmra.mrb[0].mxu0 %v130
    %v765 = vpop.f32.mrb[0].mxu0
    %v766 = vadd.f32 %v209, %v765
    %v767 = vpop.f32.mrb[0].mxu0
    %v768 = vadd.f32 %v213, %v767
    %v769 = vpop.f32.mrb[0].mxu0
    %v770 = vadd.f32 %v209, %v769
    %v771 = vpop.f32.mrb[0].mxu0
    %v772 = vadd.f32 %v213, %v771
    %773 = vmatprep.mubr.bf16.mxu0 0
    %774 = vmatmul.mubr.bf16.gmra.mrb[0].mxu0 %v131
    %v775 = vpop.f32.mrb[0].mxu0
    %v776 = vadd.f32 %v209, %v775
    %v777 = vpop.f32.mrb[0].mxu0
    %v778 = vadd.f32 %v213, %v777
    %v779 = vpop.f32.mrb[0].mxu0
    %v780 = vadd.f32 %v209, %v779
    %v781 = vpop.f32.mrb[0].mxu0
    %v782 = vadd.f32 %v213, %v781
    %783 = vdwg.mxu0
    %784 = vmatprep.subr.bf16.mxu0 %v435
    %785 = vmatpush1.bf16.msra.mxu0 %v434
    %786 = vmatprep.subr.bf16.mxu0 %v443
    %787 = vmatpush1.bf16.msra.mxu0 %v442
    %788 = vmatprep.subr.bf16.mxu0 %v451
    %789 = vmatpush1.bf16.msra.mxu0 %v450
    %790 = vmatprep.subr.bf16.mxu0 %v459
    %791 = vmatpush1.bf16.msra.mxu0 %v458
    %792 = vmatprep.subr.bf16.mxu0 %v467
    %793 = vmatpush1.bf16.msra.mxu0 %v466
    %794 = vmatprep.subr.bf16.mxu0 %v475
    %795 = vmatpush1.bf16.msra.mxu0 %v474
    %796 = vmatprep.subr.bf16.mxu0 %v483
    %797 = vmatpush1.bf16.msra.mxu0 %v482
    %798 = vmatprep.subr.bf16.mxu0 %v491
    %799 = vmatpush1.bf16.msra.mxu0 %v490
    %800 = vmatprep.subr.bf16.mxu0 0
    %801 = vmatpush1.bf16.msra.mxu0 0
    %802 = vmatprep.subr.bf16.mxu0 0
    %803 = vmatpush1.bf16.msra.mxu0 0
    %804 = vmatprep.subr.bf16.mxu0 0
    %805 = vmatpush1.bf16.msra.mxu0 0
    %806 = vmatprep.subr.bf16.mxu0 0
    %807 = vmatpush1.bf16.msra.mxu0 0
    %808 = vmatprep.subr.bf16.mxu0 0
    %809 = vmatpush1.bf16.msra.mxu0 0
    %810 = vmatprep.subr.bf16.mxu0 0
    %811 = vmatpush1.bf16.msra.mxu0 0
    %812 = vmatprep.subr.bf16.mxu0 0
    %813 = vmatpush1.bf16.msra.mxu0 0
    %814 = vmatprep.subr.bf16.mxu0 0
    %815 = vmatpush1.bf16.msra.mxu0 0
    %816 = vmatprep.mubr.bf16.mxu0 0
    %817 = vmatmul.mubr.bf16.gmra.mrb[0].mxu0 %v124
    %v818 = vpop.f32.mrb[0].mxu0
    %v819 = vadd.f32 %v217, %v818
    %v820 = vpop.f32.mrb[0].mxu0
    %v821 = vadd.f32 %v221, %v820
    %v822 = vpop.f32.mrb[0].mxu0
    %v823 = vadd.f32 %v217, %v822
    %v824 = vpop.f32.mrb[0].mxu0
    %v825 = vadd.f32 %v221, %v824
    %826 = vmatprep.mubr.bf16.mxu0 0
    %827 = vmatmul.mubr.bf16.gmra.mrb[0].mxu0 %v125
    %v828 = vpop.f32.mrb[0].mxu0
    %v829 = vadd.f32 %v217, %v828
    %v830 = vpop.f32.mrb[0].mxu0
    %v831 = vadd.f32 %v221, %v830
    %v832 = vpop.f32.mrb[0].mxu0
    %v833 = vadd.f32 %v217, %v832
    %v834 = vpop.f32.mrb[0].mxu0
    %v835 = vadd.f32 %v221, %v834
    %836 = vmatprep.mubr.bf16.mxu0 0
    %837 = vmatmul.mubr.bf16.gmra.mrb[0].mxu0 %v126
    %v838 = vpop.f32.mrb[0].mxu0
    %v839 = vadd.f32 %v217, %v838
    %v840 = vpop.f32.mrb[0].mxu0
    %v841 = vadd.f32 %v221, %v840
    %v842 = vpop.f32.mrb[0].mxu0
    %v843 = vadd.f32 %v217, %v842
    %v844 = vpop.f32.mrb[0].mxu0
    %v845 = vadd.f32 %v221, %v844
    %846 = vmatprep.mubr.bf16.mxu0 0
    %847 = vmatmul.mubr.bf16.gmra.mrb[0].mxu0 %v127
    %v848 = vpop.f32.mrb[0].mxu0
    %v849 = vadd.f32 %v217, %v848
    %v850 = vpop.f32.mrb[0].mxu0
    %v851 = vadd.f32 %v221, %v850
    %v852 = vpop.f32.mrb[0].mxu0
    %v853 = vadd.f32 %v217, %v852
    %v854 = vpop.f32.mrb[0].mxu0
    %v855 = vadd.f32 %v221, %v854
    %856 = vmatprep.mubr.bf16.mxu0 0
    %857 = vmatmul.mubr.bf16.gmra.mrb[0].mxu0 %v128
    %v858 = vpop.f32.mrb[0].mxu0
    %v859 = vadd.f32 %v217, %v858
    %v860 = vpop.f32.mrb[0].mxu0
    %v861 = vadd.f32 %v221, %v860
    %v862 = vpop.f32.mrb[0].mxu0
    %v863 = vadd.f32 %v217, %v862
    %v864 = vpop.f32.mrb[0].mxu0
    %v865 = vadd.f32 %v221, %v864
    %866 = vmatprep.mubr.bf16.mxu0 0
    %867 = vmatmul.mubr.bf16.gmra.mrb[0].mxu0 %v129
    %v868 = vpop.f32.mrb[0].mxu0
    %v869 = vadd.f32 %v217, %v868
    %v870 = vpop.f32.mrb[0].mxu0
    %v871 = vadd.f32 %v221, %v870
    %v872 = vpop.f32.mrb[0].mxu0
    %v873 = vadd.f32 %v217, %v872
    %v874 = vpop.f32.mrb[0].mxu0
    %v875 = vadd.f32 %v221, %v874
    %876 = vmatprep.mubr.bf16.mxu0 0
    %877 = vmatmul.mubr.bf16.gmra.mrb[0].mxu0 %v130
    %v878 = vpop.f32.mrb[0].mxu0
    %v879 = vadd.f32 %v217, %v878
    %v880 = vpop.f32.mrb[0].mxu0
    %v881 = vadd.f32 %v221, %v880
    %v882 = vpop.f32.mrb[0].mxu0
    %v883 = vadd.f32 %v217, %v882
    %v884 = vpop.f32.mrb[0].mxu0
    %v885 = vadd.f32 %v221, %v884
    %886 = vmatprep.mubr.bf16.mxu0 0
    %887 = vmatmul.mubr.bf16.gmra.mrb[0].mxu0 %v131
    %v888 = vpop.f32.mrb[0].mxu0
    %v889 = vadd.f32 %v217, %v888
    %v890 = vpop.f32.mrb[0].mxu0
    %v891 = vadd.f32 %v221, %v890
    %v892 = vpop.f32.mrb[0].mxu0
    %v893 = vadd.f32 %v217, %v892
    %v894 = vpop.f32.mrb[0].mxu0
    %v895 = vadd.f32 %v221, %v894
    %896 = vdwg.mxu0
    %897 = vmatprep.subr.bf16.mxu0 %v437
    %898 = vmatpush1.bf16.msra.mxu0 %v436
    %899 = vmatprep.subr.bf16.mxu0 %v445
    %900 = vmatpush1.bf16.msra.mxu0 %v444
    %901 = vmatprep.subr.bf16.mxu0 %v453
    %902 = vmatpush1.bf16.msra.mxu0 %v452
    %903 = vmatprep.subr.bf16.mxu0 %v461
    %904 = vmatpush1.bf16.msra.mxu0 %v460
    %905 = vmatprep.subr.bf16.mxu0 %v469
    %906 = vmatpush1.bf16.msra.mxu0 %v468
    %907 = vmatprep.subr.bf16.mxu0 %v477
    %908 = vmatpush1.bf16.msra.mxu0 %v476
    %909 = vmatprep.subr.bf16.mxu0 %v485
    %910 = vmatpush1.bf16.msra.mxu0 %v484
    %911 = vmatprep.subr.bf16.mxu0 %v493
    %912 = vmatpush1.bf16.msra.mxu0 %v492
    %913 = vmatprep.subr.bf16.mxu0 0
    %914 = vmatpush1.bf16.msra.mxu0 0
    %915 = vmatprep.subr.bf16.mxu0 0
    %916 = vmatpush1.bf16.msra.mxu0 0
    %917 = vmatprep.subr.bf16.mxu0 0
    %918 = vmatpush1.bf16.msra.mxu0 0
    %919 = vmatprep.subr.bf16.mxu0 0
    %920 = vmatpush1.bf16.msra.mxu0 0
    %921 = vmatprep.subr.bf16.mxu0 0
    %922 = vmatpush1.bf16.msra.mxu0 0
    %923 = vmatprep.subr.bf16.mxu0 0
    %924 = vmatpush1.bf16.msra.mxu0 0
    %925 = vmatprep.subr.bf16.mxu0 0
    %926 = vmatpush1.bf16.msra.mxu0 0
    %927 = vmatprep.subr.bf16.mxu0 0
    %928 = vmatpush1.bf16.msra.mxu0 0
    %929 = vmatprep.mubr.bf16.mxu0 0
    %930 = vmatmul.mubr.bf16.gmra.mrb[0].mxu0 %v124
    %v931 = vpop.f32.mrb[0].mxu0
    %v932 = vadd.f32 %v225, %v931
    %v933 = vpop.f32.mrb[0].mxu0
    %v934 = vadd.f32 %v229, %v933
    %v935 = vpop.f32.mrb[0].mxu0
    %v936 = vadd.f32 %v225, %v935
    %v937 = vpop.f32.mrb[0].mxu0
    %v938 = vadd.f32 %v229, %v937
    %939 = vmatprep.mubr.bf16.mxu0 0
    %940 = vmatmul.mubr.bf16.gmra.mrb[0].mxu0 %v125
    %v941 = vpop.f32.mrb[0].mxu0
    %v942 = vadd.f32 %v225, %v941
    %v943 = vpop.f32.mrb[0].mxu0
    %v944 = vadd.f32 %v229, %v943
    %v945 = vpop.f32.mrb[0].mxu0
    %v946 = vadd.f32 %v225, %v945
    %v947 = vpop.f32.mrb[0].mxu0
    %v948 = vadd.f32 %v229, %v947
    %949 = vmatprep.mubr.bf16.mxu0 0
    %950 = vmatmul.mubr.bf16.gmra.mrb[0].mxu0 %v126
    %v951 = vpop.f32.mrb[0].mxu0
    %v952 = vadd.f32 %v225, %v951
    %v953 = vpop.f32.mrb[0].mxu0
    %v954 = vadd.f32 %v229, %v953
    %v955 = vpop.f32.mrb[0].mxu0
    %v956 = vadd.f32 %v225, %v955
    %v957 = vpop.f32.mrb[0].mxu0
    %v958 = vadd.f32 %v229, %v957
    %959 = vmatprep.mubr.bf16.mxu0 0
    %960 = vmatmul.mubr.bf16.gmra.mrb[0].mxu0 %v127
    %v961 = vpop.f32.mrb[0].mxu0
    %v962 = vadd.f32 %v225, %v961
    %v963 = vpop.f32.mrb[0].mxu0
    %v964 = vadd.f32 %v229, %v963
    %v965 = vpop.f32.mrb[0].mxu0
    %v966 = vadd.f32 %v225, %v965
    %v967 = vpop.f32.mrb[0].mxu0
    %v968 = vadd.f32 %v229, %v967
    %969 = vmatprep.mubr.bf16.mxu0 0
    %970 = vmatmul.mubr.bf16.gmra.mrb[0].mxu0 %v128
    %v971 = vpop.f32.mrb[0].mxu0
    %v972 = vadd.f32 %v225, %v971
    %v973 = vpop.f32.mrb[0].mxu0
    %v974 = vadd.f32 %v229, %v973
    %v975 = vpop.f32.mrb[0].mxu0
    %v976 = vadd.f32 %v225, %v975
    %v977 = vpop.f32.mrb[0].mxu0
    %v978 = vadd.f32 %v229, %v977
    %979 = vmatprep.mubr.bf16.mxu0 0
    %980 = vmatmul.mubr.bf16.gmra.mrb[0].mxu0 %v129
    %v981 = vpop.f32.mrb[0].mxu0
    %v982 = vadd.f32 %v225, %v981
    %v983 = vpop.f32.mrb[0].mxu0
    %v984 = vadd.f32 %v229, %v983
    %v985 = vpop.f32.mrb[0].mxu0
    %v986 = vadd.f32 %v225, %v985
    %v987 = vpop.f32.mrb[0].mxu0
    %v988 = vadd.f32 %v229, %v987
    %989 = vmatprep.mubr.bf16.mxu0 0
    %990 = vmatmul.mubr.bf16.gmra.mrb[0].mxu0 %v130
    %v991 = vpop.f32.mrb[0].mxu0
    %v992 = vadd.f32 %v225, %v991
    %v993 = vpop.f32.mrb[0].mxu0
    %v994 = vadd.f32 %v229, %v993
    %v995 = vpop.f32.mrb[0].mxu0
    %v996 = vadd.f32 %v225, %v995
    %v997 = vpop.f32.mrb[0].mxu0
    %v998 = vadd.f32 %v229, %v997
    %999 = vmatprep.mubr.bf16.mxu0 0
    %1000 = vmatmul.mubr.bf16.gmra.mrb[0].mxu0 %v131
    %v1001 = vpop.f32.mrb[0].mxu0
    %v1002 = vadd.f32 %v225, %v1001
    %v1003 = vpop.f32.mrb[0].mxu0
    %v1004 = vadd.f32 %v229, %v1003
    %v1005 = vpop.f32.mrb[0].mxu0
    %v1006 = vadd.f32 %v225, %v1005
    %v1007 = vpop.f32.mrb[0].mxu0
    %v1008 = vadd.f32 %v229, %v1007
    %1009 = vdwg.mxu0
    %v1010 = vpack.c.bf16 %v597, %v593
    %v1011 = vpack.c.bf16 %v599, %v595
    %v1012 = vpack.c.bf16 %v710, %v706
    %v1013 = vpack.c.bf16 %v712, %v708
    %v1014 = vpack.c.bf16 %v823, %v819
    %v1015 = vpack.c.bf16 %v825, %v821
    %v1016 = vpack.c.bf16 %v936, %v932
    %v1017 = vpack.c.bf16 %v938, %v934
    %v1018 = vpack.c.bf16 %v607, %v603
    %v1019 = vpack.c.bf16 %v609, %v605
    %v1020 = vpack.c.bf16 %v720, %v716
    %v1021 = vpack.c.bf16 %v722, %v718
    %v1022 = vpack.c.bf16 %v833, %v829
    %v1023 = vpack.c.bf16 %v835, %v831
    %v1024 = vpack.c.bf16 %v946, %v942
    %v1025 = vpack.c.bf16 %v948, %v944
    %v1026 = vpack.c.bf16 %v617, %v613
    %v1027 = vpack.c.bf16 %v619, %v615
    %v1028 = vpack.c.bf16 %v730, %v726
    %v1029 = vpack.c.bf16 %v732, %v728
    %v1030 = vpack.c.bf16 %v843, %v839
    %v1031 = vpack.c.bf16 %v845, %v841
    %v1032 = vpack.c.bf16 %v956, %v952
    %v1033 = vpack.c.bf16 %v958, %v954
    %v1034 = vpack.c.bf16 %v627, %v623
    %v1035 = vpack.c.bf16 %v629, %v625
    %v1036 = vpack.c.bf16 %v740, %v736
    %v1037 = vpack.c.bf16 %v742, %v738
    %v1038 = vpack.c.bf16 %v853, %v849
    %v1039 = vpack.c.bf16 %v855, %v851
    %v1040 = vpack.c.bf16 %v966, %v962
    %v1041 = vpack.c.bf16 %v968, %v964
    %v1042 = vpack.c.bf16 %v637, %v633
    %v1043 = vpack.c.bf16 %v639, %v635
    %v1044 = vpack.c.bf16 %v750, %v746
    %v1045 = vpack.c.bf16 %v752, %v748
    %v1046 = vpack.c.bf16 %v863, %v859
    %v1047 = vpack.c.bf16 %v865, %v861
    %v1048 = vpack.c.bf16 %v976, %v972
    %v1049 = vpack.c.bf16 %v978, %v974
    %v1050 = vpack.c.bf16 %v647, %v643
    %v1051 = vpack.c.bf16 %v649, %v645
    %v1052 = vpack.c.bf16 %v760, %v756
    %v1053 = vpack.c.bf16 %v762, %v758
    %v1054 = vpack.c.bf16 %v873, %v869
    %v1055 = vpack.c.bf16 %v875, %v871
    %v1056 = vpack.c.bf16 %v986, %v982
    %v1057 = vpack.c.bf16 %v988, %v984
    %v1058 = vpack.c.bf16 %v657, %v653
    %v1059 = vpack.c.bf16 %v659, %v655
    %v1060 = vpack.c.bf16 %v770, %v766
    %v1061 = vpack.c.bf16 %v772, %v768
    %v1062 = vpack.c.bf16 %v883, %v879
    %v1063 = vpack.c.bf16 %v885, %v881
    %v1064 = vpack.c.bf16 %v996, %v992
    %v1065 = vpack.c.bf16 %v998, %v994
    %v1066 = vpack.c.bf16 %v667, %v663
    %v1067 = vpack.c.bf16 %v669, %v665
    %v1068 = vpack.c.bf16 %v780, %v776
    %v1069 = vpack.c.bf16 %v782, %v778
    %v1070 = vpack.c.bf16 %v893, %v889
    %v1071 = vpack.c.bf16 %v895, %v891
    %v1072 = vpack.c.bf16 %v1006, %v1002
    %v1073 = vpack.c.bf16 %v1008, %v1004
    %v1074 = vld [vmem:[#allocation9] sm:$0xff]
    %v1075 = vld [vmem:[#allocation9 + $0x8] sm:$0xff]
    %v1076 = vld [vmem:[#allocation9 + $0x10] sm:$0xff]
    %v1077 = vld [vmem:[#allocation9 + $0x18] sm:$0xff]
    %v1078 = vld [vmem:[#allocation9 + $0x20] sm:$0xff]
    %v1079 = vld [vmem:[#allocation9 + $0x28] sm:$0xff]
    %v1080 = vld [vmem:[#allocation9 + $0x30] sm:$0xff]
    %v1081 = vld [vmem:[#allocation9 + $0x38] sm:$0xff]
    %v1082 = vld [vmem:[#allocation9 + $0x40] sm:$0xff]
    %v1083 = vld [vmem:[#allocation9 + $0x48] sm:$0xff]
    %v1084 = vld [vmem:[#allocation9 + $0x50] sm:$0xff]
    %v1085 = vld [vmem:[#allocation9 + $0x58] sm:$0xff]
    %v1086 = vld [vmem:[#allocation9 + $0x60] sm:$0xff]
    %v1087 = vld [vmem:[#allocation9 + $0x68] sm:$0xff]
    %v1088 = vld [vmem:[#allocation9 + $0x70] sm:$0xff]
    %v1089 = vld [vmem:[#allocation9 + $0x78] sm:$0xff]
    %v1090 = vld [vmem:[#allocation9 + $0x80] sm:$0xff]
    %v1091 = vld [vmem:[#allocation9 + $0x88] sm:$0xff]
    %v1092 = vld [vmem:[#allocation9 + $0x90] sm:$0xff]
    %v1093 = vld [vmem:[#allocation9 + $0x98] sm:$0xff]
    %v1094 = vld [vmem:[#allocation9 + $0xa0] sm:$0xff]
    %v1095 = vld [vmem:[#allocation9 + $0xa8] sm:$0xff]
    %v1096 = vld [vmem:[#allocation9 + $0xb0] sm:$0xff]
    %v1097 = vld [vmem:[#allocation9 + $0xb8] sm:$0xff]
    %v1098 = vld [vmem:[#allocation9 + $0xc0] sm:$0xff]
    %v1099 = vld [vmem:[#allocation9 + $0xc8] sm:$0xff]
    %v1100 = vld [vmem:[#allocation9 + $0xd0] sm:$0xff]
    %v1101 = vld [vmem:[#allocation9 + $0xd8] sm:$0xff]
    %v1102 = vld [vmem:[#allocation9 + $0xe0] sm:$0xff]
    %v1103 = vld [vmem:[#allocation9 + $0xe8] sm:$0xff]
    %v1104 = vld [vmem:[#allocation9 + $0xf0] sm:$0xff]
    %v1105 = vld [vmem:[#allocation9 + $0xf8] sm:$0xff]
    %v1106 = vld [vmem:[#allocation9 + $0x100] sm:$0xff]
    %v1107 = vld [vmem:[#allocation9 + $0x108] sm:$0xff]
    %v1108 = vld [vmem:[#allocation9 + $0x110] sm:$0xff]
    %v1109 = vld [vmem:[#allocation9 + $0x118] sm:$0xff]
    %v1110 = vld [vmem:[#allocation9 + $0x120] sm:$0xff]
    %v1111 = vld [vmem:[#allocation9 + $0x128] sm:$0xff]
    %v1112 = vld [vmem:[#allocation9 + $0x130] sm:$0xff]
    %v1113 = vld [vmem:[#allocation9 + $0x138] sm:$0xff]
    %v1114 = vld [vmem:[#allocation9 + $0x140] sm:$0xff]
    %v1115 = vld [vmem:[#allocation9 + $0x148] sm:$0xff]
    %v1116 = vld [vmem:[#allocation9 + $0x150] sm:$0xff]
    %v1117 = vld [vmem:[#allocation9 + $0x158] sm:$0xff]
    %v1118 = vld [vmem:[#allocation9 + $0x160] sm:$0xff]
    %v1119 = vld [vmem:[#allocation9 + $0x168] sm:$0xff]
    %v1120 = vld [vmem:[#allocation9 + $0x170] sm:$0xff]
    %v1121 = vld [vmem:[#allocation9 + $0x178] sm:$0xff]
    %v1122 = vld [vmem:[#allocation9 + $0x180] sm:$0xff]
    %v1123 = vld [vmem:[#allocation9 + $0x188] sm:$0xff]
    %v1124 = vld [vmem:[#allocation9 + $0x190] sm:$0xff]
    %v1125 = vld [vmem:[#allocation9 + $0x198] sm:$0xff]
    %v1126 = vld [vmem:[#allocation9 + $0x1a0] sm:$0xff]
    %v1127 = vld [vmem:[#allocation9 + $0x1a8] sm:$0xff]
    %v1128 = vld [vmem:[#allocation9 + $0x1b0] sm:$0xff]
    %v1129 = vld [vmem:[#allocation9 + $0x1b8] sm:$0xff]
    %v1130 = vld [vmem:[#allocation9 + $0x1c0] sm:$0xff]
    %v1131 = vld [vmem:[#allocation9 + $0x1c8] sm:$0xff]
    %v1132 = vld [vmem:[#allocation9 + $0x1d0] sm:$0xff]
    %v1133 = vld [vmem:[#allocation9 + $0x1d8] sm:$0xff]
    %v1134 = vld [vmem:[#allocation9 + $0x1e0] sm:$0xff]
    %v1135 = vld [vmem:[#allocation9 + $0x1e8] sm:$0xff]
    %v1136 = vld [vmem:[#allocation9 + $0x1f0] sm:$0xff]
    %v1137 = vld [vmem:[#allocation9 + $0x1f8] sm:$0xff]
    %v1138 = vld [vmem:[#allocation9 + $0x200] sm:$0xff]
    %v1139 = vld [vmem:[#allocation9 + $0x208] sm:$0xff]
    %v1140 = vld [vmem:[#allocation9 + $0x210] sm:$0xff]
    %v1141 = vld [vmem:[#allocation9 + $0x218] sm:$0xff]
    %v1142 = vld [vmem:[#allocation9 + $0x220] sm:$0xff]
    %v1143 = vld [vmem:[#allocation9 + $0x228] sm:$0xff]
    %v1144 = vld [vmem:[#allocation9 + $0x230] sm:$0xff]
    %v1145 = vld [vmem:[#allocation9 + $0x238] sm:$0xff]
    %v1146 = vld [vmem:[#allocation9 + $0x240] sm:$0xff]
    %v1147 = vld [vmem:[#allocation9 + $0x248] sm:$0xff]
    %v1148 = vld [vmem:[#allocation9 + $0x250] sm:$0xff]
    %v1149 = vld [vmem:[#allocation9 + $0x258] sm:$0xff]
    %v1150 = vld [vmem:[#allocation9 + $0x260] sm:$0xff]
    %v1151 = vld [vmem:[#allocation9 + $0x268] sm:$0xff]
    %v1152 = vld [vmem:[#allocation9 + $0x270] sm:$0xff]
    %v1153 = vld [vmem:[#allocation9 + $0x278] sm:$0xff]
    %v1154 = vld [vmem:[#allocation9 + $0x280] sm:$0xff]
    %v1155 = vld [vmem:[#allocation9 + $0x288] sm:$0xff]
    %v1156 = vld [vmem:[#allocation9 + $0x290] sm:$0xff]
    %v1157 = vld [vmem:[#allocation9 + $0x298] sm:$0xff]
    %v1158 = vld [vmem:[#allocation9 + $0x2a0] sm:$0xff]
    %v1159 = vld [vmem:[#allocation9 + $0x2a8] sm:$0xff]
    %v1160 = vld [vmem:[#allocation9 + $0x2b0] sm:$0xff]
    %v1161 = vld [vmem:[#allocation9 + $0x2b8] sm:$0xff]
    %v1162 = vld [vmem:[#allocation9 + $0x2c0] sm:$0xff]
    %v1163 = vld [vmem:[#allocation9 + $0x2c8] sm:$0xff]
    %v1164 = vld [vmem:[#allocation9 + $0x2d0] sm:$0xff]
    %v1165 = vld [vmem:[#allocation9 + $0x2d8] sm:$0xff]
    %v1166 = vld [vmem:[#allocation9 + $0x2e0] sm:$0xff]
    %v1167 = vld [vmem:[#allocation9 + $0x2e8] sm:$0xff]
    %v1168 = vld [vmem:[#allocation9 + $0x2f0] sm:$0xff]
    %v1169 = vld [vmem:[#allocation9 + $0x2f8] sm:$0xff]
    %v1170 = vld [vmem:[#allocation9 + $0x300] sm:$0xff]
    %v1171 = vld [vmem:[#allocation9 + $0x308] sm:$0xff]
    %v1172 = vld [vmem:[#allocation9 + $0x310] sm:$0xff]
    %v1173 = vld [vmem:[#allocation9 + $0x318] sm:$0xff]
    %v1174 = vld [vmem:[#allocation9 + $0x320] sm:$0xff]
    %v1175 = vld [vmem:[#allocation9 + $0x328] sm:$0xff]
    %v1176 = vld [vmem:[#allocation9 + $0x330] sm:$0xff]
    %v1177 = vld [vmem:[#allocation9 + $0x338] sm:$0xff]
    %v1178 = vld [vmem:[#allocation9 + $0x340] sm:$0xff]
    %v1179 = vld [vmem:[#allocation9 + $0x348] sm:$0xff]
    %v1180 = vld [vmem:[#allocation9 + $0x350] sm:$0xff]
    %v1181 = vld [vmem:[#allocation9 + $0x358] sm:$0xff]
    %v1182 = vld [vmem:[#allocation9 + $0x360] sm:$0xff]
    %v1183 = vld [vmem:[#allocation9 + $0x368] sm:$0xff]
    %v1184 = vld [vmem:[#allocation9 + $0x370] sm:$0xff]
    %v1185 = vld [vmem:[#allocation9 + $0x378] sm:$0xff]
    %v1186 = vld [vmem:[#allocation9 + $0x380] sm:$0xff]
    %v1187 = vld [vmem:[#allocation9 + $0x388] sm:$0xff]
    %v1188 = vld [vmem:[#allocation9 + $0x390] sm:$0xff]
    %v1189 = vld [vmem:[#allocation9 + $0x398] sm:$0xff]
    %v1190 = vld [vmem:[#allocation9 + $0x3a0] sm:$0xff]
    %v1191 = vld [vmem:[#allocation9 + $0x3a8] sm:$0xff]
    %v1192 = vld [vmem:[#allocation9 + $0x3b0] sm:$0xff]
    %v1193 = vld [vmem:[#allocation9 + $0x3b8] sm:$0xff]
    %v1194 = vld [vmem:[#allocation9 + $0x3c0] sm:$0xff]
    %v1195 = vld [vmem:[#allocation9 + $0x3c8] sm:$0xff]
    %v1196 = vld [vmem:[#allocation9 + $0x3d0] sm:$0xff]
    %v1197 = vld [vmem:[#allocation9 + $0x3d8] sm:$0xff]
    %v1198 = vld [vmem:[#allocation9 + $0x3e0] sm:$0xff]
    %v1199 = vld [vmem:[#allocation9 + $0x3e8] sm:$0xff]
    %v1200 = vld [vmem:[#allocation9 + $0x3f0] sm:$0xff]
    %v1201 = vld [vmem:[#allocation9 + $0x3f8] sm:$0xff]
    %v1202 = vld [vmem:[#allocation9 + $0x400] sm:$0xff]
    %v1203 = vld [vmem:[#allocation9 + $0x408] sm:$0xff]
    %v1204 = vld [vmem:[#allocation9 + $0x410] sm:$0xff]
    %v1205 = vld [vmem:[#allocation9 + $0x418] sm:$0xff]
    %v1206 = vld [vmem:[#allocation9 + $0x420] sm:$0xff]
    %v1207 = vld [vmem:[#allocation9 + $0x428] sm:$0xff]
    %v1208 = vld [vmem:[#allocation9 + $0x430] sm:$0xff]
    %v1209 = vld [vmem:[#allocation9 + $0x438] sm:$0xff]
    %v1210 = vld [vmem:[#allocation9 + $0x440] sm:$0xff]
    %v1211 = vld [vmem:[#allocation9 + $0x448] sm:$0xff]
    %v1212 = vld [vmem:[#allocation9 + $0x450] sm:$0xff]
    %v1213 = vld [vmem:[#allocation9 + $0x458] sm:$0xff]
    %v1214 = vld [vmem:[#allocation9 + $0x460] sm:$0xff]
    %v1215 = vld [vmem:[#allocation9 + $0x468] sm:$0xff]
    %v1216 = vld [vmem:[#allocation9 + $0x470] sm:$0xff]
    %v1217 = vld [vmem:[#allocation9 + $0x478] sm:$0xff]
    %v1218 = vld [vmem:[#allocation9 + $0x480] sm:$0xff]
    %v1219 = vld [vmem:[#allocation9 + $0x488] sm:$0xff]
    %v1220 = vld [vmem:[#allocation9 + $0x490] sm:$0xff]
    %v1221 = vld [vmem:[#allocation9 + $0x498] sm:$0xff]
    %v1222 = vld [vmem:[#allocation9 + $0x4a0] sm:$0xff]
    %v1223 = vld [vmem:[#allocation9 + $0x4a8] sm:$0xff]
    %v1224 = vld [vmem:[#allocation9 + $0x4b0] sm:$0xff]
    %v1225 = vld [vmem:[#allocation9 + $0x4b8] sm:$0xff]
    %v1226 = vld [vmem:[#allocation9 + $0x4c0] sm:$0xff]
    %v1227 = vld [vmem:[#allocation9 + $0x4c8] sm:$0xff]
    %v1228 = vld [vmem:[#allocation9 + $0x4d0] sm:$0xff]
    %v1229 = vld [vmem:[#allocation9 + $0x4d8] sm:$0xff]
    %v1230 = vld [vmem:[#allocation9 + $0x4e0] sm:$0xff]
    %v1231 = vld [vmem:[#allocation9 + $0x4e8] sm:$0xff]
    %v1232 = vld [vmem:[#allocation9 + $0x4f0] sm:$0xff]
    %v1233 = vld [vmem:[#allocation9 + $0x4f8] sm:$0xff]
    %v1234 = vld [vmem:[#allocation9 + $0x500] sm:$0xff]
    %v1235 = vld [vmem:[#allocation9 + $0x508] sm:$0xff]
    %v1236 = vld [vmem:[#allocation9 + $0x510] sm:$0xff]
    %v1237 = vld [vmem:[#allocation9 + $0x518] sm:$0xff]
    %v1238 = vld [vmem:[#allocation9 + $0x520] sm:$0xff]
    %v1239 = vld [vmem:[#allocation9 + $0x528] sm:$0xff]
    %v1240 = vld [vmem:[#allocation9 + $0x530] sm:$0xff]
    %v1241 = vld [vmem:[#allocation9 + $0x538] sm:$0xff]
    %v1242 = vld [vmem:[#allocation9 + $0x540] sm:$0xff]
    %v1243 = vld [vmem:[#allocation9 + $0x548] sm:$0xff]
    %v1244 = vld [vmem:[#allocation9 + $0x550] sm:$0xff]
    %v1245 = vld [vmem:[#allocation9 + $0x558] sm:$0xff]
    %v1246 = vld [vmem:[#allocation9 + $0x560] sm:$0xff]
    %v1247 = vld [vmem:[#allocation9 + $0x568] sm:$0xff]
    %v1248 = vld [vmem:[#allocation9 + $0x570] sm:$0xff]
    %v1249 = vld [vmem:[#allocation9 + $0x578] sm:$0xff]
    %v1250 = vld [vmem:[#allocation9 + $0x580] sm:$0xff]
    %v1251 = vld [vmem:[#allocation9 + $0x588] sm:$0xff]
    %v1252 = vld [vmem:[#allocation9 + $0x590] sm:$0xff]
    %v1253 = vld [vmem:[#allocation9 + $0x598] sm:$0xff]
    %v1254 = vld [vmem:[#allocation9 + $0x5a0] sm:$0xff]
    %v1255 = vld [vmem:[#allocation9 + $0x5a8] sm:$0xff]
    %v1256 = vld [vmem:[#allocation9 + $0x5b0] sm:$0xff]
    %v1257 = vld [vmem:[#allocation9 + $0x5b8] sm:$0xff]
    %v1258 = vld [vmem:[#allocation9 + $0x5c0] sm:$0xff]
    %v1259 = vld [vmem:[#allocation9 + $0x5c8] sm:$0xff]
    %v1260 = vld [vmem:[#allocation9 + $0x5d0] sm:$0xff]
    %v1261 = vld [vmem:[#allocation9 + $0x5d8] sm:$0xff]
    %v1262 = vld [vmem:[#allocation9 + $0x5e0] sm:$0xff]
    %v1263 = vld [vmem:[#allocation9 + $0x5e8] sm:$0xff]
    %v1264 = vld [vmem:[#allocation9 + $0x5f0] sm:$0xff]
    %v1265 = vld [vmem:[#allocation9 + $0x5f8] sm:$0xff]
    %v1266 = vld [vmem:[#allocation9 + $0x600] sm:$0xff]
    %v1267 = vld [vmem:[#allocation9 + $0x608] sm:$0xff]
    %v1268 = vld [vmem:[#allocation9 + $0x610] sm:$0xff]
    %v1269 = vld [vmem:[#allocation9 + $0x618] sm:$0xff]
    %v1270 = vld [vmem:[#allocation9 + $0x620] sm:$0xff]
    %v1271 = vld [vmem:[#allocation9 + $0x628] sm:$0xff]
    %v1272 = vld [vmem:[#allocation9 + $0x630] sm:$0xff]
    %v1273 = vld [vmem:[#allocation9 + $0x638] sm:$0xff]
    %v1274 = vld [vmem:[#allocation9 + $0x640] sm:$0xff]
    %v1275 = vld [vmem:[#allocation9 + $0x648] sm:$0xff]
    %v1276 = vld [vmem:[#allocation9 + $0x650] sm:$0xff]
    %v1277 = vld [vmem:[#allocation9 + $0x658] sm:$0xff]
    %v1278 = vld [vmem:[#allocation9 + $0x660] sm:$0xff]
    %v1279 = vld [vmem:[#allocation9 + $0x668] sm:$0xff]
    %v1280 = vld [vmem:[#allocation9 + $0x670] sm:$0xff]
    %v1281 = vld [vmem:[#allocation9 + $0x678] sm:$0xff]
    %v1282 = vld [vmem:[#allocation9 + $0x680] sm:$0xff]
    %v1283 = vld [vmem:[#allocation9 + $0x688] sm:$0xff]
    %v1284 = vld [vmem:[#allocation9 + $0x690] sm:$0xff]
    %v1285 = vld [vmem:[#allocation9 + $0x698] sm:$0xff]
    %v1286 = vld [vmem:[#allocation9 + $0x6a0] sm:$0xff]
    %v1287 = vld [vmem:[#allocation9 + $0x6a8] sm:$0xff]
    %v1288 = vld [vmem:[#allocation9 + $0x6b0] sm:$0xff]
    %v1289 = vld [vmem:[#allocation9 + $0x6b8] sm:$0xff]
    %v1290 = vld [vmem:[#allocation9 + $0x6c0] sm:$0xff]
    %v1291 = vld [vmem:[#allocation9 + $0x6c8] sm:$0xff]
    %v1292 = vld [vmem:[#allocation9 + $0x6d0] sm:$0xff]
    %v1293 = vld [vmem:[#allocation9 + $0x6d8] sm:$0xff]
    %v1294 = vld [vmem:[#allocation9 + $0x6e0] sm:$0xff]
    %v1295 = vld [vmem:[#allocation9 + $0x6e8] sm:$0xff]
    %v1296 = vld [vmem:[#allocation9 + $0x6f0] sm:$0xff]
    %v1297 = vld [vmem:[#allocation9 + $0x6f8] sm:$0xff]
    %v1298 = vld [vmem:[#allocation9 + $0x700] sm:$0xff]
    %v1299 = vld [vmem:[#allocation9 + $0x708] sm:$0xff]
    %v1300 = vld [vmem:[#allocation9 + $0x710] sm:$0xff]
    %v1301 = vld [vmem:[#allocation9 + $0x718] sm:$0xff]
    %v1302 = vld [vmem:[#allocation9 + $0x720] sm:$0xff]
    %v1303 = vld [vmem:[#allocation9 + $0x728] sm:$0xff]
    %v1304 = vld [vmem:[#allocation9 + $0x730] sm:$0xff]
    %v1305 = vld [vmem:[#allocation9 + $0x738] sm:$0xff]
    %v1306 = vld [vmem:[#allocation9 + $0x740] sm:$0xff]
    %v1307 = vld [vmem:[#allocation9 + $0x748] sm:$0xff]
    %v1308 = vld [vmem:[#allocation9 + $0x750] sm:$0xff]
    %v1309 = vld [vmem:[#allocation9 + $0x758] sm:$0xff]
    %v1310 = vld [vmem:[#allocation9 + $0x760] sm:$0xff]
    %v1311 = vld [vmem:[#allocation9 + $0x768] sm:$0xff]
    %v1312 = vld [vmem:[#allocation9 + $0x770] sm:$0xff]
    %v1313 = vld [vmem:[#allocation9 + $0x778] sm:$0xff]
    %v1314 = vld [vmem:[#allocation9 + $0x780] sm:$0xff]
    %v1315 = vld [vmem:[#allocation9 + $0x788] sm:$0xff]
    %v1316 = vld [vmem:[#allocation9 + $0x790] sm:$0xff]
    %v1317 = vld [vmem:[#allocation9 + $0x798] sm:$0xff]
    %v1318 = vld [vmem:[#allocation9 + $0x7a0] sm:$0xff]
    %v1319 = vld [vmem:[#allocation9 + $0x7a8] sm:$0xff]
    %v1320 = vld [vmem:[#allocation9 + $0x7b0] sm:$0xff]
    %v1321 = vld [vmem:[#allocation9 + $0x7b8] sm:$0xff]
    %v1322 = vld [vmem:[#allocation9 + $0x7c0] sm:$0xff]
    %v1323 = vld [vmem:[#allocation9 + $0x7c8] sm:$0xff]
    %v1324 = vld [vmem:[#allocation9 + $0x7d0] sm:$0xff]
    %v1325 = vld [vmem:[#allocation9 + $0x7d8] sm:$0xff]
    %v1326 = vld [vmem:[#allocation9 + $0x7e0] sm:$0xff]
    %v1327 = vld [vmem:[#allocation9 + $0x7e8] sm:$0xff]
    %v1328 = vld [vmem:[#allocation9 + $0x7f0] sm:$0xff]
    %v1329 = vld [vmem:[#allocation9 + $0x7f8] sm:$0xff]
    %v1330 = vld [vmem:[%s5] sm:$0xf]
    %v1332 = vlaneseq
    %v1333 = vshrl.u32 %v1332, 7
    %v1334 = vsub.s32 0, %v1333
    %v1335 = vrot.slane %v1330, %v1334
    %v1336 = vlaneseq
    %v1337 = vshrl.u32 %v1336, 7
    %v1338 = vsub.s32 1, %v1337
    %v1339 = vrot.slane %v1330, %v1338
    %v1340 = vlaneseq
    %v1341 = vshrl.u32 %v1340, 7
    %v1342 = vsub.s32 2, %v1341
    %v1343 = vrot.slane %v1330, %v1342
    %v1344 = vlaneseq
    %v1345 = vshrl.u32 %v1344, 7
    %v1346 = vsub.s32 3, %v1345
    %v1347 = vrot.slane %v1330, %v1346
    %v1608 = vunpack.c.l.b16 %v1074
    %v1609 = vunpack.c.h.b16 %v1074
    %v1610 = vunpack.c.l.b16 %v1075
    %v1611 = vunpack.c.h.b16 %v1075
    %v1612 = vunpack.c.l.b16 %v1076
    %v1613 = vunpack.c.h.b16 %v1076
    %v1614 = vunpack.c.l.b16 %v1077
    %v1615 = vunpack.c.h.b16 %v1077
    %v1616 = vunpack.c.l.b16 %v1078
    %v1617 = vunpack.c.h.b16 %v1078
    %v1618 = vunpack.c.l.b16 %v1079
    %v1619 = vunpack.c.h.b16 %v1079
    %v1620 = vunpack.c.l.b16 %v1080
    %v1621 = vunpack.c.h.b16 %v1080
    %v1622 = vunpack.c.l.b16 %v1081
    %v1623 = vunpack.c.h.b16 %v1081
    %v1624 = vunpack.c.l.b16 %v1082
    %v1625 = vunpack.c.h.b16 %v1082
    %v1626 = vunpack.c.l.b16 %v1083
    %v1627 = vunpack.c.h.b16 %v1083
    %v1628 = vunpack.c.l.b16 %v1084
    %v1629 = vunpack.c.h.b16 %v1084
    %v1630 = vunpack.c.l.b16 %v1085
    %v1631 = vunpack.c.h.b16 %v1085
    %v1632 = vunpack.c.l.b16 %v1086
    %v1633 = vunpack.c.h.b16 %v1086
    %v1634 = vunpack.c.l.b16 %v1087
    %v1635 = vunpack.c.h.b16 %v1087
    %v1636 = vunpack.c.l.b16 %v1088
    %v1637 = vunpack.c.h.b16 %v1088
    %v1638 = vunpack.c.l.b16 %v1089
    %v1639 = vunpack.c.h.b16 %v1089
    %v1640 = vunpack.c.l.b16 %v1090
    %v1641 = vunpack.c.h.b16 %v1090
    %v1642 = vunpack.c.l.b16 %v1091
    %v1643 = vunpack.c.h.b16 %v1091
    %v1644 = vunpack.c.l.b16 %v1092
    %v1645 = vunpack.c.h.b16 %v1092
    %v1646 = vunpack.c.l.b16 %v1093
    %v1647 = vunpack.c.h.b16 %v1093
    %v1648 = vunpack.c.l.b16 %v1094
    %v1649 = vunpack.c.h.b16 %v1094
    %v1650 = vunpack.c.l.b16 %v1095
    %v1651 = vunpack.c.h.b16 %v1095
    %v1652 = vunpack.c.l.b16 %v1096
    %v1653 = vunpack.c.h.b16 %v1096
    %v1654 = vunpack.c.l.b16 %v1097
    %v1655 = vunpack.c.h.b16 %v1097
    %v1656 = vunpack.c.l.b16 %v1098
    %v1657 = vunpack.c.h.b16 %v1098
    %v1658 = vunpack.c.l.b16 %v1099
    %v1659 = vunpack.c.h.b16 %v1099
    %v1660 = vunpack.c.l.b16 %v1100
    %v1661 = vunpack.c.h.b16 %v1100
    %v1662 = vunpack.c.l.b16 %v1101
    %v1663 = vunpack.c.h.b16 %v1101
    %v1664 = vunpack.c.l.b16 %v1102
    %v1665 = vunpack.c.h.b16 %v1102
    %v1666 = vunpack.c.l.b16 %v1103
    %v1667 = vunpack.c.h.b16 %v1103
    %v1668 = vunpack.c.l.b16 %v1104
    %v1669 = vunpack.c.h.b16 %v1104
    %v1670 = vunpack.c.l.b16 %v1105
    %v1671 = vunpack.c.h.b16 %v1105
    %v1672 = vunpack.c.l.b16 %v1106
    %v1673 = vunpack.c.h.b16 %v1106
    %v1674 = vunpack.c.l.b16 %v1107
    %v1675 = vunpack.c.h.b16 %v1107
    %v1676 = vunpack.c.l.b16 %v1108
    %v1677 = vunpack.c.h.b16 %v1108
    %v1678 = vunpack.c.l.b16 %v1109
    %v1679 = vunpack.c.h.b16 %v1109
    %v1680 = vunpack.c.l.b16 %v1110
    %v1681 = vunpack.c.h.b16 %v1110
    %v1682 = vunpack.c.l.b16 %v1111
    %v1683 = vunpack.c.h.b16 %v1111
    %v1684 = vunpack.c.l.b16 %v1112
    %v1685 = vunpack.c.h.b16 %v1112
    %v1686 = vunpack.c.l.b16 %v1113
    %v1687 = vunpack.c.h.b16 %v1113
    %v1688 = vunpack.c.l.b16 %v1114
    %v1689 = vunpack.c.h.b16 %v1114
    %v1690 = vunpack.c.l.b16 %v1115
    %v1691 = vunpack.c.h.b16 %v1115
    %v1692 = vunpack.c.l.b16 %v1116
    %v1693 = vunpack.c.h.b16 %v1116
    %v1694 = vunpack.c.l.b16 %v1117
    %v1695 = vunpack.c.h.b16 %v1117
    %v1696 = vunpack.c.l.b16 %v1118
    %v1697 = vunpack.c.h.b16 %v1118
    %v1698 = vunpack.c.l.b16 %v1119
    %v1699 = vunpack.c.h.b16 %v1119
    %v1700 = vunpack.c.l.b16 %v1120
    %v1701 = vunpack.c.h.b16 %v1120
    %v1702 = vunpack.c.l.b16 %v1121
    %v1703 = vunpack.c.h.b16 %v1121
    %v1704 = vunpack.c.l.b16 %v1122
    %v1705 = vunpack.c.h.b16 %v1122
    %v1706 = vunpack.c.l.b16 %v1123
    %v1707 = vunpack.c.h.b16 %v1123
    %v1708 = vunpack.c.l.b16 %v1124
    %v1709 = vunpack.c.h.b16 %v1124
    %v1710 = vunpack.c.l.b16 %v1125
    %v1711 = vunpack.c.h.b16 %v1125
    %v1712 = vunpack.c.l.b16 %v1126
    %v1713 = vunpack.c.h.b16 %v1126
    %v1714 = vunpack.c.l.b16 %v1127
    %v1715 = vunpack.c.h.b16 %v1127
    %v1716 = vunpack.c.l.b16 %v1128
    %v1717 = vunpack.c.h.b16 %v1128
    %v1718 = vunpack.c.l.b16 %v1129
    %v1719 = vunpack.c.h.b16 %v1129
    %v1720 = vunpack.c.l.b16 %v1130
    %v1721 = vunpack.c.h.b16 %v1130
    %v1722 = vunpack.c.l.b16 %v1131
    %v1723 = vunpack.c.h.b16 %v1131
    %v1724 = vunpack.c.l.b16 %v1132
    %v1725 = vunpack.c.h.b16 %v1132
    %v1726 = vunpack.c.l.b16 %v1133
    %v1727 = vunpack.c.h.b16 %v1133
    %v1728 = vunpack.c.l.b16 %v1134
    %v1729 = vunpack.c.h.b16 %v1134
    %v1730 = vunpack.c.l.b16 %v1135
    %v1731 = vunpack.c.h.b16 %v1135
    %v1732 = vunpack.c.l.b16 %v1136
    %v1733 = vunpack.c.h.b16 %v1136
    %v1734 = vunpack.c.l.b16 %v1137
    %v1735 = vunpack.c.h.b16 %v1137
    %v1736 = vunpack.c.l.b16 %v1138
    %v1737 = vunpack.c.h.b16 %v1138
    %v1738 = vunpack.c.l.b16 %v1139
    %v1739 = vunpack.c.h.b16 %v1139
    %v1740 = vunpack.c.l.b16 %v1140
    %v1741 = vunpack.c.h.b16 %v1140
    %v1742 = vunpack.c.l.b16 %v1141
    %v1743 = vunpack.c.h.b16 %v1141
    %v1744 = vunpack.c.l.b16 %v1142
    %v1745 = vunpack.c.h.b16 %v1142
    %v1746 = vunpack.c.l.b16 %v1143
    %v1747 = vunpack.c.h.b16 %v1143
    %v1748 = vunpack.c.l.b16 %v1144
    %v1749 = vunpack.c.h.b16 %v1144
    %v1750 = vunpack.c.l.b16 %v1145
    %v1751 = vunpack.c.h.b16 %v1145
    %v1752 = vunpack.c.l.b16 %v1146
    %v1753 = vunpack.c.h.b16 %v1146
    %v1754 = vunpack.c.l.b16 %v1147
    %v1755 = vunpack.c.h.b16 %v1147
    %v1756 = vunpack.c.l.b16 %v1148
    %v1757 = vunpack.c.h.b16 %v1148
    %v1758 = vunpack.c.l.b16 %v1149
    %v1759 = vunpack.c.h.b16 %v1149
    %v1760 = vunpack.c.l.b16 %v1150
    %v1761 = vunpack.c.h.b16 %v1150
    %v1762 = vunpack.c.l.b16 %v1151
    %v1763 = vunpack.c.h.b16 %v1151
    %v1764 = vunpack.c.l.b16 %v1152
    %v1765 = vunpack.c.h.b16 %v1152
    %v1766 = vunpack.c.l.b16 %v1153
    %v1767 = vunpack.c.h.b16 %v1153
    %v1768 = vunpack.c.l.b16 %v1154
    %v1769 = vunpack.c.h.b16 %v1154
    %v1770 = vunpack.c.l.b16 %v1155
    %v1771 = vunpack.c.h.b16 %v1155
    %v1772 = vunpack.c.l.b16 %v1156
    %v1773 = vunpack.c.h.b16 %v1156
    %v1774 = vunpack.c.l.b16 %v1157
    %v1775 = vunpack.c.h.b16 %v1157
    %v1776 = vunpack.c.l.b16 %v1158
    %v1777 = vunpack.c.h.b16 %v1158
    %v1778 = vunpack.c.l.b16 %v1159
    %v1779 = vunpack.c.h.b16 %v1159
    %v1780 = vunpack.c.l.b16 %v1160
    %v1781 = vunpack.c.h.b16 %v1160
    %v1782 = vunpack.c.l.b16 %v1161
    %v1783 = vunpack.c.h.b16 %v1161
    %v1784 = vunpack.c.l.b16 %v1162
    %v1785 = vunpack.c.h.b16 %v1162
    %v1786 = vunpack.c.l.b16 %v1163
    %v1787 = vunpack.c.h.b16 %v1163
    %v1788 = vunpack.c.l.b16 %v1164
    %v1789 = vunpack.c.h.b16 %v1164
    %v1790 = vunpack.c.l.b16 %v1165
    %v1791 = vunpack.c.h.b16 %v1165
    %v1792 = vunpack.c.l.b16 %v1166
    %v1793 = vunpack.c.h.b16 %v1166
    %v1794 = vunpack.c.l.b16 %v1167
    %v1795 = vunpack.c.h.b16 %v1167
    %v1796 = vunpack.c.l.b16 %v1168
    %v1797 = vunpack.c.h.b16 %v1168
    %v1798 = vunpack.c.l.b16 %v1169
    %v1799 = vunpack.c.h.b16 %v1169
    %v1800 = vunpack.c.l.b16 %v1170
    %v1801 = vunpack.c.h.b16 %v1170
    %v1802 = vunpack.c.l.b16 %v1171
    %v1803 = vunpack.c.h.b16 %v1171
    %v1804 = vunpack.c.l.b16 %v1172
    %v1805 = vunpack.c.h.b16 %v1172
    %v1806 = vunpack.c.l.b16 %v1173
    %v1807 = vunpack.c.h.b16 %v1173
    %v1808 = vunpack.c.l.b16 %v1174
    %v1809 = vunpack.c.h.b16 %v1174
    %v1810 = vunpack.c.l.b16 %v1175
    %v1811 = vunpack.c.h.b16 %v1175
    %v1812 = vunpack.c.l.b16 %v1176
    %v1813 = vunpack.c.h.b16 %v1176
    %v1814 = vunpack.c.l.b16 %v1177
    %v1815 = vunpack.c.h.b16 %v1177
    %v1816 = vunpack.c.l.b16 %v1178
    %v1817 = vunpack.c.h.b16 %v1178
    %v1818 = vunpack.c.l.b16 %v1179
    %v1819 = vunpack.c.h.b16 %v1179
    %v1820 = vunpack.c.l.b16 %v1180
    %v1821 = vunpack.c.h.b16 %v1180
    %v1822 = vunpack.c.l.b16 %v1181
    %v1823 = vunpack.c.h.b16 %v1181
    %v1824 = vunpack.c.l.b16 %v1182
    %v1825 = vunpack.c.h.b16 %v1182
    %v1826 = vunpack.c.l.b16 %v1183
    %v1827 = vunpack.c.h.b16 %v1183
    %v1828 = vunpack.c.l.b16 %v1184
    %v1829 = vunpack.c.h.b16 %v1184
    %v1830 = vunpack.c.l.b16 %v1185
    %v1831 = vunpack.c.h.b16 %v1185
    %v1832 = vunpack.c.l.b16 %v1186
    %v1833 = vunpack.c.h.b16 %v1186
    %v1834 = vunpack.c.l.b16 %v1187
    %v1835 = vunpack.c.h.b16 %v1187
    %v1836 = vunpack.c.l.b16 %v1188
    %v1837 = vunpack.c.h.b16 %v1188
    %v1838 = vunpack.c.l.b16 %v1189
    %v1839 = vunpack.c.h.b16 %v1189
    %v1840 = vunpack.c.l.b16 %v1190
    %v1841 = vunpack.c.h.b16 %v1190
    %v1842 = vunpack.c.l.b16 %v1191
    %v1843 = vunpack.c.h.b16 %v1191
    %v1844 = vunpack.c.l.b16 %v1192
    %v1845 = vunpack.c.h.b16 %v1192
    %v1846 = vunpack.c.l.b16 %v1193
    %v1847 = vunpack.c.h.b16 %v1193
    %v1848 = vunpack.c.l.b16 %v1194
    %v1849 = vunpack.c.h.b16 %v1194
    %v1850 = vunpack.c.l.b16 %v1195
    %v1851 = vunpack.c.h.b16 %v1195
    %v1852 = vunpack.c.l.b16 %v1196
    %v1853 = vunpack.c.h.b16 %v1196
    %v1854 = vunpack.c.l.b16 %v1197
    %v1855 = vunpack.c.h.b16 %v1197
    %v1856 = vunpack.c.l.b16 %v1198
    %v1857 = vunpack.c.h.b16 %v1198
    %v1858 = vunpack.c.l.b16 %v1199
    %v1859 = vunpack.c.h.b16 %v1199
    %v1860 = vunpack.c.l.b16 %v1200
    %v1861 = vunpack.c.h.b16 %v1200
    %v1862 = vunpack.c.l.b16 %v1201
    %v1863 = vunpack.c.h.b16 %v1201
    %v1864 = vunpack.c.l.b16 %v1202
    %v1865 = vunpack.c.h.b16 %v1202
    %v1866 = vunpack.c.l.b16 %v1203
    %v1867 = vunpack.c.h.b16 %v1203
    %v1868 = vunpack.c.l.b16 %v1204
    %v1869 = vunpack.c.h.b16 %v1204
    %v1870 = vunpack.c.l.b16 %v1205
    %v1871 = vunpack.c.h.b16 %v1205
    %v1872 = vunpack.c.l.b16 %v1206
    %v1873 = vunpack.c.h.b16 %v1206
    %v1874 = vunpack.c.l.b16 %v1207
    %v1875 = vunpack.c.h.b16 %v1207
    %v1876 = vunpack.c.l.b16 %v1208
    %v1877 = vunpack.c.h.b16 %v1208
    %v1878 = vunpack.c.l.b16 %v1209
    %v1879 = vunpack.c.h.b16 %v1209
    %v1880 = vunpack.c.l.b16 %v1210
    %v1881 = vunpack.c.h.b16 %v1210
    %v1882 = vunpack.c.l.b16 %v1211
    %v1883 = vunpack.c.h.b16 %v1211
    %v1884 = vunpack.c.l.b16 %v1212
    %v1885 = vunpack.c.h.b16 %v1212
    %v1886 = vunpack.c.l.b16 %v1213
    %v1887 = vunpack.c.h.b16 %v1213
    %v1888 = vunpack.c.l.b16 %v1214
    %v1889 = vunpack.c.h.b16 %v1214
    %v1890 = vunpack.c.l.b16 %v1215
    %v1891 = vunpack.c.h.b16 %v1215
    %v1892 = vunpack.c.l.b16 %v1216
    %v1893 = vunpack.c.h.b16 %v1216
    %v1894 = vunpack.c.l.b16 %v1217
    %v1895 = vunpack.c.h.b16 %v1217
    %v1896 = vunpack.c.l.b16 %v1218
    %v1897 = vunpack.c.h.b16 %v1218
    %v1898 = vunpack.c.l.b16 %v1219
    %v1899 = vunpack.c.h.b16 %v1219
    %v1900 = vunpack.c.l.b16 %v1220
    %v1901 = vunpack.c.h.b16 %v1220
    %v1902 = vunpack.c.l.b16 %v1221
    %v1903 = vunpack.c.h.b16 %v1221
    %v1904 = vunpack.c.l.b16 %v1222
    %v1905 = vunpack.c.h.b16 %v1222
    %v1906 = vunpack.c.l.b16 %v1223
    %v1907 = vunpack.c.h.b16 %v1223
    %v1908 = vunpack.c.l.b16 %v1224
    %v1909 = vunpack.c.h.b16 %v1224
    %v1910 = vunpack.c.l.b16 %v1225
    %v1911 = vunpack.c.h.b16 %v1225
    %v1912 = vunpack.c.l.b16 %v1226
    %v1913 = vunpack.c.h.b16 %v1226
    %v1914 = vunpack.c.l.b16 %v1227
    %v1915 = vunpack.c.h.b16 %v1227
    %v1916 = vunpack.c.l.b16 %v1228
    %v1917 = vunpack.c.h.b16 %v1228
    %v1918 = vunpack.c.l.b16 %v1229
    %v1919 = vunpack.c.h.b16 %v1229
    %v1920 = vunpack.c.l.b16 %v1230
    %v1921 = vunpack.c.h.b16 %v1230
    %v1922 = vunpack.c.l.b16 %v1231
    %v1923 = vunpack.c.h.b16 %v1231
    %v1924 = vunpack.c.l.b16 %v1232
    %v1925 = vunpack.c.h.b16 %v1232
    %v1926 = vunpack.c.l.b16 %v1233
    %v1927 = vunpack.c.h.b16 %v1233
    %v1928 = vunpack.c.l.b16 %v1234
    %v1929 = vunpack.c.h.b16 %v1234
    %v1930 = vunpack.c.l.b16 %v1235
    %v1931 = vunpack.c.h.b16 %v1235
    %v1932 = vunpack.c.l.b16 %v1236
    %v1933 = vunpack.c.h.b16 %v1236
    %v1934 = vunpack.c.l.b16 %v1237
    %v1935 = vunpack.c.h.b16 %v1237
    %v1936 = vunpack.c.l.b16 %v1238
    %v1937 = vunpack.c.h.b16 %v1238
    %v1938 = vunpack.c.l.b16 %v1239
    %v1939 = vunpack.c.h.b16 %v1239
    %v1940 = vunpack.c.l.b16 %v1240
    %v1941 = vunpack.c.h.b16 %v1240
    %v1942 = vunpack.c.l.b16 %v1241
    %v1943 = vunpack.c.h.b16 %v1241
    %v1944 = vunpack.c.l.b16 %v1242
    %v1945 = vunpack.c.h.b16 %v1242
    %v1946 = vunpack.c.l.b16 %v1243
    %v1947 = vunpack.c.h.b16 %v1243
    %v1948 = vunpack.c.l.b16 %v1244
    %v1949 = vunpack.c.h.b16 %v1244
    %v1950 = vunpack.c.l.b16 %v1245
    %v1951 = vunpack.c.h.b16 %v1245
    %v1952 = vunpack.c.l.b16 %v1246
    %v1953 = vunpack.c.h.b16 %v1246
    %v1954 = vunpack.c.l.b16 %v1247
    %v1955 = vunpack.c.h.b16 %v1247
    %v1956 = vunpack.c.l.b16 %v1248
    %v1957 = vunpack.c.h.b16 %v1248
    %v1958 = vunpack.c.l.b16 %v1249
    %v1959 = vunpack.c.h.b16 %v1249
    %v1960 = vunpack.c.l.b16 %v1250
    %v1961 = vunpack.c.h.b16 %v1250
    %v1962 = vunpack.c.l.b16 %v1251
    %v1963 = vunpack.c.h.b16 %v1251
    %v1964 = vunpack.c.l.b16 %v1252
    %v1965 = vunpack.c.h.b16 %v1252
    %v1966 = vunpack.c.l.b16 %v1253
    %v1967 = vunpack.c.h.b16 %v1253
    %v1968 = vunpack.c.l.b16 %v1254
    %v1969 = vunpack.c.h.b16 %v1254
    %v1970 = vunpack.c.l.b16 %v1255
    %v1971 = vunpack.c.h.b16 %v1255
    %v1972 = vunpack.c.l.b16 %v1256
    %v1973 = vunpack.c.h.b16 %v1256
    %v1974 = vunpack.c.l.b16 %v1257
    %v1975 = vunpack.c.h.b16 %v1257
    %v1976 = vunpack.c.l.b16 %v1258
    %v1977 = vunpack.c.h.b16 %v1258
    %v1978 = vunpack.c.l.b16 %v1259
    %v1979 = vunpack.c.h.b16 %v1259
    %v1980 = vunpack.c.l.b16 %v1260
    %v1981 = vunpack.c.h.b16 %v1260
    %v1982 = vunpack.c.l.b16 %v1261
    %v1983 = vunpack.c.h.b16 %v1261
    %v1984 = vunpack.c.l.b16 %v1262
    %v1985 = vunpack.c.h.b16 %v1262
    %v1986 = vunpack.c.l.b16 %v1263
    %v1987 = vunpack.c.h.b16 %v1263
    %v1988 = vunpack.c.l.b16 %v1264
    %v1989 = vunpack.c.h.b16 %v1264
    %v1990 = vunpack.c.l.b16 %v1265
    %v1991 = vunpack.c.h.b16 %v1265
    %v1992 = vunpack.c.l.b16 %v1266
    %v1993 = vunpack.c.h.b16 %v1266
    %v1994 = vunpack.c.l.b16 %v1267
    %v1995 = vunpack.c.h.b16 %v1267
    %v1996 = vunpack.c.l.b16 %v1268
    %v1997 = vunpack.c.h.b16 %v1268
    %v1998 = vunpack.c.l.b16 %v1269
    %v1999 = vunpack.c.h.b16 %v1269
    %v2000 = vunpack.c.l.b16 %v1270
    %v2001 = vunpack.c.h.b16 %v1270
    %v2002 = vunpack.c.l.b16 %v1271
    %v2003 = vunpack.c.h.b16 %v1271
    %v2004 = vunpack.c.l.b16 %v1272
    %v2005 = vunpack.c.h.b16 %v1272
    %v2006 = vunpack.c.l.b16 %v1273
    %v2007 = vunpack.c.h.b16 %v1273
    %v2008 = vunpack.c.l.b16 %v1274
    %v2009 = vunpack.c.h.b16 %v1274
    %v2010 = vunpack.c.l.b16 %v1275
    %v2011 = vunpack.c.h.b16 %v1275
    %v2012 = vunpack.c.l.b16 %v1276
    %v2013 = vunpack.c.h.b16 %v1276
    %v2014 = vunpack.c.l.b16 %v1277
    %v2015 = vunpack.c.h.b16 %v1277
    %v2016 = vunpack.c.l.b16 %v1278
    %v2017 = vunpack.c.h.b16 %v1278
    %v2018 = vunpack.c.l.b16 %v1279
    %v2019 = vunpack.c.h.b16 %v1279
    %v2020 = vunpack.c.l.b16 %v1280
    %v2021 = vunpack.c.h.b16 %v1280
    %v2022 = vunpack.c.l.b16 %v1281
    %v2023 = vunpack.c.h.b16 %v1281
    %v2024 = vunpack.c.l.b16 %v1282
    %v2025 = vunpack.c.h.b16 %v1282
    %v2026 = vunpack.c.l.b16 %v1283
    %v2027 = vunpack.c.h.b16 %v1283
    %v2028 = vunpack.c.l.b16 %v1284
    %v2029 = vunpack.c.h.b16 %v1284
    %v2030 = vunpack.c.l.b16 %v1285
    %v2031 = vunpack.c.h.b16 %v1285
    %v2032 = vunpack.c.l.b16 %v1286
    %v2033 = vunpack.c.h.b16 %v1286
    %v2034 = vunpack.c.l.b16 %v1287
    %v2035 = vunpack.c.h.b16 %v1287
    %v2036 = vunpack.c.l.b16 %v1288
    %v2037 = vunpack.c.h.b16 %v1288
    %v2038 = vunpack.c.l.b16 %v1289
    %v2039 = vunpack.c.h.b16 %v1289
    %v2040 = vunpack.c.l.b16 %v1290
    %v2041 = vunpack.c.h.b16 %v1290
    %v2042 = vunpack.c.l.b16 %v1291
    %v2043 = vunpack.c.h.b16 %v1291
    %v2044 = vunpack.c.l.b16 %v1292
    %v2045 = vunpack.c.h.b16 %v1292
    %v2046 = vunpack.c.l.b16 %v1293
    %v2047 = vunpack.c.h.b16 %v1293
    %v2048 = vunpack.c.l.b16 %v1294
    %v2049 = vunpack.c.h.b16 %v1294
    %v2050 = vunpack.c.l.b16 %v1295
    %v2051 = vunpack.c.h.b16 %v1295
    %v2052 = vunpack.c.l.b16 %v1296
    %v2053 = vunpack.c.h.b16 %v1296
    %v2054 = vunpack.c.l.b16 %v1297
    %v2055 = vunpack.c.h.b16 %v1297
    %v2056 = vunpack.c.l.b16 %v1298
    %v2057 = vunpack.c.h.b16 %v1298
    %v2058 = vunpack.c.l.b16 %v1299
    %v2059 = vunpack.c.h.b16 %v1299
    %v2060 = vunpack.c.l.b16 %v1300
    %v2061 = vunpack.c.h.b16 %v1300
    %v2062 = vunpack.c.l.b16 %v1301
    %v2063 = vunpack.c.h.b16 %v1301
    %v2064 = vunpack.c.l.b16 %v1302
    %v2065 = vunpack.c.h.b16 %v1302
    %v2066 = vunpack.c.l.b16 %v1303
    %v2067 = vunpack.c.h.b16 %v1303
    %v2068 = vunpack.c.l.b16 %v1304
    %v2069 = vunpack.c.h.b16 %v1304
    %v2070 = vunpack.c.l.b16 %v1305
    %v2071 = vunpack.c.h.b16 %v1305
    %v2072 = vunpack.c.l.b16 %v1306
    %v2073 = vunpack.c.h.b16 %v1306
    %v2074 = vunpack.c.l.b16 %v1307
    %v2075 = vunpack.c.h.b16 %v1307
    %v2076 = vunpack.c.l.b16 %v1308
    %v2077 = vunpack.c.h.b16 %v1308
    %v2078 = vunpack.c.l.b16 %v1309
    %v2079 = vunpack.c.h.b16 %v1309
    %v2080 = vunpack.c.l.b16 %v1310
    %v2081 = vunpack.c.h.b16 %v1310
    %v2082 = vunpack.c.l.b16 %v1311
    %v2083 = vunpack.c.h.b16 %v1311
    %v2084 = vunpack.c.l.b16 %v1312
    %v2085 = vunpack.c.h.b16 %v1312
    %v2086 = vunpack.c.l.b16 %v1313
    %v2087 = vunpack.c.h.b16 %v1313
    %v2088 = vunpack.c.l.b16 %v1314
    %v2089 = vunpack.c.h.b16 %v1314
    %v2090 = vunpack.c.l.b16 %v1315
    %v2091 = vunpack.c.h.b16 %v1315
    %v2092 = vunpack.c.l.b16 %v1316
    %v2093 = vunpack.c.h.b16 %v1316
    %v2094 = vunpack.c.l.b16 %v1317
    %v2095 = vunpack.c.h.b16 %v1317
    %v2096 = vunpack.c.l.b16 %v1318
    %v2097 = vunpack.c.h.b16 %v1318
    %v2098 = vunpack.c.l.b16 %v1319
    %v2099 = vunpack.c.h.b16 %v1319
    %v2100 = vunpack.c.l.b16 %v1320
    %v2101 = vunpack.c.h.b16 %v1320
    %v2102 = vunpack.c.l.b16 %v1321
    %v2103 = vunpack.c.h.b16 %v1321
    %v2104 = vunpack.c.l.b16 %v1322
    %v2105 = vunpack.c.h.b16 %v1322
    %v2106 = vunpack.c.l.b16 %v1323
    %v2107 = vunpack.c.h.b16 %v1323
    %v2108 = vunpack.c.l.b16 %v1324
    %v2109 = vunpack.c.h.b16 %v1324
    %v2110 = vunpack.c.l.b16 %v1325
    %v2111 = vunpack.c.h.b16 %v1325
    %v2112 = vunpack.c.l.b16 %v1326
    %v2113 = vunpack.c.h.b16 %v1326
    %v2114 = vunpack.c.l.b16 %v1327
    %v2115 = vunpack.c.h.b16 %v1327
    %v2116 = vunpack.c.l.b16 %v1328
    %v2117 = vunpack.c.h.b16 %v1328
    %v2118 = vunpack.c.l.b16 %v1329
    %v2119 = vunpack.c.h.b16 %v1329
    %v2120 = vpack.c.b16 %v1612, %v1608
    %v2121 = vpack.c.b16 %v1613, %v1609
    %v2122 = vpack.c.b16 %v1614, %v1610
    %v2123 = vpack.c.b16 %v1615, %v1611
    %v2124 = vpack.c.b16 %v1620, %v1616
    %v2125 = vpack.c.b16 %v1621, %v1617
    %v2126 = vpack.c.b16 %v1622, %v1618
    %v2127 = vpack.c.b16 %v1623, %v1619
    %v2128 = vpack.c.b16 %v1628, %v1624
    %v2129 = vpack.c.b16 %v1629, %v1625
    %v2130 = vpack.c.b16 %v1630, %v1626
    %v2131 = vpack.c.b16 %v1631, %v1627
    %v2132 = vpack.c.b16 %v1636, %v1632
    %v2133 = vpack.c.b16 %v1637, %v1633
    %v2134 = vpack.c.b16 %v1638, %v1634
    %v2135 = vpack.c.b16 %v1639, %v1635
    %v2136 = vpack.c.b16 %v1644, %v1640
    %v2137 = vpack.c.b16 %v1645, %v1641
    %v2138 = vpack.c.b16 %v1646, %v1642
    %v2139 = vpack.c.b16 %v1647, %v1643
    %v2140 = vpack.c.b16 %v1652, %v1648
    %v2141 = vpack.c.b16 %v1653, %v1649
    %v2142 = vpack.c.b16 %v1654, %v1650
    %v2143 = vpack.c.b16 %v1655, %v1651
    %v2144 = vpack.c.b16 %v1660, %v1656
    %v2145 = vpack.c.b16 %v1661, %v1657
    %v2146 = vpack.c.b16 %v1662, %v1658
    %v2147 = vpack.c.b16 %v1663, %v1659
    %v2148 = vpack.c.b16 %v1668, %v1664
    %v2149 = vpack.c.b16 %v1669, %v1665
    %v2150 = vpack.c.b16 %v1670, %v1666
    %v2151 = vpack.c.b16 %v1671, %v1667
    %v2152 = vpack.c.b16 %v1676, %v1672
    %v2153 = vpack.c.b16 %v1677, %v1673
    %v2154 = vpack.c.b16 %v1678, %v1674
    %v2155 = vpack.c.b16 %v1679, %v1675
    %v2156 = vpack.c.b16 %v1684, %v1680
    %v2157 = vpack.c.b16 %v1685, %v1681
    %v2158 = vpack.c.b16 %v1686, %v1682
    %v2159 = vpack.c.b16 %v1687, %v1683
    %v2160 = vpack.c.b16 %v1692, %v1688
    %v2161 = vpack.c.b16 %v1693, %v1689
    %v2162 = vpack.c.b16 %v1694, %v1690
    %v2163 = vpack.c.b16 %v1695, %v1691
    %v2164 = vpack.c.b16 %v1700, %v1696
    %v2165 = vpack.c.b16 %v1701, %v1697
    %v2166 = vpack.c.b16 %v1702, %v1698
    %v2167 = vpack.c.b16 %v1703, %v1699
    %v2168 = vpack.c.b16 %v1708, %v1704
    %v2169 = vpack.c.b16 %v1709, %v1705
    %v2170 = vpack.c.b16 %v1710, %v1706
    %v2171 = vpack.c.b16 %v1711, %v1707
    %v2172 = vpack.c.b16 %v1716, %v1712
    %v2173 = vpack.c.b16 %v1717, %v1713
    %v2174 = vpack.c.b16 %v1718, %v1714
    %v2175 = vpack.c.b16 %v1719, %v1715
    %v2176 = vpack.c.b16 %v1724, %v1720
    %v2177 = vpack.c.b16 %v1725, %v1721
    %v2178 = vpack.c.b16 %v1726, %v1722
    %v2179 = vpack.c.b16 %v1727, %v1723
    %v2180 = vpack.c.b16 %v1732, %v1728
    %v2181 = vpack.c.b16 %v1733, %v1729
    %v2182 = vpack.c.b16 %v1734, %v1730
    %v2183 = vpack.c.b16 %v1735, %v1731
    %v2184 = vpack.c.b16 %v1740, %v1736
    %v2185 = vpack.c.b16 %v1741, %v1737
    %v2186 = vpack.c.b16 %v1742, %v1738
    %v2187 = vpack.c.b16 %v1743, %v1739
    %v2188 = vpack.c.b16 %v1748, %v1744
    %v2189 = vpack.c.b16 %v1749, %v1745
    %v2190 = vpack.c.b16 %v1750, %v1746
    %v2191 = vpack.c.b16 %v1751, %v1747
    %v2192 = vpack.c.b16 %v1756, %v1752
    %v2193 = vpack.c.b16 %v1757, %v1753
    %v2194 = vpack.c.b16 %v1758, %v1754
    %v2195 = vpack.c.b16 %v1759, %v1755
    %v2196 = vpack.c.b16 %v1764, %v1760
    %v2197 = vpack.c.b16 %v1765, %v1761
    %v2198 = vpack.c.b16 %v1766, %v1762
    %v2199 = vpack.c.b16 %v1767, %v1763
    %v2200 = vpack.c.b16 %v1772, %v1768
    %v2201 = vpack.c.b16 %v1773, %v1769
    %v2202 = vpack.c.b16 %v1774, %v1770
    %v2203 = vpack.c.b16 %v1775, %v1771
    %v2204 = vpack.c.b16 %v1780, %v1776
    %v2205 = vpack.c.b16 %v1781, %v1777
    %v2206 = vpack.c.b16 %v1782, %v1778
    %v2207 = vpack.c.b16 %v1783, %v1779
    %v2208 = vpack.c.b16 %v1788, %v1784
    %v2209 = vpack.c.b16 %v1789, %v1785
    %v2210 = vpack.c.b16 %v1790, %v1786
    %v2211 = vpack.c.b16 %v1791, %v1787
    %v2212 = vpack.c.b16 %v1796, %v1792
    %v2213 = vpack.c.b16 %v1797, %v1793
    %v2214 = vpack.c.b16 %v1798, %v1794
    %v2215 = vpack.c.b16 %v1799, %v1795
    %v2216 = vpack.c.b16 %v1804, %v1800
    %v2217 = vpack.c.b16 %v1805, %v1801
    %v2218 = vpack.c.b16 %v1806, %v1802
    %v2219 = vpack.c.b16 %v1807, %v1803
    %v2220 = vpack.c.b16 %v1812, %v1808
    %v2221 = vpack.c.b16 %v1813, %v1809
    %v2222 = vpack.c.b16 %v1814, %v1810
    %v2223 = vpack.c.b16 %v1815, %v1811
    %v2224 = vpack.c.b16 %v1820, %v1816
    %v2225 = vpack.c.b16 %v1821, %v1817
    %v2226 = vpack.c.b16 %v1822, %v1818
    %v2227 = vpack.c.b16 %v1823, %v1819
    %v2228 = vpack.c.b16 %v1828, %v1824
    %v2229 = vpack.c.b16 %v1829, %v1825
    %v2230 = vpack.c.b16 %v1830, %v1826
    %v2231 = vpack.c.b16 %v1831, %v1827
    %v2232 = vpack.c.b16 %v1836, %v1832
    %v2233 = vpack.c.b16 %v1837, %v1833
    %v2234 = vpack.c.b16 %v1838, %v1834
    %v2235 = vpack.c.b16 %v1839, %v1835
    %v2236 = vpack.c.b16 %v1844, %v1840
    %v2237 = vpack.c.b16 %v1845, %v1841
    %v2238 = vpack.c.b16 %v1846, %v1842
    %v2239 = vpack.c.b16 %v1847, %v1843
    %v2240 = vpack.c.b16 %v1852, %v1848
    %v2241 = vpack.c.b16 %v1853, %v1849
    %v2242 = vpack.c.b16 %v1854, %v1850
    %v2243 = vpack.c.b16 %v1855, %v1851
    %v2244 = vpack.c.b16 %v1860, %v1856
    %v2245 = vpack.c.b16 %v1861, %v1857
    %v2246 = vpack.c.b16 %v1862, %v1858
    %v2247 = vpack.c.b16 %v1863, %v1859
    %v2248 = vpack.c.b16 %v1868, %v1864
    %v2249 = vpack.c.b16 %v1869, %v1865
    %v2250 = vpack.c.b16 %v1870, %v1866
    %v2251 = vpack.c.b16 %v1871, %v1867
    %v2252 = vpack.c.b16 %v1876, %v1872
    %v2253 = vpack.c.b16 %v1877, %v1873
    %v2254 = vpack.c.b16 %v1878, %v1874
    %v2255 = vpack.c.b16 %v1879, %v1875
    %v2256 = vpack.c.b16 %v1884, %v1880
    %v2257 = vpack.c.b16 %v1885, %v1881
    %v2258 = vpack.c.b16 %v1886, %v1882
    %v2259 = vpack.c.b16 %v1887, %v1883
    %v2260 = vpack.c.b16 %v1892, %v1888
    %v2261 = vpack.c.b16 %v1893, %v1889
    %v2262 = vpack.c.b16 %v1894, %v1890
    %v2263 = vpack.c.b16 %v1895, %v1891
    %v2264 = vpack.c.b16 %v1900, %v1896
    %v2265 = vpack.c.b16 %v1901, %v1897
    %v2266 = vpack.c.b16 %v1902, %v1898
    %v2267 = vpack.c.b16 %v1903, %v1899
    %v2268 = vpack.c.b16 %v1908, %v1904
    %v2269 = vpack.c.b16 %v1909, %v1905
    %v2270 = vpack.c.b16 %v1910, %v1906
    %v2271 = vpack.c.b16 %v1911, %v1907
    %v2272 = vpack.c.b16 %v1916, %v1912
    %v2273 = vpack.c.b16 %v1917, %v1913
    %v2274 = vpack.c.b16 %v1918, %v1914
    %v2275 = vpack.c.b16 %v1919, %v1915
    %v2276 = vpack.c.b16 %v1924, %v1920
    %v2277 = vpack.c.b16 %v1925, %v1921
    %v2278 = vpack.c.b16 %v1926, %v1922
    %v2279 = vpack.c.b16 %v1927, %v1923
    %v2280 = vpack.c.b16 %v1932, %v1928
    %v2281 = vpack.c.b16 %v1933, %v1929
    %v2282 = vpack.c.b16 %v1934, %v1930
    %v2283 = vpack.c.b16 %v1935, %v1931
    %v2284 = vpack.c.b16 %v1940, %v1936
    %v2285 = vpack.c.b16 %v1941, %v1937
    %v2286 = vpack.c.b16 %v1942, %v1938
    %v2287 = vpack.c.b16 %v1943, %v1939
    %v2288 = vpack.c.b16 %v1948, %v1944
    %v2289 = vpack.c.b16 %v1949, %v1945
    %v2290 = vpack.c.b16 %v1950, %v1946
    %v2291 = vpack.c.b16 %v1951, %v1947
    %v2292 = vpack.c.b16 %v1956, %v1952
    %v2293 = vpack.c.b16 %v1957, %v1953
    %v2294 = vpack.c.b16 %v1958, %v1954
    %v2295 = vpack.c.b16 %v1959, %v1955
    %v2296 = vpack.c.b16 %v1964, %v1960
    %v2297 = vpack.c.b16 %v1965, %v1961
    %v2298 = vpack.c.b16 %v1966, %v1962
    %v2299 = vpack.c.b16 %v1967, %v1963
    %v2300 = vpack.c.b16 %v1972, %v1968
    %v2301 = vpack.c.b16 %v1973, %v1969
    %v2302 = vpack.c.b16 %v1974, %v1970
    %v2303 = vpack.c.b16 %v1975, %v1971
    %v2304 = vpack.c.b16 %v1980, %v1976
    %v2305 = vpack.c.b16 %v1981, %v1977
    %v2306 = vpack.c.b16 %v1982, %v1978
    %v2307 = vpack.c.b16 %v1983, %v1979
    %v2308 = vpack.c.b16 %v1988, %v1984
    %v2309 = vpack.c.b16 %v1989, %v1985
    %v2310 = vpack.c.b16 %v1990, %v1986
    %v2311 = vpack.c.b16 %v1991, %v1987
    %v2312 = vpack.c.b16 %v1996, %v1992
    %v2313 = vpack.c.b16 %v1997, %v1993
    %v2314 = vpack.c.b16 %v1998, %v1994
    %v2315 = vpack.c.b16 %v1999, %v1995
    %v2316 = vpack.c.b16 %v2004, %v2000
    %v2317 = vpack.c.b16 %v2005, %v2001
    %v2318 = vpack.c.b16 %v2006, %v2002
    %v2319 = vpack.c.b16 %v2007, %v2003
    %v2320 = vpack.c.b16 %v2012, %v2008
    %v2321 = vpack.c.b16 %v2013, %v2009
    %v2322 = vpack.c.b16 %v2014, %v2010
    %v2323 = vpack.c.b16 %v2015, %v2011
    %v2324 = vpack.c.b16 %v2020, %v2016
    %v2325 = vpack.c.b16 %v2021, %v2017
    %v2326 = vpack.c.b16 %v2022, %v2018
    %v2327 = vpack.c.b16 %v2023, %v2019
    %v2328 = vpack.c.b16 %v2028, %v2024
    %v2329 = vpack.c.b16 %v2029, %v2025
    %v2330 = vpack.c.b16 %v2030, %v2026
    %v2331 = vpack.c.b16 %v2031, %v2027
    %v2332 = vpack.c.b16 %v2036, %v2032
    %v2333 = vpack.c.b16 %v2037, %v2033
    %v2334 = vpack.c.b16 %v2038, %v2034
    %v2335 = vpack.c.b16 %v2039, %v2035
    %v2336 = vpack.c.b16 %v2044, %v2040
    %v2337 = vpack.c.b16 %v2045, %v2041
    %v2338 = vpack.c.b16 %v2046, %v2042
    %v2339 = vpack.c.b16 %v2047, %v2043
    %v2340 = vpack.c.b16 %v2052, %v2048
    %v2341 = vpack.c.b16 %v2053, %v2049
    %v2342 = vpack.c.b16 %v2054, %v2050
    %v2343 = vpack.c.b16 %v2055, %v2051
    %v2344 = vpack.c.b16 %v2060, %v2056
    %v2345 = vpack.c.b16 %v2061, %v2057
    %v2346 = vpack.c.b16 %v2062, %v2058
    %v2347 = vpack.c.b16 %v2063, %v2059
    %v2348 = vpack.c.b16 %v2068, %v2064
    %v2349 = vpack.c.b16 %v2069, %v2065
    %v2350 = vpack.c.b16 %v2070, %v2066
    %v2351 = vpack.c.b16 %v2071, %v2067
    %v2352 = vpack.c.b16 %v2076, %v2072
    %v2353 = vpack.c.b16 %v2077, %v2073
    %v2354 = vpack.c.b16 %v2078, %v2074
    %v2355 = vpack.c.b16 %v2079, %v2075
    %v2356 = vpack.c.b16 %v2084, %v2080
    %v2357 = vpack.c.b16 %v2085, %v2081
    %v2358 = vpack.c.b16 %v2086, %v2082
    %v2359 = vpack.c.b16 %v2087, %v2083
    %v2360 = vpack.c.b16 %v2092, %v2088
    %v2361 = vpack.c.b16 %v2093, %v2089
    %v2362 = vpack.c.b16 %v2094, %v2090
    %v2363 = vpack.c.b16 %v2095, %v2091
    %v2364 = vpack.c.b16 %v2100, %v2096
    %v2365 = vpack.c.b16 %v2101, %v2097
    %v2366 = vpack.c.b16 %v2102, %v2098
    %v2367 = vpack.c.b16 %v2103, %v2099
    %v2368 = vpack.c.b16 %v2108, %v2104
    %v2369 = vpack.c.b16 %v2109, %v2105
    %v2370 = vpack.c.b16 %v2110, %v2106
    %v2371 = vpack.c.b16 %v2111, %v2107
    %v2372 = vpack.c.b16 %v2116, %v2112
    %v2373 = vpack.c.b16 %v2117, %v2113
    %v2374 = vpack.c.b16 %v2118, %v2114
    %v2375 = vpack.c.b16 %v2119, %v2115
    %2632 = vmatprep.subr.bf16.mxu0 %v2121
    %2633 = vmatpush1.bf16.msra.mxu0 %v2120
    %2634 = vmatprep.subr.bf16.mxu0 %v2125
    %2635 = vmatpush1.bf16.msra.mxu0 %v2124
    %2636 = vmatprep.subr.bf16.mxu0 %v2129
    %2637 = vmatpush1.bf16.msra.mxu0 %v2128
    %2638 = vmatprep.subr.bf16.mxu0 %v2133
    %2639 = vmatpush1.bf16.msra.mxu0 %v2132
    %2640 = vmatprep.subr.bf16.mxu0 %v2137
    %2641 = vmatpush1.bf16.msra.mxu0 %v2136
    %2642 = vmatprep.subr.bf16.mxu0 %v2141
    %2643 = vmatpush1.bf16.msra.mxu0 %v2140
    %2644 = vmatprep.subr.bf16.mxu0 %v2145
    %2645 = vmatpush1.bf16.msra.mxu0 %v2144
    %2646 = vmatprep.subr.bf16.mxu0 %v2149
    %2647 = vmatpush1.bf16.msra.mxu0 %v2148
    %2648 = vmatprep.subr.bf16.mxu0 %v2153
    %2649 = vmatpush1.bf16.msra.mxu0 %v2152
    %2650 = vmatprep.subr.bf16.mxu0 %v2157
    %2651 = vmatpush1.bf16.msra.mxu0 %v2156
    %2652 = vmatprep.subr.bf16.mxu0 %v2161
    %2653 = vmatpush1.bf16.msra.mxu0 %v2160
    %2654 = vmatprep.subr.bf16.mxu0 %v2165
    %2655 = vmatpush1.bf16.msra.mxu0 %v2164
    %2656 = vmatprep.subr.bf16.mxu0 %v2169
    %2657 = vmatpush1.bf16.msra.mxu0 %v2168
    %2658 = vmatprep.subr.bf16.mxu0 %v2173
    %2659 = vmatpush1.bf16.msra.mxu0 %v2172
    %2660 = vmatprep.subr.bf16.mxu0 %v2177
    %2661 = vmatpush1.bf16.msra.mxu0 %v2176
    %2662 = vmatprep.subr.bf16.mxu0 %v2181
    %2663 = vmatpush1.bf16.msra.mxu0 %v2180
    %2664 = vmatprep.mubr.bf16.mxu0 %v1011
    %2665 = vmatmul.mubr.bf16.gmra.mrb[0].mxu0 %v1010
    %v2666 = vpop.f32.mrb[0].mxu0
    %v2667 = vadd.f32 %v1335, %v2666
    %v2668 = vpop.f32.mrb[0].mxu0
    %v2669 = vadd.f32 %v1339, %v2668
    %v2670 = vpop.f32.mrb[0].mxu0
    %v2671 = vadd.f32 %v1335, %v2670
    %v2672 = vpop.f32.mrb[0].mxu0
    %v2673 = vadd.f32 %v1339, %v2672
    %2674 = vmatprep.mubr.bf16.mxu0 %v1019
    %2675 = vmatmul.mubr.bf16.gmra.mrb[0].mxu0 %v1018
    %v2676 = vpop.f32.mrb[0].mxu0
    %v2677 = vadd.f32 %v1335, %v2676
    %v2678 = vpop.f32.mrb[0].mxu0
    %v2679 = vadd.f32 %v1339, %v2678
    %v2680 = vpop.f32.mrb[0].mxu0
    %v2681 = vadd.f32 %v1335, %v2680
    %v2682 = vpop.f32.mrb[0].mxu0
    %v2683 = vadd.f32 %v1339, %v2682
    %2684 = vmatprep.mubr.bf16.mxu0 %v1027
    %2685 = vmatmul.mubr.bf16.gmra.mrb[0].mxu0 %v1026
    %v2686 = vpop.f32.mrb[0].mxu0
    %v2687 = vadd.f32 %v1335, %v2686
    %v2688 = vpop.f32.mrb[0].mxu0
    %v2689 = vadd.f32 %v1339, %v2688
    %v2690 = vpop.f32.mrb[0].mxu0
    %v2691 = vadd.f32 %v1335, %v2690
    %v2692 = vpop.f32.mrb[0].mxu0
    %v2693 = vadd.f32 %v1339, %v2692
    %2694 = vmatprep.mubr.bf16.mxu0 %v1035
    %2695 = vmatmul.mubr.bf16.gmra.mrb[0].mxu0 %v1034
    %v2696 = vpop.f32.mrb[0].mxu0
    %v2697 = vadd.f32 %v1335, %v2696
    %v2698 = vpop.f32.mrb[0].mxu0
    %v2699 = vadd.f32 %v1339, %v2698
    %v2700 = vpop.f32.mrb[0].mxu0
    %v2701 = vadd.f32 %v1335, %v2700
    %v2702 = vpop.f32.mrb[0].mxu0
    %v2703 = vadd.f32 %v1339, %v2702
    %2704 = vmatprep.mubr.bf16.mxu0 %v1043
    %2705 = vmatmul.mubr.bf16.gmra.mrb[0].mxu0 %v1042
    %v2706 = vpop.f32.mrb[0].mxu0
    %v2707 = vadd.f32 %v1335, %v2706
    %v2708 = vpop.f32.mrb[0].mxu0
    %v2709 = vadd.f32 %v1339, %v2708
    %v2710 = vpop.f32.mrb[0].mxu0
    %v2711 = vadd.f32 %v1335, %v2710
    %v2712 = vpop.f32.mrb[0].mxu0
    %v2713 = vadd.f32 %v1339, %v2712
    %2714 = vmatprep.mubr.bf16.mxu0 %v1051
    %2715 = vmatmul.mubr.bf16.gmra.mrb[0].mxu0 %v1050
    %v2716 = vpop.f32.mrb[0].mxu0
    %v2717 = vadd.f32 %v1335, %v2716
    %v2718 = vpop.f32.mrb[0].mxu0
    %v2719 = vadd.f32 %v1339, %v2718
    %v2720 = vpop.f32.mrb[0].mxu0
    %v2721 = vadd.f32 %v1335, %v2720
    %v2722 = vpop.f32.mrb[0].mxu0
    %v2723 = vadd.f32 %v1339, %v2722
    %2724 = vmatprep.mubr.bf16.mxu0 %v1059
    %2725 = vmatmul.mubr.bf16.gmra.mrb[0].mxu0 %v1058
    %v2726 = vpop.f32.mrb[0].mxu0
    %v2727 = vadd.f32 %v1335, %v2726
    %v2728 = vpop.f32.mrb[0].mxu0
    %v2729 = vadd.f32 %v1339, %v2728
    %v2730 = vpop.f32.mrb[0].mxu0
    %v2731 = vadd.f32 %v1335, %v2730
    %v2732 = vpop.f32.mrb[0].mxu0
    %v2733 = vadd.f32 %v1339, %v2732
    %2734 = vmatprep.mubr.bf16.mxu0 %v1067
    %2735 = vmatmul.mubr.bf16.gmra.mrb[0].mxu0 %v1066
    %v2736 = vpop.f32.mrb[0].mxu0
    %v2737 = vadd.f32 %v1335, %v2736
    %v2738 = vpop.f32.mrb[0].mxu0
    %v2739 = vadd.f32 %v1339, %v2738
    %v2740 = vpop.f32.mrb[0].mxu0
    %v2741 = vadd.f32 %v1335, %v2740
    %v2742 = vpop.f32.mrb[0].mxu0
    %v2743 = vadd.f32 %v1339, %v2742
    %2744 = vdwg.mxu0
    %2745 = vmatprep.subr.bf16.mxu0 %v2185
    %2746 = vmatpush1.bf16.msra.mxu0 %v2184
    %2747 = vmatprep.subr.bf16.mxu0 %v2189
    %2748 = vmatpush1.bf16.msra.mxu0 %v2188
    %2749 = vmatprep.subr.bf16.mxu0 %v2193
    %2750 = vmatpush1.bf16.msra.mxu0 %v2192
    %2751 = vmatprep.subr.bf16.mxu0 %v2197
    %2752 = vmatpush1.bf16.msra.mxu0 %v2196
    %2753 = vmatprep.subr.bf16.mxu0 %v2201
    %2754 = vmatpush1.bf16.msra.mxu0 %v2200
    %2755 = vmatprep.subr.bf16.mxu0 %v2205
    %2756 = vmatpush1.bf16.msra.mxu0 %v2204
    %2757 = vmatprep.subr.bf16.mxu0 %v2209
    %2758 = vmatpush1.bf16.msra.mxu0 %v2208
    %2759 = vmatprep.subr.bf16.mxu0 %v2213
    %2760 = vmatpush1.bf16.msra.mxu0 %v2212
    %2761 = vmatprep.subr.bf16.mxu0 %v2217
    %2762 = vmatpush1.bf16.msra.mxu0 %v2216
    %2763 = vmatprep.subr.bf16.mxu0 %v2221
    %2764 = vmatpush1.bf16.msra.mxu0 %v2220
    %2765 = vmatprep.subr.bf16.mxu0 %v2225
    %2766 = vmatpush1.bf16.msra.mxu0 %v2224
    %2767 = vmatprep.subr.bf16.mxu0 %v2229
    %2768 = vmatpush1.bf16.msra.mxu0 %v2228
    %2769 = vmatprep.subr.bf16.mxu0 %v2233
    %2770 = vmatpush1.bf16.msra.mxu0 %v2232
    %2771 = vmatprep.subr.bf16.mxu0 %v2237
    %2772 = vmatpush1.bf16.msra.mxu0 %v2236
    %2773 = vmatprep.subr.bf16.mxu0 %v2241
    %2774 = vmatpush1.bf16.msra.mxu0 %v2240
    %2775 = vmatprep.subr.bf16.mxu0 %v2245
    %2776 = vmatpush1.bf16.msra.mxu0 %v2244
    %2777 = vmatprep.mubr.bf16.mxu0 %v1013
    %2778 = vmatmul.mubr.bf16.gmra.mrb[0].mxu0 %v1012
    %v2779 = vpop.f32.mrb[0].mxu0
    %v2780 = vadd.f32 %v2667, %v2779
    %v2781 = vpop.f32.mrb[0].mxu0
    %v2782 = vadd.f32 %v2669, %v2781
    %v2783 = vpop.f32.mrb[0].mxu0
    %v2784 = vadd.f32 %v2671, %v2783
    %v2785 = vpop.f32.mrb[0].mxu0
    %v2786 = vadd.f32 %v2673, %v2785
    %2787 = vmatprep.mubr.bf16.mxu0 %v1021
    %2788 = vmatmul.mubr.bf16.gmra.mrb[0].mxu0 %v1020
    %v2789 = vpop.f32.mrb[0].mxu0
    %v2790 = vadd.f32 %v2677, %v2789
    %v2791 = vpop.f32.mrb[0].mxu0
    %v2792 = vadd.f32 %v2679, %v2791
    %v2793 = vpop.f32.mrb[0].mxu0
    %v2794 = vadd.f32 %v2681, %v2793
    %v2795 = vpop.f32.mrb[0].mxu0
    %v2796 = vadd.f32 %v2683, %v2795
    %2797 = vmatprep.mubr.bf16.mxu0 %v1029
    %2798 = vmatmul.mubr.bf16.gmra.mrb[0].mxu0 %v1028
    %v2799 = vpop.f32.mrb[0].mxu0
    %v2800 = vadd.f32 %v2687, %v2799
    %v2801 = vpop.f32.mrb[0].mxu0
    %v2802 = vadd.f32 %v2689, %v2801
    %v2803 = vpop.f32.mrb[0].mxu0
    %v2804 = vadd.f32 %v2691, %v2803
    %v2805 = vpop.f32.mrb[0].mxu0
    %v2806 = vadd.f32 %v2693, %v2805
    %2807 = vmatprep.mubr.bf16.mxu0 %v1037
    %2808 = vmatmul.mubr.bf16.gmra.mrb[0].mxu0 %v1036
    %v2809 = vpop.f32.mrb[0].mxu0
    %v2810 = vadd.f32 %v2697, %v2809
    %v2811 = vpop.f32.mrb[0].mxu0
    %v2812 = vadd.f32 %v2699, %v2811
    %v2813 = vpop.f32.mrb[0].mxu0
    %v2814 = vadd.f32 %v2701, %v2813
    %v2815 = vpop.f32.mrb[0].mxu0
    %v2816 = vadd.f32 %v2703, %v2815
    %2817 = vmatprep.mubr.bf16.mxu0 %v1045
    %2818 = vmatmul.mubr.bf16.gmra.mrb[0].mxu0 %v1044
    %v2819 = vpop.f32.mrb[0].mxu0
    %v2820 = vadd.f32 %v2707, %v2819
    %v2821 = vpop.f32.mrb[0].mxu0
    %v2822 = vadd.f32 %v2709, %v2821
    %v2823 = vpop.f32.mrb[0].mxu0
    %v2824 = vadd.f32 %v2711, %v2823
    %v2825 = vpop.f32.mrb[0].mxu0
    %v2826 = vadd.f32 %v2713, %v2825
    %2827 = vmatprep.mubr.bf16.mxu0 %v1053
    %2828 = vmatmul.mubr.bf16.gmra.mrb[0].mxu0 %v1052
    %v2829 = vpop.f32.mrb[0].mxu0
    %v2830 = vadd.f32 %v2717, %v2829
    %v2831 = vpop.f32.mrb[0].mxu0
    %v2832 = vadd.f32 %v2719, %v2831
    %v2833 = vpop.f32.mrb[0].mxu0
    %v2834 = vadd.f32 %v2721, %v2833
    %v2835 = vpop.f32.mrb[0].mxu0
    %v2836 = vadd.f32 %v2723, %v2835
    %2837 = vmatprep.mubr.bf16.mxu0 %v1061
    %2838 = vmatmul.mubr.bf16.gmra.mrb[0].mxu0 %v1060
    %v2839 = vpop.f32.mrb[0].mxu0
    %v2840 = vadd.f32 %v2727, %v2839
    %v2841 = vpop.f32.mrb[0].mxu0
    %v2842 = vadd.f32 %v2729, %v2841
    %v2843 = vpop.f32.mrb[0].mxu0
    %v2844 = vadd.f32 %v2731, %v2843
    %v2845 = vpop.f32.mrb[0].mxu0
    %v2846 = vadd.f32 %v2733, %v2845
    %2847 = vmatprep.mubr.bf16.mxu0 %v1069
    %2848 = vmatmul.mubr.bf16.gmra.mrb[0].mxu0 %v1068
    %v2849 = vpop.f32.mrb[0].mxu0
    %v2850 = vadd.f32 %v2737, %v2849
    %v2851 = vpop.f32.mrb[0].mxu0
    %v2852 = vadd.f32 %v2739, %v2851
    %v2853 = vpop.f32.mrb[0].mxu0
    %v2854 = vadd.f32 %v2741, %v2853
    %v2855 = vpop.f32.mrb[0].mxu0
    %v2856 = vadd.f32 %v2743, %v2855
    %2857 = vdwg.mxu0
    %2858 = vmatprep.subr.bf16.mxu0 %v2249
    %2859 = vmatpush1.bf16.msra.mxu0 %v2248
    %2860 = vmatprep.subr.bf16.mxu0 %v2253
    %2861 = vmatpush1.bf16.msra.mxu0 %v2252
    %2862 = vmatprep.subr.bf16.mxu0 %v2257
    %2863 = vmatpush1.bf16.msra.mxu0 %v2256
    %2864 = vmatprep.subr.bf16.mxu0 %v2261
    %2865 = vmatpush1.bf16.msra.mxu0 %v2260
    %2866 = vmatprep.subr.bf16.mxu0 %v2265
    %2867 = vmatpush1.bf16.msra.mxu0 %v2264
    %2868 = vmatprep.subr.bf16.mxu0 %v2269
    %2869 = vmatpush1.bf16.msra.mxu0 %v2268
    %2870 = vmatprep.subr.bf16.mxu0 %v2273
    %2871 = vmatpush1.bf16.msra.mxu0 %v2272
    %2872 = vmatprep.subr.bf16.mxu0 %v2277
    %2873 = vmatpush1.bf16.msra.mxu0 %v2276
    %2874 = vmatprep.subr.bf16.mxu0 %v2281
    %2875 = vmatpush1.bf16.msra.mxu0 %v2280
    %2876 = vmatprep.subr.bf16.mxu0 %v2285
    %2877 = vmatpush1.bf16.msra.mxu0 %v2284
    %2878 = vmatprep.subr.bf16.mxu0 %v2289
    %2879 = vmatpush1.bf16.msra.mxu0 %v2288
    %2880 = vmatprep.subr.bf16.mxu0 %v2293
    %2881 = vmatpush1.bf16.msra.mxu0 %v2292
    %2882 = vmatprep.subr.bf16.mxu0 %v2297
    %2883 = vmatpush1.bf16.msra.mxu0 %v2296
    %2884 = vmatprep.subr.bf16.mxu0 %v2301
    %2885 = vmatpush1.bf16.msra.mxu0 %v2300
    %2886 = vmatprep.subr.bf16.mxu0 %v2305
    %2887 = vmatpush1.bf16.msra.mxu0 %v2304
    %2888 = vmatprep.subr.bf16.mxu0 %v2309
    %2889 = vmatpush1.bf16.msra.mxu0 %v2308
    %2890 = vmatprep.mubr.bf16.mxu0 %v1015
    %2891 = vmatmul.mubr.bf16.gmra.mrb[0].mxu0 %v1014
    %v2892 = vpop.f32.mrb[0].mxu0
    %v2893 = vadd.f32 %v2780, %v2892
    %v2894 = vpop.f32.mrb[0].mxu0
    %v2895 = vadd.f32 %v2782, %v2894
    %v2896 = vpop.f32.mrb[0].mxu0
    %v2897 = vadd.f32 %v2784, %v2896
    %v2898 = vpop.f32.mrb[0].mxu0
    %v2899 = vadd.f32 %v2786, %v2898
    %2900 = vmatprep.mubr.bf16.mxu0 %v1023
    %2901 = vmatmul.mubr.bf16.gmra.mrb[0].mxu0 %v1022
    %v2902 = vpop.f32.mrb[0].mxu0
    %v2903 = vadd.f32 %v2790, %v2902
    %v2904 = vpop.f32.mrb[0].mxu0
    %v2905 = vadd.f32 %v2792, %v2904
    %v2906 = vpop.f32.mrb[0].mxu0
    %v2907 = vadd.f32 %v2794, %v2906
    %v2908 = vpop.f32.mrb[0].mxu0
    %v2909 = vadd.f32 %v2796, %v2908
    %2910 = vmatprep.mubr.bf16.mxu0 %v1031
    %2911 = vmatmul.mubr.bf16.gmra.mrb[0].mxu0 %v1030
    %v2912 = vpop.f32.mrb[0].mxu0
    %v2913 = vadd.f32 %v2800, %v2912
    %v2914 = vpop.f32.mrb[0].mxu0
    %v2915 = vadd.f32 %v2802, %v2914
    %v2916 = vpop.f32.mrb[0].mxu0
    %v2917 = vadd.f32 %v2804, %v2916
    %v2918 = vpop.f32.mrb[0].mxu0
    %v2919 = vadd.f32 %v2806, %v2918
    %2920 = vmatprep.mubr.bf16.mxu0 %v1039
    %2921 = vmatmul.mubr.bf16.gmra.mrb[0].mxu0 %v1038
    %v2922 = vpop.f32.mrb[0].mxu0
    %v2923 = vadd.f32 %v2810, %v2922
    %v2924 = vpop.f32.mrb[0].mxu0
    %v2925 = vadd.f32 %v2812, %v2924
    %v2926 = vpop.f32.mrb[0].mxu0
    %v2927 = vadd.f32 %v2814, %v2926
    %v2928 = vpop.f32.mrb[0].mxu0
    %v2929 = vadd.f32 %v2816, %v2928
    %2930 = vmatprep.mubr.bf16.mxu0 %v1047
    %2931 = vmatmul.mubr.bf16.gmra.mrb[0].mxu0 %v1046
    %v2932 = vpop.f32.mrb[0].mxu0
    %v2933 = vadd.f32 %v2820, %v2932
    %v2934 = vpop.f32.mrb[0].mxu0
    %v2935 = vadd.f32 %v2822, %v2934
    %v2936 = vpop.f32.mrb[0].mxu0
    %v2937 = vadd.f32 %v2824, %v2936
    %v2938 = vpop.f32.mrb[0].mxu0
    %v2939 = vadd.f32 %v2826, %v2938
    %2940 = vmatprep.mubr.bf16.mxu0 %v1055
    %2941 = vmatmul.mubr.bf16.gmra.mrb[0].mxu0 %v1054
    %v2942 = vpop.f32.mrb[0].mxu0
    %v2943 = vadd.f32 %v2830, %v2942
    %v2944 = vpop.f32.mrb[0].mxu0
    %v2945 = vadd.f32 %v2832, %v2944
    %v2946 = vpop.f32.mrb[0].mxu0
    %v2947 = vadd.f32 %v2834, %v2946
    %v2948 = vpop.f32.mrb[0].mxu0
    %v2949 = vadd.f32 %v2836, %v2948
    %2950 = vmatprep.mubr.bf16.mxu0 %v1063
    %2951 = vmatmul.mubr.bf16.gmra.mrb[0].mxu0 %v1062
    %v2952 = vpop.f32.mrb[0].mxu0
    %v2953 = vadd.f32 %v2840, %v2952
    %v2954 = vpop.f32.mrb[0].mxu0
    %v2955 = vadd.f32 %v2842, %v2954
    %v2956 = vpop.f32.mrb[0].mxu0
    %v2957 = vadd.f32 %v2844, %v2956
    %v2958 = vpop.f32.mrb[0].mxu0
    %v2959 = vadd.f32 %v2846, %v2958
    %2960 = vmatprep.mubr.bf16.mxu0 %v1071
    %2961 = vmatmul.mubr.bf16.gmra.mrb[0].mxu0 %v1070
    %v2962 = vpop.f32.mrb[0].mxu0
    %v2963 = vadd.f32 %v2850, %v2962
    %v2964 = vpop.f32.mrb[0].mxu0
    %v2965 = vadd.f32 %v2852, %v2964
    %v2966 = vpop.f32.mrb[0].mxu0
    %v2967 = vadd.f32 %v2854, %v2966
    %v2968 = vpop.f32.mrb[0].mxu0
    %v2969 = vadd.f32 %v2856, %v2968
    %2970 = vdwg.mxu0
    %2971 = vmatprep.subr.bf16.mxu0 %v2313
    %2972 = vmatpush1.bf16.msra.mxu0 %v2312
    %2973 = vmatprep.subr.bf16.mxu0 %v2317
    %2974 = vmatpush1.bf16.msra.mxu0 %v2316
    %2975 = vmatprep.subr.bf16.mxu0 %v2321
    %2976 = vmatpush1.bf16.msra.mxu0 %v2320
    %2977 = vmatprep.subr.bf16.mxu0 %v2325
    %2978 = vmatpush1.bf16.msra.mxu0 %v2324
    %2979 = vmatprep.subr.bf16.mxu0 %v2329
    %2980 = vmatpush1.bf16.msra.mxu0 %v2328
    %2981 = vmatprep.subr.bf16.mxu0 %v2333
    %2982 = vmatpush1.bf16.msra.mxu0 %v2332
    %2983 = vmatprep.subr.bf16.mxu0 %v2337
    %2984 = vmatpush1.bf16.msra.mxu0 %v2336
    %2985 = vmatprep.subr.bf16.mxu0 %v2341
    %2986 = vmatpush1.bf16.msra.mxu0 %v2340
    %2987 = vmatprep.subr.bf16.mxu0 %v2345
    %2988 = vmatpush1.bf16.msra.mxu0 %v2344
    %2989 = vmatprep.subr.bf16.mxu0 %v2349
    %2990 = vmatpush1.bf16.msra.mxu0 %v2348
    %2991 = vmatprep.subr.bf16.mxu0 %v2353
    %2992 = vmatpush1.bf16.msra.mxu0 %v2352
    %2993 = vmatprep.subr.bf16.mxu0 %v2357
    %2994 = vmatpush1.bf16.msra.mxu0 %v2356
    %2995 = vmatprep.subr.bf16.mxu0 %v2361
    %2996 = vmatpush1.bf16.msra.mxu0 %v2360
    %2997 = vmatprep.subr.bf16.mxu0 %v2365
    %2998 = vmatpush1.bf16.msra.mxu0 %v2364
    %2999 = vmatprep.subr.bf16.mxu0 %v2369
    %3000 = vmatpush1.bf16.msra.mxu0 %v2368
    %3001 = vmatprep.subr.bf16.mxu0 %v2373
    %3002 = vmatpush1.bf16.msra.mxu0 %v2372
    %3003 = vmatprep.mubr.bf16.mxu0 %v1017
    %3004 = vmatmul.mubr.bf16.gmra.mrb[0].mxu0 %v1016
    %v3005 = vpop.f32.mrb[0].mxu0
    %v3006 = vadd.f32 %v2893, %v3005
    %v3007 = vpop.f32.mrb[0].mxu0
    %v3008 = vadd.f32 %v2895, %v3007
    %v3009 = vpop.f32.mrb[0].mxu0
    %v3010 = vadd.f32 %v2897, %v3009
    %v3011 = vpop.f32.mrb[0].mxu0
    %v3012 = vadd.f32 %v2899, %v3011
    %3013 = vmatprep.mubr.bf16.mxu0 %v1025
    %3014 = vmatmul.mubr.bf16.gmra.mrb[0].mxu0 %v1024
    %v3015 = vpop.f32.mrb[0].mxu0
    %v3016 = vadd.f32 %v2903, %v3015
    %v3017 = vpop.f32.mrb[0].mxu0
    %v3018 = vadd.f32 %v2905, %v3017
    %v3019 = vpop.f32.mrb[0].mxu0
    %v3020 = vadd.f32 %v2907, %v3019
    %v3021 = vpop.f32.mrb[0].mxu0
    %v3022 = vadd.f32 %v2909, %v3021
    %3023 = vmatprep.mubr.bf16.mxu0 %v1033
    %3024 = vmatmul.mubr.bf16.gmra.mrb[0].mxu0 %v1032
    %v3025 = vpop.f32.mrb[0].mxu0
    %v3026 = vadd.f32 %v2913, %v3025
    %v3027 = vpop.f32.mrb[0].mxu0
    %v3028 = vadd.f32 %v2915, %v3027
    %v3029 = vpop.f32.mrb[0].mxu0
    %v3030 = vadd.f32 %v2917, %v3029
    %v3031 = vpop.f32.mrb[0].mxu0
    %v3032 = vadd.f32 %v2919, %v3031
    %3033 = vmatprep.mubr.bf16.mxu0 %v1041
    %3034 = vmatmul.mubr.bf16.gmra.mrb[0].mxu0 %v1040
    %v3035 = vpop.f32.mrb[0].mxu0
    %v3036 = vadd.f32 %v2923, %v3035
    %v3037 = vpop.f32.mrb[0].mxu0
    %v3038 = vadd.f32 %v2925, %v3037
    %v3039 = vpop.f32.mrb[0].mxu0
    %v3040 = vadd.f32 %v2927, %v3039
    %v3041 = vpop.f32.mrb[0].mxu0
    %v3042 = vadd.f32 %v2929, %v3041
    %3043 = vmatprep.mubr.bf16.mxu0 %v1049
    %3044 = vmatmul.mubr.bf16.gmra.mrb[0].mxu0 %v1048
    %v3045 = vpop.f32.mrb[0].mxu0
    %v3046 = vadd.f32 %v2933, %v3045
    %v3047 = vpop.f32.mrb[0].mxu0
    %v3048 = vadd.f32 %v2935, %v3047
    %v3049 = vpop.f32.mrb[0].mxu0
    %v3050 = vadd.f32 %v2937, %v3049
    %v3051 = vpop.f32.mrb[0].mxu0
    %v3052 = vadd.f32 %v2939, %v3051
    %3053 = vmatprep.mubr.bf16.mxu0 %v1057
    %3054 = vmatmul.mubr.bf16.gmra.mrb[0].mxu0 %v1056
    %v3055 = vpop.f32.mrb[0].mxu0
    %v3056 = vadd.f32 %v2943, %v3055
    %v3057 = vpop.f32.mrb[0].mxu0
    %v3058 = vadd.f32 %v2945, %v3057
    %v3059 = vpop.f32.mrb[0].mxu0
    %v3060 = vadd.f32 %v2947, %v3059
    %v3061 = vpop.f32.mrb[0].mxu0
    %v3062 = vadd.f32 %v2949, %v3061
    %3063 = vmatprep.mubr.bf16.mxu0 %v1065
    %3064 = vmatmul.mubr.bf16.gmra.mrb[0].mxu0 %v1064
    %v3065 = vpop.f32.mrb[0].mxu0
    %v3066 = vadd.f32 %v2953, %v3065
    %v3067 = vpop.f32.mrb[0].mxu0
    %v3068 = vadd.f32 %v2955, %v3067
    %v3069 = vpop.f32.mrb[0].mxu0
    %v3070 = vadd.f32 %v2957, %v3069
    %v3071 = vpop.f32.mrb[0].mxu0
    %v3072 = vadd.f32 %v2959, %v3071
    %3073 = vmatprep.mubr.bf16.mxu0 %v1073
    %3074 = vmatmul.mubr.bf16.gmra.mrb[0].mxu0 %v1072
    %v3075 = vpop.f32.mrb[0].mxu0
    %v3076 = vadd.f32 %v2963, %v3075
    %v3077 = vpop.f32.mrb[0].mxu0
    %v3078 = vadd.f32 %v2965, %v3077
    %v3079 = vpop.f32.mrb[0].mxu0
    %v3080 = vadd.f32 %v2967, %v3079
    %v3081 = vpop.f32.mrb[0].mxu0
    %v3082 = vadd.f32 %v2969, %v3081
    %3083 = vdwg.mxu0
    %3084 = vmatprep.subr.bf16.mxu0 %v2123
    %3085 = vmatpush1.bf16.msra.mxu0 %v2122
    %3086 = vmatprep.subr.bf16.mxu0 %v2127
    %3087 = vmatpush1.bf16.msra.mxu0 %v2126
    %3088 = vmatprep.subr.bf16.mxu0 %v2131
    %3089 = vmatpush1.bf16.msra.mxu0 %v2130
    %3090 = vmatprep.subr.bf16.mxu0 %v2135
    %3091 = vmatpush1.bf16.msra.mxu0 %v2134
    %3092 = vmatprep.subr.bf16.mxu0 %v2139
    %3093 = vmatpush1.bf16.msra.mxu0 %v2138
    %3094 = vmatprep.subr.bf16.mxu0 %v2143
    %3095 = vmatpush1.bf16.msra.mxu0 %v2142
    %3096 = vmatprep.subr.bf16.mxu0 %v2147
    %3097 = vmatpush1.bf16.msra.mxu0 %v2146
    %3098 = vmatprep.subr.bf16.mxu0 %v2151
    %3099 = vmatpush1.bf16.msra.mxu0 %v2150
    %3100 = vmatprep.subr.bf16.mxu0 %v2155
    %3101 = vmatpush1.bf16.msra.mxu0 %v2154
    %3102 = vmatprep.subr.bf16.mxu0 %v2159
    %3103 = vmatpush1.bf16.msra.mxu0 %v2158
    %3104 = vmatprep.subr.bf16.mxu0 %v2163
    %3105 = vmatpush1.bf16.msra.mxu0 %v2162
    %3106 = vmatprep.subr.bf16.mxu0 %v2167
    %3107 = vmatpush1.bf16.msra.mxu0 %v2166
    %3108 = vmatprep.subr.bf16.mxu0 %v2171
    %3109 = vmatpush1.bf16.msra.mxu0 %v2170
    %3110 = vmatprep.subr.bf16.mxu0 %v2175
    %3111 = vmatpush1.bf16.msra.mxu0 %v2174
    %3112 = vmatprep.subr.bf16.mxu0 %v2179
    %3113 = vmatpush1.bf16.msra.mxu0 %v2178
    %3114 = vmatprep.subr.bf16.mxu0 %v2183
    %3115 = vmatpush1.bf16.msra.mxu0 %v2182
    %3116 = vmatprep.mubr.bf16.mxu0 %v1011
    %3117 = vmatmul.mubr.bf16.gmra.mrb[0].mxu0 %v1010
    %v3118 = vpop.f32.mrb[0].mxu0
    %v3119 = vadd.f32 %v1343, %v3118
    %v3120 = vpop.f32.mrb[0].mxu0
    %v3121 = vadd.f32 %v1347, %v3120
    %v3122 = vpop.f32.mrb[0].mxu0
    %v3123 = vadd.f32 %v1343, %v3122
    %v3124 = vpop.f32.mrb[0].mxu0
    %v3125 = vadd.f32 %v1347, %v3124
    %3126 = vmatprep.mubr.bf16.mxu0 %v1019
    %3127 = vmatmul.mubr.bf16.gmra.mrb[0].mxu0 %v1018
    %v3128 = vpop.f32.mrb[0].mxu0
    %v3129 = vadd.f32 %v1343, %v3128
    %v3130 = vpop.f32.mrb[0].mxu0
    %v3131 = vadd.f32 %v1347, %v3130
    %v3132 = vpop.f32.mrb[0].mxu0
    %v3133 = vadd.f32 %v1343, %v3132
    %v3134 = vpop.f32.mrb[0].mxu0
    %v3135 = vadd.f32 %v1347, %v3134
    %3136 = vmatprep.mubr.bf16.mxu0 %v1027
    %3137 = vmatmul.mubr.bf16.gmra.mrb[0].mxu0 %v1026
    %v3138 = vpop.f32.mrb[0].mxu0
    %v3139 = vadd.f32 %v1343, %v3138
    %v3140 = vpop.f32.mrb[0].mxu0
    %v3141 = vadd.f32 %v1347, %v3140
    %v3142 = vpop.f32.mrb[0].mxu0
    %v3143 = vadd.f32 %v1343, %v3142
    %v3144 = vpop.f32.mrb[0].mxu0
    %v3145 = vadd.f32 %v1347, %v3144
    %3146 = vmatprep.mubr.bf16.mxu0 %v1035
    %3147 = vmatmul.mubr.bf16.gmra.mrb[0].mxu0 %v1034
    %v3148 = vpop.f32.mrb[0].mxu0
    %v3149 = vadd.f32 %v1343, %v3148
    %v3150 = vpop.f32.mrb[0].mxu0
    %v3151 = vadd.f32 %v1347, %v3150
    %v3152 = vpop.f32.mrb[0].mxu0
    %v3153 = vadd.f32 %v1343, %v3152
    %v3154 = vpop.f32.mrb[0].mxu0
    %v3155 = vadd.f32 %v1347, %v3154
    %3156 = vmatprep.mubr.bf16.mxu0 %v1043
    %3157 = vmatmul.mubr.bf16.gmra.mrb[0].mxu0 %v1042
    %v3158 = vpop.f32.mrb[0].mxu0
    %v3159 = vadd.f32 %v1343, %v3158
    %v3160 = vpop.f32.mrb[0].mxu0
    %v3161 = vadd.f32 %v1347, %v3160
    %v3162 = vpop.f32.mrb[0].mxu0
    %v3163 = vadd.f32 %v1343, %v3162
    %v3164 = vpop.f32.mrb[0].mxu0
    %v3165 = vadd.f32 %v1347, %v3164
    %3166 = vmatprep.mubr.bf16.mxu0 %v1051
    %3167 = vmatmul.mubr.bf16.gmra.mrb[0].mxu0 %v1050
    %v3168 = vpop.f32.mrb[0].mxu0
    %v3169 = vadd.f32 %v1343, %v3168
    %v3170 = vpop.f32.mrb[0].mxu0
    %v3171 = vadd.f32 %v1347, %v3170
    %v3172 = vpop.f32.mrb[0].mxu0
    %v3173 = vadd.f32 %v1343, %v3172
    %v3174 = vpop.f32.mrb[0].mxu0
    %v3175 = vadd.f32 %v1347, %v3174
    %3176 = vmatprep.mubr.bf16.mxu0 %v1059
    %3177 = vmatmul.mubr.bf16.gmra.mrb[0].mxu0 %v1058
    %v3178 = vpop.f32.mrb[0].mxu0
    %v3179 = vadd.f32 %v1343, %v3178
    %v3180 = vpop.f32.mrb[0].mxu0
    %v3181 = vadd.f32 %v1347, %v3180
    %v3182 = vpop.f32.mrb[0].mxu0
    %v3183 = vadd.f32 %v1343, %v3182
    %v3184 = vpop.f32.mrb[0].mxu0
    %v3185 = vadd.f32 %v1347, %v3184
    %3186 = vmatprep.mubr.bf16.mxu0 %v1067
    %3187 = vmatmul.mubr.bf16.gmra.mrb[0].mxu0 %v1066
    %v3188 = vpop.f32.mrb[0].mxu0
    %v3189 = vadd.f32 %v1343, %v3188
    %v3190 = vpop.f32.mrb[0].mxu0
    %v3191 = vadd.f32 %v1347, %v3190
    %v3192 = vpop.f32.mrb[0].mxu0
    %v3193 = vadd.f32 %v1343, %v3192
    %v3194 = vpop.f32.mrb[0].mxu0
    %v3195 = vadd.f32 %v1347, %v3194
    %3196 = vdwg.mxu0
    %3197 = vmatprep.subr.bf16.mxu0 %v2187
    %3198 = vmatpush1.bf16.msra.mxu0 %v2186
    %3199 = vmatprep.subr.bf16.mxu0 %v2191
    %3200 = vmatpush1.bf16.msra.mxu0 %v2190
    %3201 = vmatprep.subr.bf16.mxu0 %v2195
    %3202 = vmatpush1.bf16.msra.mxu0 %v2194
    %3203 = vmatprep.subr.bf16.mxu0 %v2199
    %3204 = vmatpush1.bf16.msra.mxu0 %v2198
    %3205 = vmatprep.subr.bf16.mxu0 %v2203
    %3206 = vmatpush1.bf16.msra.mxu0 %v2202
    %3207 = vmatprep.subr.bf16.mxu0 %v2207
    %3208 = vmatpush1.bf16.msra.mxu0 %v2206
    %3209 = vmatprep.subr.bf16.mxu0 %v2211
    %3210 = vmatpush1.bf16.msra.mxu0 %v2210
    %3211 = vmatprep.subr.bf16.mxu0 %v2215
    %3212 = vmatpush1.bf16.msra.mxu0 %v2214
    %3213 = vmatprep.subr.bf16.mxu0 %v2219
    %3214 = vmatpush1.bf16.msra.mxu0 %v2218
    %3215 = vmatprep.subr.bf16.mxu0 %v2223
    %3216 = vmatpush1.bf16.msra.mxu0 %v2222
    %3217 = vmatprep.subr.bf16.mxu0 %v2227
    %3218 = vmatpush1.bf16.msra.mxu0 %v2226
    %3219 = vmatprep.subr.bf16.mxu0 %v2231
    %3220 = vmatpush1.bf16.msra.mxu0 %v2230
    %3221 = vmatprep.subr.bf16.mxu0 %v2235
    %3222 = vmatpush1.bf16.msra.mxu0 %v2234
    %3223 = vmatprep.subr.bf16.mxu0 %v2239
    %3224 = vmatpush1.bf16.msra.mxu0 %v2238
    %3225 = vmatprep.subr.bf16.mxu0 %v2243
    %3226 = vmatpush1.bf16.msra.mxu0 %v2242
    %3227 = vmatprep.subr.bf16.mxu0 %v2247
    %3228 = vmatpush1.bf16.msra.mxu0 %v2246
    %3229 = vmatprep.mubr.bf16.mxu0 %v1013
    %3230 = vmatmul.mubr.bf16.gmra.mrb[0].mxu0 %v1012
    %v3231 = vpop.f32.mrb[0].mxu0
    %v3232 = vadd.f32 %v3119, %v3231
    %v3233 = vpop.f32.mrb[0].mxu0
    %v3234 = vadd.f32 %v3121, %v3233
    %v3235 = vpop.f32.mrb[0].mxu0
    %v3236 = vadd.f32 %v3123, %v3235
    %v3237 = vpop.f32.mrb[0].mxu0
    %v3238 = vadd.f32 %v3125, %v3237
    %3239 = vmatprep.mubr.bf16.mxu0 %v1021
    %3240 = vmatmul.mubr.bf16.gmra.mrb[0].mxu0 %v1020
    %v3241 = vpop.f32.mrb[0].mxu0
    %v3242 = vadd.f32 %v3129, %v3241
    %v3243 = vpop.f32.mrb[0].mxu0
    %v3244 = vadd.f32 %v3131, %v3243
    %v3245 = vpop.f32.mrb[0].mxu0
    %v3246 = vadd.f32 %v3133, %v3245
    %v3247 = vpop.f32.mrb[0].mxu0
    %v3248 = vadd.f32 %v3135, %v3247
    %3249 = vmatprep.mubr.bf16.mxu0 %v1029
    %3250 = vmatmul.mubr.bf16.gmra.mrb[0].mxu0 %v1028
    %v3251 = vpop.f32.mrb[0].mxu0
    %v3252 = vadd.f32 %v3139, %v3251
    %v3253 = vpop.f32.mrb[0].mxu0
    %v3254 = vadd.f32 %v3141, %v3253
    %v3255 = vpop.f32.mrb[0].mxu0
    %v3256 = vadd.f32 %v3143, %v3255
    %v3257 = vpop.f32.mrb[0].mxu0
    %v3258 = vadd.f32 %v3145, %v3257
    %3259 = vmatprep.mubr.bf16.mxu0 %v1037
    %3260 = vmatmul.mubr.bf16.gmra.mrb[0].mxu0 %v1036
    %v3261 = vpop.f32.mrb[0].mxu0
    %v3262 = vadd.f32 %v3149, %v3261
    %v3263 = vpop.f32.mrb[0].mxu0
    %v3264 = vadd.f32 %v3151, %v3263
    %v3265 = vpop.f32.mrb[0].mxu0
    %v3266 = vadd.f32 %v3153, %v3265
    %v3267 = vpop.f32.mrb[0].mxu0
    %v3268 = vadd.f32 %v3155, %v3267
    %3269 = vmatprep.mubr.bf16.mxu0 %v1045
    %3270 = vmatmul.mubr.bf16.gmra.mrb[0].mxu0 %v1044
    %v3271 = vpop.f32.mrb[0].mxu0
    %v3272 = vadd.f32 %v3159, %v3271
    %v3273 = vpop.f32.mrb[0].mxu0
    %v3274 = vadd.f32 %v3161, %v3273
    %v3275 = vpop.f32.mrb[0].mxu0
    %v3276 = vadd.f32 %v3163, %v3275
    %v3277 = vpop.f32.mrb[0].mxu0
    %v3278 = vadd.f32 %v3165, %v3277
    %3279 = vmatprep.mubr.bf16.mxu0 %v1053
    %3280 = vmatmul.mubr.bf16.gmra.mrb[0].mxu0 %v1052
    %v3281 = vpop.f32.mrb[0].mxu0
    %v3282 = vadd.f32 %v3169, %v3281
    %v3283 = vpop.f32.mrb[0].mxu0
    %v3284 = vadd.f32 %v3171, %v3283
    %v3285 = vpop.f32.mrb[0].mxu0
    %v3286 = vadd.f32 %v3173, %v3285
    %v3287 = vpop.f32.mrb[0].mxu0
    %v3288 = vadd.f32 %v3175, %v3287
    %3289 = vmatprep.mubr.bf16.mxu0 %v1061
    %3290 = vmatmul.mubr.bf16.gmra.mrb[0].mxu0 %v1060
    %v3291 = vpop.f32.mrb[0].mxu0
    %v3292 = vadd.f32 %v3179, %v3291
    %v3293 = vpop.f32.mrb[0].mxu0
    %v3294 = vadd.f32 %v3181, %v3293
    %v3295 = vpop.f32.mrb[0].mxu0
    %v3296 = vadd.f32 %v3183, %v3295
    %v3297 = vpop.f32.mrb[0].mxu0
    %v3298 = vadd.f32 %v3185, %v3297
    %3299 = vmatprep.mubr.bf16.mxu0 %v1069
    %3300 = vmatmul.mubr.bf16.gmra.mrb[0].mxu0 %v1068
    %v3301 = vpop.f32.mrb[0].mxu0
    %v3302 = vadd.f32 %v3189, %v3301
    %v3303 = vpop.f32.mrb[0].mxu0
    %v3304 = vadd.f32 %v3191, %v3303
    %v3305 = vpop.f32.mrb[0].mxu0
    %v3306 = vadd.f32 %v3193, %v3305
    %v3307 = vpop.f32.mrb[0].mxu0
    %v3308 = vadd.f32 %v3195, %v3307
    %3309 = vdwg.mxu0
    %3310 = vmatprep.subr.bf16.mxu0 %v2251
    %3311 = vmatpush1.bf16.msra.mxu0 %v2250
    %3312 = vmatprep.subr.bf16.mxu0 %v2255
    %3313 = vmatpush1.bf16.msra.mxu0 %v2254
    %3314 = vmatprep.subr.bf16.mxu0 %v2259
    %3315 = vmatpush1.bf16.msra.mxu0 %v2258
    %3316 = vmatprep.subr.bf16.mxu0 %v2263
    %3317 = vmatpush1.bf16.msra.mxu0 %v2262
    %3318 = vmatprep.subr.bf16.mxu0 %v2267
    %3319 = vmatpush1.bf16.msra.mxu0 %v2266
    %3320 = vmatprep.subr.bf16.mxu0 %v2271
    %3321 = vmatpush1.bf16.msra.mxu0 %v2270
    %3322 = vmatprep.subr.bf16.mxu0 %v2275
    %3323 = vmatpush1.bf16.msra.mxu0 %v2274
    %3324 = vmatprep.subr.bf16.mxu0 %v2279
    %3325 = vmatpush1.bf16.msra.mxu0 %v2278
    %3326 = vmatprep.subr.bf16.mxu0 %v2283
    %3327 = vmatpush1.bf16.msra.mxu0 %v2282
    %3328 = vmatprep.subr.bf16.mxu0 %v2287
    %3329 = vmatpush1.bf16.msra.mxu0 %v2286
    %3330 = vmatprep.subr.bf16.mxu0 %v2291
    %3331 = vmatpush1.bf16.msra.mxu0 %v2290
    %3332 = vmatprep.subr.bf16.mxu0 %v2295
    %3333 = vmatpush1.bf16.msra.mxu0 %v2294
    %3334 = vmatprep.subr.bf16.mxu0 %v2299
    %3335 = vmatpush1.bf16.msra.mxu0 %v2298
    %3336 = vmatprep.subr.bf16.mxu0 %v2303
    %3337 = vmatpush1.bf16.msra.mxu0 %v2302
    %3338 = vmatprep.subr.bf16.mxu0 %v2307
    %3339 = vmatpush1.bf16.msra.mxu0 %v2306
    %3340 = vmatprep.subr.bf16.mxu0 %v2311
    %3341 = vmatpush1.bf16.msra.mxu0 %v2310
    %3342 = vmatprep.mubr.bf16.mxu0 %v1015
    %3343 = vmatmul.mubr.bf16.gmra.mrb[0].mxu0 %v1014
    %v3344 = vpop.f32.mrb[0].mxu0
    %v3345 = vadd.f32 %v3232, %v3344
    %v3346 = vpop.f32.mrb[0].mxu0
    %v3347 = vadd.f32 %v3234, %v3346
    %v3348 = vpop.f32.mrb[0].mxu0
    %v3349 = vadd.f32 %v3236, %v3348
    %v3350 = vpop.f32.mrb[0].mxu0
    %v3351 = vadd.f32 %v3238, %v3350
    %3352 = vmatprep.mubr.bf16.mxu0 %v1023
    %3353 = vmatmul.mubr.bf16.gmra.mrb[0].mxu0 %v1022
    %v3354 = vpop.f32.mrb[0].mxu0
    %v3355 = vadd.f32 %v3242, %v3354
    %v3356 = vpop.f32.mrb[0].mxu0
    %v3357 = vadd.f32 %v3244, %v3356
    %v3358 = vpop.f32.mrb[0].mxu0
    %v3359 = vadd.f32 %v3246, %v3358
    %v3360 = vpop.f32.mrb[0].mxu0
    %v3361 = vadd.f32 %v3248, %v3360
    %3362 = vmatprep.mubr.bf16.mxu0 %v1031
    %3363 = vmatmul.mubr.bf16.gmra.mrb[0].mxu0 %v1030
    %v3364 = vpop.f32.mrb[0].mxu0
    %v3365 = vadd.f32 %v3252, %v3364
    %v3366 = vpop.f32.mrb[0].mxu0
    %v3367 = vadd.f32 %v3254, %v3366
    %v3368 = vpop.f32.mrb[0].mxu0
    %v3369 = vadd.f32 %v3256, %v3368
    %v3370 = vpop.f32.mrb[0].mxu0
    %v3371 = vadd.f32 %v3258, %v3370
    %3372 = vmatprep.mubr.bf16.mxu0 %v1039
    %3373 = vmatmul.mubr.bf16.gmra.mrb[0].mxu0 %v1038
    %v3374 = vpop.f32.mrb[0].mxu0
    %v3375 = vadd.f32 %v3262, %v3374
    %v3376 = vpop.f32.mrb[0].mxu0
    %v3377 = vadd.f32 %v3264, %v3376
    %v3378 = vpop.f32.mrb[0].mxu0
    %v3379 = vadd.f32 %v3266, %v3378
    %v3380 = vpop.f32.mrb[0].mxu0
    %v3381 = vadd.f32 %v3268, %v3380
    %3382 = vmatprep.mubr.bf16.mxu0 %v1047
    %3383 = vmatmul.mubr.bf16.gmra.mrb[0].mxu0 %v1046
    %v3384 = vpop.f32.mrb[0].mxu0
    %v3385 = vadd.f32 %v3272, %v3384
    %v3386 = vpop.f32.mrb[0].mxu0
    %v3387 = vadd.f32 %v3274, %v3386
    %v3388 = vpop.f32.mrb[0].mxu0
    %v3389 = vadd.f32 %v3276, %v3388
    %v3390 = vpop.f32.mrb[0].mxu0
    %v3391 = vadd.f32 %v3278, %v3390
    %3392 = vmatprep.mubr.bf16.mxu0 %v1055
    %3393 = vmatmul.mubr.bf16.gmra.mrb[0].mxu0 %v1054
    %v3394 = vpop.f32.mrb[0].mxu0
    %v3395 = vadd.f32 %v3282, %v3394
    %v3396 = vpop.f32.mrb[0].mxu0
    %v3397 = vadd.f32 %v3284, %v3396
    %v3398 = vpop.f32.mrb[0].mxu0
    %v3399 = vadd.f32 %v3286, %v3398
    %v3400 = vpop.f32.mrb[0].mxu0
    %v3401 = vadd.f32 %v3288, %v3400
    %3402 = vmatprep.mubr.bf16.mxu0 %v1063
    %3403 = vmatmul.mubr.bf16.gmra.mrb[0].mxu0 %v1062
    %v3404 = vpop.f32.mrb[0].mxu0
    %v3405 = vadd.f32 %v3292, %v3404
    %v3406 = vpop.f32.mrb[0].mxu0
    %v3407 = vadd.f32 %v3294, %v3406
    %v3408 = vpop.f32.mrb[0].mxu0
    %v3409 = vadd.f32 %v3296, %v3408
    %v3410 = vpop.f32.mrb[0].mxu0
    %v3411 = vadd.f32 %v3298, %v3410
    %3412 = vmatprep.mubr.bf16.mxu0 %v1071
    %3413 = vmatmul.mubr.bf16.gmra.mrb[0].mxu0 %v1070
    %v3414 = vpop.f32.mrb[0].mxu0
    %v3415 = vadd.f32 %v3302, %v3414
    %v3416 = vpop.f32.mrb[0].mxu0
    %v3417 = vadd.f32 %v3304, %v3416
    %v3418 = vpop.f32.mrb[0].mxu0
    %v3419 = vadd.f32 %v3306, %v3418
    %v3420 = vpop.f32.mrb[0].mxu0
    %v3421 = vadd.f32 %v3308, %v3420
    %3422 = vdwg.mxu0
    %3423 = vmatprep.subr.bf16.mxu0 %v2315
    %3424 = vmatpush1.bf16.msra.mxu0 %v2314
    %3425 = vmatprep.subr.bf16.mxu0 %v2319
    %3426 = vmatpush1.bf16.msra.mxu0 %v2318
    %3427 = vmatprep.subr.bf16.mxu0 %v2323
    %3428 = vmatpush1.bf16.msra.mxu0 %v2322
    %3429 = vmatprep.subr.bf16.mxu0 %v2327
    %3430 = vmatpush1.bf16.msra.mxu0 %v2326
    %3431 = vmatprep.subr.bf16.mxu0 %v2331
    %3432 = vmatpush1.bf16.msra.mxu0 %v2330
    %3433 = vmatprep.subr.bf16.mxu0 %v2335
    %3434 = vmatpush1.bf16.msra.mxu0 %v2334
    %3435 = vmatprep.subr.bf16.mxu0 %v2339
    %3436 = vmatpush1.bf16.msra.mxu0 %v2338
    %3437 = vmatprep.subr.bf16.mxu0 %v2343
    %3438 = vmatpush1.bf16.msra.mxu0 %v2342
    %3439 = vmatprep.subr.bf16.mxu0 %v2347
    %3440 = vmatpush1.bf16.msra.mxu0 %v2346
    %3441 = vmatprep.subr.bf16.mxu0 %v2351
    %3442 = vmatpush1.bf16.msra.mxu0 %v2350
    %3443 = vmatprep.subr.bf16.mxu0 %v2355
    %3444 = vmatpush1.bf16.msra.mxu0 %v2354
    %3445 = vmatprep.subr.bf16.mxu0 %v2359
    %3446 = vmatpush1.bf16.msra.mxu0 %v2358
    %3447 = vmatprep.subr.bf16.mxu0 %v2363
    %3448 = vmatpush1.bf16.msra.mxu0 %v2362
    %3449 = vmatprep.subr.bf16.mxu0 %v2367
    %3450 = vmatpush1.bf16.msra.mxu0 %v2366
    %3451 = vmatprep.subr.bf16.mxu0 %v2371
    %3452 = vmatpush1.bf16.msra.mxu0 %v2370
    %3453 = vmatprep.subr.bf16.mxu0 %v2375
    %3454 = vmatpush1.bf16.msra.mxu0 %v2374
    %3455 = vmatprep.mubr.bf16.mxu0 %v1017
    %3456 = vmatmul.mubr.bf16.gmra.mrb[0].mxu0 %v1016
    %v3457 = vpop.f32.mrb[0].mxu0
    %v3458 = vadd.f32 %v3345, %v3457
    %v3459 = vpop.f32.mrb[0].mxu0
    %v3460 = vadd.f32 %v3347, %v3459
    %v3461 = vpop.f32.mrb[0].mxu0
    %v3462 = vadd.f32 %v3349, %v3461
    %v3463 = vpop.f32.mrb[0].mxu0
    %v3464 = vadd.f32 %v3351, %v3463
    %3465 = vmatprep.mubr.bf16.mxu0 %v1025
    %3466 = vmatmul.mubr.bf16.gmra.mrb[0].mxu0 %v1024
    %v3467 = vpop.f32.mrb[0].mxu0
    %v3468 = vadd.f32 %v3355, %v3467
    %v3469 = vpop.f32.mrb[0].mxu0
    %v3470 = vadd.f32 %v3357, %v3469
    %v3471 = vpop.f32.mrb[0].mxu0
    %v3472 = vadd.f32 %v3359, %v3471
    %v3473 = vpop.f32.mrb[0].mxu0
    %v3474 = vadd.f32 %v3361, %v3473
    %3475 = vmatprep.mubr.bf16.mxu0 %v1033
    %3476 = vmatmul.mubr.bf16.gmra.mrb[0].mxu0 %v1032
    %v3477 = vpop.f32.mrb[0].mxu0
    %v3478 = vadd.f32 %v3365, %v3477
    %v3479 = vpop.f32.mrb[0].mxu0
    %v3480 = vadd.f32 %v3367, %v3479
    %v3481 = vpop.f32.mrb[0].mxu0
    %v3482 = vadd.f32 %v3369, %v3481
    %v3483 = vpop.f32.mrb[0].mxu0
    %v3484 = vadd.f32 %v3371, %v3483
    %3485 = vmatprep.mubr.bf16.mxu0 %v1041
    %3486 = vmatmul.mubr.bf16.gmra.mrb[0].mxu0 %v1040
    %v3487 = vpop.f32.mrb[0].mxu0
    %v3488 = vadd.f32 %v3375, %v3487
    %v3489 = vpop.f32.mrb[0].mxu0
    %v3490 = vadd.f32 %v3377, %v3489
    %v3491 = vpop.f32.mrb[0].mxu0
    %v3492 = vadd.f32 %v3379, %v3491
    %v3493 = vpop.f32.mrb[0].mxu0
    %v3494 = vadd.f32 %v3381, %v3493
    %3495 = vmatprep.mubr.bf16.mxu0 %v1049
    %3496 = vmatmul.mubr.bf16.gmra.mrb[0].mxu0 %v1048
    %v3497 = vpop.f32.mrb[0].mxu0
    %v3498 = vadd.f32 %v3385, %v3497
    %v3499 = vpop.f32.mrb[0].mxu0
    %v3500 = vadd.f32 %v3387, %v3499
    %v3501 = vpop.f32.mrb[0].mxu0
    %v3502 = vadd.f32 %v3389, %v3501
    %v3503 = vpop.f32.mrb[0].mxu0
    %v3504 = vadd.f32 %v3391, %v3503
    %3505 = vmatprep.mubr.bf16.mxu0 %v1057
    %3506 = vmatmul.mubr.bf16.gmra.mrb[0].mxu0 %v1056
    %v3507 = vpop.f32.mrb[0].mxu0
    %v3508 = vadd.f32 %v3395, %v3507
    %v3509 = vpop.f32.mrb[0].mxu0
    %v3510 = vadd.f32 %v3397, %v3509
    %v3511 = vpop.f32.mrb[0].mxu0
    %v3512 = vadd.f32 %v3399, %v3511
    %v3513 = vpop.f32.mrb[0].mxu0
    %v3514 = vadd.f32 %v3401, %v3513
    %3515 = vmatprep.mubr.bf16.mxu0 %v1065
    %3516 = vmatmul.mubr.bf16.gmra.mrb[0].mxu0 %v1064
    %v3517 = vpop.f32.mrb[0].mxu0
    %v3518 = vadd.f32 %v3405, %v3517
    %v3519 = vpop.f32.mrb[0].mxu0
    %v3520 = vadd.f32 %v3407, %v3519
    %v3521 = vpop.f32.mrb[0].mxu0
    %v3522 = vadd.f32 %v3409, %v3521
    %v3523 = vpop.f32.mrb[0].mxu0
    %v3524 = vadd.f32 %v3411, %v3523
    %3525 = vmatprep.mubr.bf16.mxu0 %v1073
    %3526 = vmatmul.mubr.bf16.gmra.mrb[0].mxu0 %v1072
    %v3527 = vpop.f32.mrb[0].mxu0
    %v3528 = vadd.f32 %v3415, %v3527
    %v3529 = vpop.f32.mrb[0].mxu0
    %v3530 = vadd.f32 %v3417, %v3529
    %v3531 = vpop.f32.mrb[0].mxu0
    %v3532 = vadd.f32 %v3419, %v3531
    %v3533 = vpop.f32.mrb[0].mxu0
    %v3534 = vadd.f32 %v3421, %v3533
    %3535 = vdwg.mxu0
    %v3536 = vmax.f32 %v3006, 0.0
    %v3537 = vmax.f32 %v3008, 0.0
    %v3538 = vmax.f32 %v3458, 0.0
    %v3539 = vmax.f32 %v3460, 0.0
    %v3540 = vmax.f32 %v3010, 0.0
    %v3541 = vmax.f32 %v3012, 0.0
    %v3542 = vmax.f32 %v3462, 0.0
    %v3543 = vmax.f32 %v3464, 0.0
    %v3544 = vmax.f32 %v3016, 0.0
    %v3545 = vmax.f32 %v3018, 0.0
    %v3546 = vmax.f32 %v3468, 0.0
    %v3547 = vmax.f32 %v3470, 0.0
    %v3548 = vmax.f32 %v3020, 0.0
    %v3549 = vmax.f32 %v3022, 0.0
    %v3550 = vmax.f32 %v3472, 0.0
    %v3551 = vmax.f32 %v3474, 0.0
    %v3552 = vmax.f32 %v3026, 0.0
    %v3553 = vmax.f32 %v3028, 0.0
    %v3554 = vmax.f32 %v3478, 0.0
    %v3555 = vmax.f32 %v3480, 0.0
    %v3556 = vmax.f32 %v3030, 0.0
    %v3557 = vmax.f32 %v3032, 0.0
    %v3558 = vmax.f32 %v3482, 0.0
    %v3559 = vmax.f32 %v3484, 0.0
    %v3560 = vmax.f32 %v3036, 0.0
    %v3561 = vmax.f32 %v3038, 0.0
    %v3562 = vmax.f32 %v3488, 0.0
    %v3563 = vmax.f32 %v3490, 0.0
    %v3564 = vmax.f32 %v3040, 0.0
    %v3565 = vmax.f32 %v3042, 0.0
    %v3566 = vmax.f32 %v3492, 0.0
    %v3567 = vmax.f32 %v3494, 0.0
    %v3568 = vmax.f32 %v3046, 0.0
    %v3569 = vmax.f32 %v3048, 0.0
    %v3570 = vmax.f32 %v3498, 0.0
    %v3571 = vmax.f32 %v3500, 0.0
    %v3572 = vmax.f32 %v3050, 0.0
    %v3573 = vmax.f32 %v3052, 0.0
    %v3574 = vmax.f32 %v3502, 0.0
    %v3575 = vmax.f32 %v3504, 0.0
    %v3576 = vmax.f32 %v3056, 0.0
    %v3577 = vmax.f32 %v3058, 0.0
    %v3578 = vmax.f32 %v3508, 0.0
    %v3579 = vmax.f32 %v3510, 0.0
    %v3580 = vmax.f32 %v3060, 0.0
    %v3581 = vmax.f32 %v3062, 0.0
    %v3582 = vmax.f32 %v3512, 0.0
    %v3583 = vmax.f32 %v3514, 0.0
    %v3584 = vmax.f32 %v3066, 0.0
    %v3585 = vmax.f32 %v3068, 0.0
    %v3586 = vmax.f32 %v3518, 0.0
    %v3587 = vmax.f32 %v3520, 0.0
    %v3588 = vmax.f32 %v3070, 0.0
    %v3589 = vmax.f32 %v3072, 0.0
    %v3590 = vmax.f32 %v3522, 0.0
    %v3591 = vmax.f32 %v3524, 0.0
    %v3592 = vmax.f32 %v3076, 0.0
    %v3593 = vmax.f32 %v3078, 0.0
    %v3594 = vmax.f32 %v3528, 0.0
    %v3595 = vmax.f32 %v3530, 0.0
    %v3596 = vmax.f32 %v3080, 0.0
    %v3597 = vmax.f32 %v3082, 0.0
    %v3598 = vmax.f32 %v3532, 0.0
    %v3599 = vmax.f32 %v3534, 0.0
    %s3600 = sadd.s32 %s107, 343
    %v3601 = vlaneseq
    %v3602 = vshrl.u32 %v3601, 7
    %v3603 = vadd.s32 %v3602, 8
    %v3604 = vadd.s32 %v3602, 16
    %v3605 = vadd.s32 %v3602, 24
    %v3606 = vadd.s32 %v3602, 32
    %v3607 = vadd.s32 %v3602, 40
    %v3608 = vadd.s32 %v3602, 48
    %v3609 = vadd.s32 %v3602, 56
    %v3610 = vadd.s32 %v3602, 64
    %v3611 = vadd.s32 %v3602, 72
    %v3612 = vadd.s32 %v3602, 80
    %v3613 = vadd.s32 %v3602, 88
    %v3614 = vadd.s32 %v3602, 96
    %v3615 = vadd.s32 %v3602, 104
    %v3616 = vadd.s32 %v3602, 112
    %v3617 = vadd.s32 %v3602, 120
    %v3618 = vlaneseq
    %v3619 = vand.u32 %v3618, 127
    %v3620 = vadd.s32 %v3619, 128
    %v3621 = vadd.s32 %v3619, 256
    %v3622 = vadd.s32 %v3619, 384
    %v3623 = vmul.u32 %v3602, 512
    %v3624 = vmul.u32 %v3603, 512
    %v3625 = vmul.u32 %v3604, 512
    %v3626 = vmul.u32 %v3605, 512
    %v3627 = vmul.u32 %v3606, 512
    %v3628 = vmul.u32 %v3607, 512
    %v3629 = vmul.u32 %v3608, 512
    %v3630 = vmul.u32 %v3609, 512
    %v3631 = vmul.u32 %v3610, 512
    %v3632 = vmul.u32 %v3611, 512
    %v3633 = vmul.u32 %v3612, 512
    %v3634 = vmul.u32 %v3613, 512
    %v3635 = vmul.u32 %v3614, 512
    %v3636 = vmul.u32 %v3615, 512
    %v3637 = vmul.u32 %v3616, 512
    %v3638 = vmul.u32 %v3617, 512
    %v3639 = vadd.s32 %v3623, %v3619
    %v3640 = vadd.s32 %v3623, %v3620
    %v3641 = vadd.s32 %v3623, %v3621
    %v3642 = vadd.s32 %v3623, %v3622
    %v3643 = vadd.s32 %v3624, %v3619
    %v3644 = vadd.s32 %v3624, %v3620
    %v3645 = vadd.s32 %v3624, %v3621
    %v3646 = vadd.s32 %v3624, %v3622
    %v3647 = vadd.s32 %v3625, %v3619
    %v3648 = vadd.s32 %v3625, %v3620
    %v3649 = vadd.s32 %v3625, %v3621
    %v3650 = vadd.s32 %v3625, %v3622
    %v3651 = vadd.s32 %v3626, %v3619
    %v3652 = vadd.s32 %v3626, %v3620
    %v3653 = vadd.s32 %v3626, %v3621
    %v3654 = vadd.s32 %v3626, %v3622
    %v3655 = vadd.s32 %v3627, %v3619
    %v3656 = vadd.s32 %v3627, %v3620
    %v3657 = vadd.s32 %v3627, %v3621
    %v3658 = vadd.s32 %v3627, %v3622
    %v3659 = vadd.s32 %v3628, %v3619
    %v3660 = vadd.s32 %v3628, %v3620
    %v3661 = vadd.s32 %v3628, %v3621
    %v3662 = vadd.s32 %v3628, %v3622
    %v3663 = vadd.s32 %v3629, %v3619
    %v3664 = vadd.s32 %v3629, %v3620
    %v3665 = vadd.s32 %v3629, %v3621
    %v3666 = vadd.s32 %v3629, %v3622
    %v3667 = vadd.s32 %v3630, %v3619
    %v3668 = vadd.s32 %v3630, %v3620
    %v3669 = vadd.s32 %v3630, %v3621
    %v3670 = vadd.s32 %v3630, %v3622
    %v3671 = vadd.s32 %v3631, %v3619
    %v3672 = vadd.s32 %v3631, %v3620
    %v3673 = vadd.s32 %v3631, %v3621
    %v3674 = vadd.s32 %v3631, %v3622
    %v3675 = vadd.s32 %v3632, %v3619
    %v3676 = vadd.s32 %v3632, %v3620
    %v3677 = vadd.s32 %v3632, %v3621
    %v3678 = vadd.s32 %v3632, %v3622
    %v3679 = vadd.s32 %v3633, %v3619
    %v3680 = vadd.s32 %v3633, %v3620
    %v3681 = vadd.s32 %v3633, %v3621
    %v3682 = vadd.s32 %v3633, %v3622
    %v3683 = vadd.s32 %v3634, %v3619
    %v3684 = vadd.s32 %v3634, %v3620
    %v3685 = vadd.s32 %v3634, %v3621
    %v3686 = vadd.s32 %v3634, %v3622
    %v3687 = vadd.s32 %v3635, %v3619
    %v3688 = vadd.s32 %v3635, %v3620
    %v3689 = vadd.s32 %v3635, %v3621
    %v3690 = vadd.s32 %v3635, %v3622
    %v3691 = vadd.s32 %v3636, %v3619
    %v3692 = vadd.s32 %v3636, %v3620
    %v3693 = vadd.s32 %v3636, %v3621
    %v3694 = vadd.s32 %v3636, %v3622
    %v3695 = vadd.s32 %v3637, %v3619
    %v3696 = vadd.s32 %v3637, %v3620
    %v3697 = vadd.s32 %v3637, %v3621
    %v3698 = vadd.s32 %v3637, %v3622
    %v3699 = vadd.s32 %v3638, %v3619
    %v3700 = vadd.s32 %v3638, %v3620
    %v3701 = vadd.s32 %v3638, %v3621
    %v3702 = vadd.s32 %v3638, %v3622
    %v3703 = vstv %s3600
    %v3704 = vadd.s32 %v3639, %v3703
    %v3705 = vadd.s32 %v3640, %v3703
    %v3706 = vadd.s32 %v3641, %v3703
    %v3707 = vadd.s32 %v3642, %v3703
    %v3708 = vadd.s32 %v3643, %v3703
    %v3709 = vadd.s32 %v3644, %v3703
    %v3710 = vadd.s32 %v3645, %v3703
    %v3711 = vadd.s32 %v3646, %v3703
    %v3712 = vadd.s32 %v3647, %v3703
    %v3713 = vadd.s32 %v3648, %v3703
    %v3714 = vadd.s32 %v3649, %v3703
    %v3715 = vadd.s32 %v3650, %v3703
    %v3716 = vadd.s32 %v3651, %v3703
    %v3717 = vadd.s32 %v3652, %v3703
    %v3718 = vadd.s32 %v3653, %v3703
    %v3719 = vadd.s32 %v3654, %v3703
    %v3720 = vadd.s32 %v3655, %v3703
    %v3721 = vadd.s32 %v3656, %v3703
    %v3722 = vadd.s32 %v3657, %v3703
    %v3723 = vadd.s32 %v3658, %v3703
    %v3724 = vadd.s32 %v3659, %v3703
    %v3725 = vadd.s32 %v3660, %v3703
    %v3726 = vadd.s32 %v3661, %v3703
    %v3727 = vadd.s32 %v3662, %v3703
    %v3728 = vadd.s32 %v3663, %v3703
    %v3729 = vadd.s32 %v3664, %v3703
    %v3730 = vadd.s32 %v3665, %v3703
    %v3731 = vadd.s32 %v3666, %v3703
    %v3732 = vadd.s32 %v3667, %v3703
    %v3733 = vadd.s32 %v3668, %v3703
    %v3734 = vadd.s32 %v3669, %v3703
    %v3735 = vadd.s32 %v3670, %v3703
    %v3736 = vadd.s32 %v3671, %v3703
    %v3737 = vadd.s32 %v3672, %v3703
    %v3738 = vadd.s32 %v3673, %v3703
    %v3739 = vadd.s32 %v3674, %v3703
    %v3740 = vadd.s32 %v3675, %v3703
    %v3741 = vadd.s32 %v3676, %v3703
    %v3742 = vadd.s32 %v3677, %v3703
    %v3743 = vadd.s32 %v3678, %v3703
    %v3744 = vadd.s32 %v3679, %v3703
    %v3745 = vadd.s32 %v3680, %v3703
    %v3746 = vadd.s32 %v3681, %v3703
    %v3747 = vadd.s32 %v3682, %v3703
    %v3748 = vadd.s32 %v3683, %v3703
    %v3749 = vadd.s32 %v3684, %v3703
    %v3750 = vadd.s32 %v3685, %v3703
    %v3751 = vadd.s32 %v3686, %v3703
    %v3752 = vadd.s32 %v3687, %v3703
    %v3753 = vadd.s32 %v3688, %v3703
    %v3754 = vadd.s32 %v3689, %v3703
    %v3755 = vadd.s32 %v3690, %v3703
    %v3756 = vadd.s32 %v3691, %v3703
    %v3757 = vadd.s32 %v3692, %v3703
    %v3758 = vadd.s32 %v3693, %v3703
    %v3759 = vadd.s32 %v3694, %v3703
    %v3760 = vadd.s32 %v3695, %v3703
    %v3761 = vadd.s32 %v3696, %v3703
    %v3762 = vadd.s32 %v3697, %v3703
    %v3763 = vadd.s32 %v3698, %v3703
    %v3764 = vadd.s32 %v3699, %v3703
    %v3765 = vadd.s32 %v3700, %v3703
    %v3766 = vadd.s32 %v3701, %v3703
    %v3767 = vadd.s32 %v3702, %v3703
    %v3768 = vshra.s32 %v3704, 16
    %v3769 = vshra.s32 %v3705, 16
    %v3770 = vshra.s32 %v3706, 16
    %v3771 = vshra.s32 %v3707, 16
    %v3772 = vshra.s32 %v3708, 16
    %v3773 = vshra.s32 %v3709, 16
    %v3774 = vshra.s32 %v3710, 16
    %v3775 = vshra.s32 %v3711, 16
    %v3776 = vshra.s32 %v3712, 16
    %v3777 = vshra.s32 %v3713, 16
    %v3778 = vshra.s32 %v3714, 16
    %v3779 = vshra.s32 %v3715, 16
    %v3780 = vshra.s32 %v3716, 16
    %v3781 = vshra.s32 %v3717, 16
    %v3782 = vshra.s32 %v3718, 16
    %v3783 = vshra.s32 %v3719, 16
    %v3784 = vshra.s32 %v3720, 16
    %v3785 = vshra.s32 %v3721, 16
    %v3786 = vshra.s32 %v3722, 16
    %v3787 = vshra.s32 %v3723, 16
    %v3788 = vshra.s32 %v3724, 16
    %v3789 = vshra.s32 %v3725, 16
    %v3790 = vshra.s32 %v3726, 16
    %v3791 = vshra.s32 %v3727, 16
    %v3792 = vshra.s32 %v3728, 16
    %v3793 = vshra.s32 %v3729, 16
    %v3794 = vshra.s32 %v3730, 16
    %v3795 = vshra.s32 %v3731, 16
    %v3796 = vshra.s32 %v3732, 16
    %v3797 = vshra.s32 %v3733, 16
    %v3798 = vshra.s32 %v3734, 16
    %v3799 = vshra.s32 %v3735, 16
    %v3800 = vshra.s32 %v3736, 16
    %v3801 = vshra.s32 %v3737, 16
    %v3802 = vshra.s32 %v3738, 16
    %v3803 = vshra.s32 %v3739, 16
    %v3804 = vshra.s32 %v3740, 16
    %v3805 = vshra.s32 %v3741, 16
    %v3806 = vshra.s32 %v3742, 16
    %v3807 = vshra.s32 %v3743, 16
    %v3808 = vshra.s32 %v3744, 16
    %v3809 = vshra.s32 %v3745, 16
    %v3810 = vshra.s32 %v3746, 16
    %v3811 = vshra.s32 %v3747, 16
    %v3812 = vshra.s32 %v3748, 16
    %v3813 = vshra.s32 %v3749, 16
    %v3814 = vshra.s32 %v3750, 16
    %v3815 = vshra.s32 %v3751, 16
    %v3816 = vshra.s32 %v3752, 16
    %v3817 = vshra.s32 %v3753, 16
    %v3818 = vshra.s32 %v3754, 16
    %v3819 = vshra.s32 %v3755, 16
    %v3820 = vshra.s32 %v3756, 16
    %v3821 = vshra.s32 %v3757, 16
    %v3822 = vshra.s32 %v3758, 16
    %v3823 = vshra.s32 %v3759, 16
    %v3824 = vshra.s32 %v3760, 16
    %v3825 = vshra.s32 %v3761, 16
    %v3826 = vshra.s32 %v3762, 16
    %v3827 = vshra.s32 %v3763, 16
    %v3828 = vshra.s32 %v3764, 16
    %v3829 = vshra.s32 %v3765, 16
    %v3830 = vshra.s32 %v3766, 16
    %v3831 = vshra.s32 %v3767, 16
    %v3832 = vxor.u32 %v3768, %v3704
    %v3833 = vxor.u32 %v3769, %v3705
    %v3834 = vxor.u32 %v3770, %v3706
    %v3835 = vxor.u32 %v3771, %v3707
    %v3836 = vxor.u32 %v3772, %v3708
    %v3837 = vxor.u32 %v3773, %v3709
    %v3838 = vxor.u32 %v3774, %v3710
    %v3839 = vxor.u32 %v3775, %v3711
    %v3840 = vxor.u32 %v3776, %v3712
    %v3841 = vxor.u32 %v3777, %v3713
    %v3842 = vxor.u32 %v3778, %v3714
    %v3843 = vxor.u32 %v3779, %v3715
    %v3844 = vxor.u32 %v3780, %v3716
    %v3845 = vxor.u32 %v3781, %v3717
    %v3846 = vxor.u32 %v3782, %v3718
    %v3847 = vxor.u32 %v3783, %v3719
    %v3848 = vxor.u32 %v3784, %v3720
    %v3849 = vxor.u32 %v3785, %v3721
    %v3850 = vxor.u32 %v3786, %v3722
    %v3851 = vxor.u32 %v3787, %v3723
    %v3852 = vxor.u32 %v3788, %v3724
    %v3853 = vxor.u32 %v3789, %v3725
    %v3854 = vxor.u32 %v3790, %v3726
    %v3855 = vxor.u32 %v3791, %v3727
    %v3856 = vxor.u32 %v3792, %v3728
    %v3857 = vxor.u32 %v3793, %v3729
    %v3858 = vxor.u32 %v3794, %v3730
    %v3859 = vxor.u32 %v3795, %v3731
    %v3860 = vxor.u32 %v3796, %v3732
    %v3861 = vxor.u32 %v3797, %v3733
    %v3862 = vxor.u32 %v3798, %v3734
    %v3863 = vxor.u32 %v3799, %v3735
    %v3864 = vxor.u32 %v3800, %v3736
    %v3865 = vxor.u32 %v3801, %v3737
    %v3866 = vxor.u32 %v3802, %v3738
    %v3867 = vxor.u32 %v3803, %v3739
    %v3868 = vxor.u32 %v3804, %v3740
    %v3869 = vxor.u32 %v3805, %v3741
    %v3870 = vxor.u32 %v3806, %v3742
    %v3871 = vxor.u32 %v3807, %v3743
    %v3872 = vxor.u32 %v3808, %v3744
    %v3873 = vxor.u32 %v3809, %v3745
    %v3874 = vxor.u32 %v3810, %v3746
    %v3875 = vxor.u32 %v3811, %v3747
    %v3876 = vxor.u32 %v3812, %v3748
    %v3877 = vxor.u32 %v3813, %v3749
    %v3878 = vxor.u32 %v3814, %v3750
    %v3879 = vxor.u32 %v3815, %v3751
    %v3880 = vxor.u32 %v3816, %v3752
    %v3881 = vxor.u32 %v3817, %v3753
    %v3882 = vxor.u32 %v3818, %v3754
    %v3883 = vxor.u32 %v3819, %v3755
    %v3884 = vxor.u32 %v3820, %v3756
    %v3885 = vxor.u32 %v3821, %v3757
    %v3886 = vxor.u32 %v3822, %v3758
    %v3887 = vxor.u32 %v3823, %v3759
    %v3888 = vxor.u32 %v3824, %v3760
    %v3889 = vxor.u32 %v3825, %v3761
    %v3890 = vxor.u32 %v3826, %v3762
    %v3891 = vxor.u32 %v3827, %v3763
    %v3892 = vxor.u32 %v3828, %v3764
    %v3893 = vxor.u32 %v3829, %v3765
    %v3894 = vxor.u32 %v3830, %v3766
    %v3895 = vxor.u32 %v3831, %v3767
    %v3896 = vmul.u32 %v3832, 73244475
    %v3897 = vmul.u32 %v3833, 73244475
    %v3898 = vmul.u32 %v3834, 73244475
    %v3899 = vmul.u32 %v3835, 73244475
    %v3900 = vmul.u32 %v3836, 73244475
    %v3901 = vmul.u32 %v3837, 73244475
    %v3902 = vmul.u32 %v3838, 73244475
    %v3903 = vmul.u32 %v3839, 73244475
    %v3904 = vmul.u32 %v3840, 73244475
    %v3905 = vmul.u32 %v3841, 73244475
    %v3906 = vmul.u32 %v3842, 73244475
    %v3907 = vmul.u32 %v3843, 73244475
    %v3908 = vmul.u32 %v3844, 73244475
    %v3909 = vmul.u32 %v3845, 73244475
    %v3910 = vmul.u32 %v3846, 73244475
    %v3911 = vmul.u32 %v3847, 73244475
    %v3912 = vmul.u32 %v3848, 73244475
    %v3913 = vmul.u32 %v3849, 73244475
    %v3914 = vmul.u32 %v3850, 73244475
    %v3915 = vmul.u32 %v3851, 73244475
    %v3916 = vmul.u32 %v3852, 73244475
    %v3917 = vmul.u32 %v3853, 73244475
    %v3918 = vmul.u32 %v3854, 73244475
    %v3919 = vmul.u32 %v3855, 73244475
    %v3920 = vmul.u32 %v3856, 73244475
    %v3921 = vmul.u32 %v3857, 73244475
    %v3922 = vmul.u32 %v3858, 73244475
    %v3923 = vmul.u32 %v3859, 73244475
    %v3924 = vmul.u32 %v3860, 73244475
    %v3925 = vmul.u32 %v3861, 73244475
    %v3926 = vmul.u32 %v3862, 73244475
    %v3927 = vmul.u32 %v3863, 73244475
    %v3928 = vmul.u32 %v3864, 73244475
    %v3929 = vmul.u32 %v3865, 73244475
    %v3930 = vmul.u32 %v3866, 73244475
    %v3931 = vmul.u32 %v3867, 73244475
    %v3932 = vmul.u32 %v3868, 73244475
    %v3933 = vmul.u32 %v3869, 73244475
    %v3934 = vmul.u32 %v3870, 73244475
    %v3935 = vmul.u32 %v3871, 73244475
    %v3936 = vmul.u32 %v3872, 73244475
    %v3937 = vmul.u32 %v3873, 73244475
    %v3938 = vmul.u32 %v3874, 73244475
    %v3939 = vmul.u32 %v3875, 73244475
    %v3940 = vmul.u32 %v3876, 73244475
    %v3941 = vmul.u32 %v3877, 73244475
    %v3942 = vmul.u32 %v3878, 73244475
    %v3943 = vmul.u32 %v3879, 73244475
    %v3944 = vmul.u32 %v3880, 73244475
    %v3945 = vmul.u32 %v3881, 73244475
    %v3946 = vmul.u32 %v3882, 73244475
    %v3947 = vmul.u32 %v3883, 73244475
    %v3948 = vmul.u32 %v3884, 73244475
    %v3949 = vmul.u32 %v3885, 73244475
    %v3950 = vmul.u32 %v3886, 73244475
    %v3951 = vmul.u32 %v3887, 73244475
    %v3952 = vmul.u32 %v3888, 73244475
    %v3953 = vmul.u32 %v3889, 73244475
    %v3954 = vmul.u32 %v3890, 73244475
    %v3955 = vmul.u32 %v3891, 73244475
    %v3956 = vmul.u32 %v3892, 73244475
    %v3957 = vmul.u32 %v3893, 73244475
    %v3958 = vmul.u32 %v3894, 73244475
    %v3959 = vmul.u32 %v3895, 73244475
    %v3960 = vshra.s32 %v3896, 16
    %v3961 = vshra.s32 %v3897, 16
    %v3962 = vshra.s32 %v3898, 16
    %v3963 = vshra.s32 %v3899, 16
    %v3964 = vshra.s32 %v3900, 16
    %v3965 = vshra.s32 %v3901, 16
    %v3966 = vshra.s32 %v3902, 16
    %v3967 = vshra.s32 %v3903, 16
    %v3968 = vshra.s32 %v3904, 16
    %v3969 = vshra.s32 %v3905, 16
    %v3970 = vshra.s32 %v3906, 16
    %v3971 = vshra.s32 %v3907, 16
    %v3972 = vshra.s32 %v3908, 16
    %v3973 = vshra.s32 %v3909, 16
    %v3974 = vshra.s32 %v3910, 16
    %v3975 = vshra.s32 %v3911, 16
    %v3976 = vshra.s32 %v3912, 16
    %v3977 = vshra.s32 %v3913, 16
    %v3978 = vshra.s32 %v3914, 16
    %v3979 = vshra.s32 %v3915, 16
    %v3980 = vshra.s32 %v3916, 16
    %v3981 = vshra.s32 %v3917, 16
    %v3982 = vshra.s32 %v3918, 16
    %v3983 = vshra.s32 %v3919, 16
    %v3984 = vshra.s32 %v3920, 16
    %v3985 = vshra.s32 %v3921, 16
    %v3986 = vshra.s32 %v3922, 16
    %v3987 = vshra.s32 %v3923, 16
    %v3988 = vshra.s32 %v3924, 16
    %v3989 = vshra.s32 %v3925, 16
    %v3990 = vshra.s32 %v3926, 16
    %v3991 = vshra.s32 %v3927, 16
    %v3992 = vshra.s32 %v3928, 16
    %v3993 = vshra.s32 %v3929, 16
    %v3994 = vshra.s32 %v3930, 16
    %v3995 = vshra.s32 %v3931, 16
    %v3996 = vshra.s32 %v3932, 16
    %v3997 = vshra.s32 %v3933, 16
    %v3998 = vshra.s32 %v3934, 16
    %v3999 = vshra.s32 %v3935, 16
    %v4000 = vshra.s32 %v3936, 16
    %v4001 = vshra.s32 %v3937, 16
    %v4002 = vshra.s32 %v3938, 16
    %v4003 = vshra.s32 %v3939, 16
    %v4004 = vshra.s32 %v3940, 16
    %v4005 = vshra.s32 %v3941, 16
    %v4006 = vshra.s32 %v3942, 16
    %v4007 = vshra.s32 %v3943, 16
    %v4008 = vshra.s32 %v3944, 16
    %v4009 = vshra.s32 %v3945, 16
    %v4010 = vshra.s32 %v3946, 16
    %v4011 = vshra.s32 %v3947, 16
    %v4012 = vshra.s32 %v3948, 16
    %v4013 = vshra.s32 %v3949, 16
    %v4014 = vshra.s32 %v3950, 16
    %v4015 = vshra.s32 %v3951, 16
    %v4016 = vshra.s32 %v3952, 16
    %v4017 = vshra.s32 %v3953, 16
    %v4018 = vshra.s32 %v3954, 16
    %v4019 = vshra.s32 %v3955, 16
    %v4020 = vshra.s32 %v3956, 16
    %v4021 = vshra.s32 %v3957, 16
    %v4022 = vshra.s32 %v3958, 16
    %v4023 = vshra.s32 %v3959, 16
    %v4024 = vxor.u32 %v3960, %v3896
    %v4025 = vxor.u32 %v3961, %v3897
    %v4026 = vxor.u32 %v3962, %v3898
    %v4027 = vxor.u32 %v3963, %v3899
    %v4028 = vxor.u32 %v3964, %v3900
    %v4029 = vxor.u32 %v3965, %v3901
    %v4030 = vxor.u32 %v3966, %v3902
    %v4031 = vxor.u32 %v3967, %v3903
    %v4032 = vxor.u32 %v3968, %v3904
    %v4033 = vxor.u32 %v3969, %v3905
    %v4034 = vxor.u32 %v3970, %v3906
    %v4035 = vxor.u32 %v3971, %v3907
    %v4036 = vxor.u32 %v3972, %v3908
    %v4037 = vxor.u32 %v3973, %v3909
    %v4038 = vxor.u32 %v3974, %v3910
    %v4039 = vxor.u32 %v3975, %v3911
    %v4040 = vxor.u32 %v3976, %v3912
    %v4041 = vxor.u32 %v3977, %v3913
    %v4042 = vxor.u32 %v3978, %v3914
    %v4043 = vxor.u32 %v3979, %v3915
    %v4044 = vxor.u32 %v3980, %v3916
    %v4045 = vxor.u32 %v3981, %v3917
    %v4046 = vxor.u32 %v3982, %v3918
    %v4047 = vxor.u32 %v3983, %v3919
    %v4048 = vxor.u32 %v3984, %v3920
    %v4049 = vxor.u32 %v3985, %v3921
    %v4050 = vxor.u32 %v3986, %v3922
    %v4051 = vxor.u32 %v3987, %v3923
    %v4052 = vxor.u32 %v3988, %v3924
    %v4053 = vxor.u32 %v3989, %v3925
    %v4054 = vxor.u32 %v3990, %v3926
    %v4055 = vxor.u32 %v3991, %v3927
    %v4056 = vxor.u32 %v3992, %v3928
    %v4057 = vxor.u32 %v3993, %v3929
    %v4058 = vxor.u32 %v3994, %v3930
    %v4059 = vxor.u32 %v3995, %v3931
    %v4060 = vxor.u32 %v3996, %v3932
    %v4061 = vxor.u32 %v3997, %v3933
    %v4062 = vxor.u32 %v3998, %v3934
    %v4063 = vxor.u32 %v3999, %v3935
    %v4064 = vxor.u32 %v4000, %v3936
    %v4065 = vxor.u32 %v4001, %v3937
    %v4066 = vxor.u32 %v4002, %v3938
    %v4067 = vxor.u32 %v4003, %v3939
    %v4068 = vxor.u32 %v4004, %v3940
    %v4069 = vxor.u32 %v4005, %v3941
    %v4070 = vxor.u32 %v4006, %v3942
    %v4071 = vxor.u32 %v4007, %v3943
    %v4072 = vxor.u32 %v4008, %v3944
    %v4073 = vxor.u32 %v4009, %v3945
    %v4074 = vxor.u32 %v4010, %v3946
    %v4075 = vxor.u32 %v4011, %v3947
    %v4076 = vxor.u32 %v4012, %v3948
    %v4077 = vxor.u32 %v4013, %v3949
    %v4078 = vxor.u32 %v4014, %v3950
    %v4079 = vxor.u32 %v4015, %v3951
    %v4080 = vxor.u32 %v4016, %v3952
    %v4081 = vxor.u32 %v4017, %v3953
    %v4082 = vxor.u32 %v4018, %v3954
    %v4083 = vxor.u32 %v4019, %v3955
    %v4084 = vxor.u32 %v4020, %v3956
    %v4085 = vxor.u32 %v4021, %v3957
    %v4086 = vxor.u32 %v4022, %v3958
    %v4087 = vxor.u32 %v4023, %v3959
    %v4088 = vmul.u32 %v4024, 73244475
    %v4089 = vmul.u32 %v4025, 73244475
    %v4090 = vmul.u32 %v4026, 73244475
    %v4091 = vmul.u32 %v4027, 73244475
    %v4092 = vmul.u32 %v4028, 73244475
    %v4093 = vmul.u32 %v4029, 73244475
    %v4094 = vmul.u32 %v4030, 73244475
    %v4095 = vmul.u32 %v4031, 73244475
    %v4096 = vmul.u32 %v4032, 73244475
    %v4097 = vmul.u32 %v4033, 73244475
    %v4098 = vmul.u32 %v4034, 73244475
    %v4099 = vmul.u32 %v4035, 73244475
    %v4100 = vmul.u32 %v4036, 73244475
    %v4101 = vmul.u32 %v4037, 73244475
    %v4102 = vmul.u32 %v4038, 73244475
    %v4103 = vmul.u32 %v4039, 73244475
    %v4104 = vmul.u32 %v4040, 73244475
    %v4105 = vmul.u32 %v4041, 73244475
    %v4106 = vmul.u32 %v4042, 73244475
    %v4107 = vmul.u32 %v4043, 73244475
    %v4108 = vmul.u32 %v4044, 73244475
    %v4109 = vmul.u32 %v4045, 73244475
    %v4110 = vmul.u32 %v4046, 73244475
    %v4111 = vmul.u32 %v4047, 73244475
    %v4112 = vmul.u32 %v4048, 73244475
    %v4113 = vmul.u32 %v4049, 73244475
    %v4114 = vmul.u32 %v4050, 73244475
    %v4115 = vmul.u32 %v4051, 73244475
    %v4116 = vmul.u32 %v4052, 73244475
    %v4117 = vmul.u32 %v4053, 73244475
    %v4118 = vmul.u32 %v4054, 73244475
    %v4119 = vmul.u32 %v4055, 73244475
    %v4120 = vmul.u32 %v4056, 73244475
    %v4121 = vmul.u32 %v4057, 73244475
    %v4122 = vmul.u32 %v4058, 73244475
    %v4123 = vmul.u32 %v4059, 73244475
    %v4124 = vmul.u32 %v4060, 73244475
    %v4125 = vmul.u32 %v4061, 73244475
    %v4126 = vmul.u32 %v4062, 73244475
    %v4127 = vmul.u32 %v4063, 73244475
    %v4128 = vmul.u32 %v4064, 73244475
    %v4129 = vmul.u32 %v4065, 73244475
    %v4130 = vmul.u32 %v4066, 73244475
    %v4131 = vmul.u32 %v4067, 73244475
    %v4132 = vmul.u32 %v4068, 73244475
    %v4133 = vmul.u32 %v4069, 73244475
    %v4134 = vmul.u32 %v4070, 73244475
    %v4135 = vmul.u32 %v4071, 73244475
    %v4136 = vmul.u32 %v4072, 73244475
    %v4137 = vmul.u32 %v4073, 73244475
    %v4138 = vmul.u32 %v4074, 73244475
    %v4139 = vmul.u32 %v4075, 73244475
    %v4140 = vmul.u32 %v4076, 73244475
    %v4141 = vmul.u32 %v4077, 73244475
    %v4142 = vmul.u32 %v4078, 73244475
    %v4143 = vmul.u32 %v4079, 73244475
    %v4144 = vmul.u32 %v4080, 73244475
    %v4145 = vmul.u32 %v4081, 73244475
    %v4146 = vmul.u32 %v4082, 73244475
    %v4147 = vmul.u32 %v4083, 73244475
    %v4148 = vmul.u32 %v4084, 73244475
    %v4149 = vmul.u32 %v4085, 73244475
    %v4150 = vmul.u32 %v4086, 73244475
    %v4151 = vmul.u32 %v4087, 73244475
    %v4152 = vshra.s32 %v4088, 16
    %v4153 = vshra.s32 %v4089, 16
    %v4154 = vshra.s32 %v4090, 16
    %v4155 = vshra.s32 %v4091, 16
    %v4156 = vshra.s32 %v4092, 16
    %v4157 = vshra.s32 %v4093, 16
    %v4158 = vshra.s32 %v4094, 16
    %v4159 = vshra.s32 %v4095, 16
    %v4160 = vshra.s32 %v4096, 16
    %v4161 = vshra.s32 %v4097, 16
    %v4162 = vshra.s32 %v4098, 16
    %v4163 = vshra.s32 %v4099, 16
    %v4164 = vshra.s32 %v4100, 16
    %v4165 = vshra.s32 %v4101, 16
    %v4166 = vshra.s32 %v4102, 16
    %v4167 = vshra.s32 %v4103, 16
    %v4168 = vshra.s32 %v4104, 16
    %v4169 = vshra.s32 %v4105, 16
    %v4170 = vshra.s32 %v4106, 16
    %v4171 = vshra.s32 %v4107, 16
    %v4172 = vshra.s32 %v4108, 16
    %v4173 = vshra.s32 %v4109, 16
    %v4174 = vshra.s32 %v4110, 16
    %v4175 = vshra.s32 %v4111, 16
    %v4176 = vshra.s32 %v4112, 16
    %v4177 = vshra.s32 %v4113, 16
    %v4178 = vshra.s32 %v4114, 16
    %v4179 = vshra.s32 %v4115, 16
    %v4180 = vshra.s32 %v4116, 16
    %v4181 = vshra.s32 %v4117, 16
    %v4182 = vshra.s32 %v4118, 16
    %v4183 = vshra.s32 %v4119, 16
    %v4184 = vshra.s32 %v4120, 16
    %v4185 = vshra.s32 %v4121, 16
    %v4186 = vshra.s32 %v4122, 16
    %v4187 = vshra.s32 %v4123, 16
    %v4188 = vshra.s32 %v4124, 16
    %v4189 = vshra.s32 %v4125, 16
    %v4190 = vshra.s32 %v4126, 16
    %v4191 = vshra.s32 %v4127, 16
    %v4192 = vshra.s32 %v4128, 16
    %v4193 = vshra.s32 %v4129, 16
    %v4194 = vshra.s32 %v4130, 16
    %v4195 = vshra.s32 %v4131, 16
    %v4196 = vshra.s32 %v4132, 16
    %v4197 = vshra.s32 %v4133, 16
    %v4198 = vshra.s32 %v4134, 16
    %v4199 = vshra.s32 %v4135, 16
    %v4200 = vshra.s32 %v4136, 16
    %v4201 = vshra.s32 %v4137, 16
    %v4202 = vshra.s32 %v4138, 16
    %v4203 = vshra.s32 %v4139, 16
    %v4204 = vshra.s32 %v4140, 16
    %v4205 = vshra.s32 %v4141, 16
    %v4206 = vshra.s32 %v4142, 16
    %v4207 = vshra.s32 %v4143, 16
    %v4208 = vshra.s32 %v4144, 16
    %v4209 = vshra.s32 %v4145, 16
    %v4210 = vshra.s32 %v4146, 16
    %v4211 = vshra.s32 %v4147, 16
    %v4212 = vshra.s32 %v4148, 16
    %v4213 = vshra.s32 %v4149, 16
    %v4214 = vshra.s32 %v4150, 16
    %v4215 = vshra.s32 %v4151, 16
    %v4216 = vxor.u32 %v4152, %v4088
    %v4217 = vxor.u32 %v4153, %v4089
    %v4218 = vxor.u32 %v4154, %v4090
    %v4219 = vxor.u32 %v4155, %v4091
    %v4220 = vxor.u32 %v4156, %v4092
    %v4221 = vxor.u32 %v4157, %v4093
    %v4222 = vxor.u32 %v4158, %v4094
    %v4223 = vxor.u32 %v4159, %v4095
    %v4224 = vxor.u32 %v4160, %v4096
    %v4225 = vxor.u32 %v4161, %v4097
    %v4226 = vxor.u32 %v4162, %v4098
    %v4227 = vxor.u32 %v4163, %v4099
    %v4228 = vxor.u32 %v4164, %v4100
    %v4229 = vxor.u32 %v4165, %v4101
    %v4230 = vxor.u32 %v4166, %v4102
    %v4231 = vxor.u32 %v4167, %v4103
    %v4232 = vxor.u32 %v4168, %v4104
    %v4233 = vxor.u32 %v4169, %v4105
    %v4234 = vxor.u32 %v4170, %v4106
    %v4235 = vxor.u32 %v4171, %v4107
    %v4236 = vxor.u32 %v4172, %v4108
    %v4237 = vxor.u32 %v4173, %v4109
    %v4238 = vxor.u32 %v4174, %v4110
    %v4239 = vxor.u32 %v4175, %v4111
    %v4240 = vxor.u32 %v4176, %v4112
    %v4241 = vxor.u32 %v4177, %v4113
    %v4242 = vxor.u32 %v4178, %v4114
    %v4243 = vxor.u32 %v4179, %v4115
    %v4244 = vxor.u32 %v4180, %v4116
    %v4245 = vxor.u32 %v4181, %v4117
    %v4246 = vxor.u32 %v4182, %v4118
    %v4247 = vxor.u32 %v4183, %v4119
    %v4248 = vxor.u32 %v4184, %v4120
    %v4249 = vxor.u32 %v4185, %v4121
    %v4250 = vxor.u32 %v4186, %v4122
    %v4251 = vxor.u32 %v4187, %v4123
    %v4252 = vxor.u32 %v4188, %v4124
    %v4253 = vxor.u32 %v4189, %v4125
    %v4254 = vxor.u32 %v4190, %v4126
    %v4255 = vxor.u32 %v4191, %v4127
    %v4256 = vxor.u32 %v4192, %v4128
    %v4257 = vxor.u32 %v4193, %v4129
    %v4258 = vxor.u32 %v4194, %v4130
    %v4259 = vxor.u32 %v4195, %v4131
    %v4260 = vxor.u32 %v4196, %v4132
    %v4261 = vxor.u32 %v4197, %v4133
    %v4262 = vxor.u32 %v4198, %v4134
    %v4263 = vxor.u32 %v4199, %v4135
    %v4264 = vxor.u32 %v4200, %v4136
    %v4265 = vxor.u32 %v4201, %v4137
    %v4266 = vxor.u32 %v4202, %v4138
    %v4267 = vxor.u32 %v4203, %v4139
    %v4268 = vxor.u32 %v4204, %v4140
    %v4269 = vxor.u32 %v4205, %v4141
    %v4270 = vxor.u32 %v4206, %v4142
    %v4271 = vxor.u32 %v4207, %v4143
    %v4272 = vxor.u32 %v4208, %v4144
    %v4273 = vxor.u32 %v4209, %v4145
    %v4274 = vxor.u32 %v4210, %v4146
    %v4275 = vxor.u32 %v4211, %v4147
    %v4276 = vxor.u32 %v4212, %v4148
    %v4277 = vxor.u32 %v4213, %v4149
    %v4278 = vxor.u32 %v4214, %v4150
    %v4279 = vxor.u32 %v4215, %v4151
    %v4280 = vand.u32 %v4216, 1
    %v4281 = vand.u32 %v4217, 1
    %v4282 = vand.u32 %v4218, 1
    %v4283 = vand.u32 %v4219, 1
    %v4284 = vand.u32 %v4220, 1
    %v4285 = vand.u32 %v4221, 1
    %v4286 = vand.u32 %v4222, 1
    %v4287 = vand.u32 %v4223, 1
    %v4288 = vand.u32 %v4224, 1
    %v4289 = vand.u32 %v4225, 1
    %v4290 = vand.u32 %v4226, 1
    %v4291 = vand.u32 %v4227, 1
    %v4292 = vand.u32 %v4228, 1
    %v4293 = vand.u32 %v4229, 1
    %v4294 = vand.u32 %v4230, 1
    %v4295 = vand.u32 %v4231, 1
    %v4296 = vand.u32 %v4232, 1
    %v4297 = vand.u32 %v4233, 1
    %v4298 = vand.u32 %v4234, 1
    %v4299 = vand.u32 %v4235, 1
    %v4300 = vand.u32 %v4236, 1
    %v4301 = vand.u32 %v4237, 1
    %v4302 = vand.u32 %v4238, 1
    %v4303 = vand.u32 %v4239, 1
    %v4304 = vand.u32 %v4240, 1
    %v4305 = vand.u32 %v4241, 1
    %v4306 = vand.u32 %v4242, 1
    %v4307 = vand.u32 %v4243, 1
    %v4308 = vand.u32 %v4244, 1
    %v4309 = vand.u32 %v4245, 1
    %v4310 = vand.u32 %v4246, 1
    %v4311 = vand.u32 %v4247, 1
    %v4312 = vand.u32 %v4248, 1
    %v4313 = vand.u32 %v4249, 1
    %v4314 = vand.u32 %v4250, 1
    %v4315 = vand.u32 %v4251, 1
    %v4316 = vand.u32 %v4252, 1
    %v4317 = vand.u32 %v4253, 1
    %v4318 = vand.u32 %v4254, 1
    %v4319 = vand.u32 %v4255, 1
    %v4320 = vand.u32 %v4256, 1
    %v4321 = vand.u32 %v4257, 1
    %v4322 = vand.u32 %v4258, 1
    %v4323 = vand.u32 %v4259, 1
    %v4324 = vand.u32 %v4260, 1
    %v4325 = vand.u32 %v4261, 1
    %v4326 = vand.u32 %v4262, 1
    %v4327 = vand.u32 %v4263, 1
    %v4328 = vand.u32 %v4264, 1
    %v4329 = vand.u32 %v4265, 1
    %v4330 = vand.u32 %v4266, 1
    %v4331 = vand.u32 %v4267, 1
    %v4332 = vand.u32 %v4268, 1
    %v4333 = vand.u32 %v4269, 1
    %v4334 = vand.u32 %v4270, 1
    %v4335 = vand.u32 %v4271, 1
    %v4336 = vand.u32 %v4272, 1
    %v4337 = vand.u32 %v4273, 1
    %v4338 = vand.u32 %v4274, 1
    %v4339 = vand.u32 %v4275, 1
    %v4340 = vand.u32 %v4276, 1
    %v4341 = vand.u32 %v4277, 1
    %v4342 = vand.u32 %v4278, 1
    %v4343 = vand.u32 %v4279, 1
    %vm4344 = vcmp.ne.s32.totalorder %v4280, 0
    %vm4345 = vcmp.ne.s32.totalorder %v4281, 0
    %vm4346 = vcmp.ne.s32.totalorder %v4282, 0
    %vm4347 = vcmp.ne.s32.totalorder %v4283, 0
    %vm4348 = vcmp.ne.s32.totalorder %v4284, 0
    %vm4349 = vcmp.ne.s32.totalorder %v4285, 0
    %vm4350 = vcmp.ne.s32.totalorder %v4286, 0
    %vm4351 = vcmp.ne.s32.totalorder %v4287, 0
    %vm4352 = vcmp.ne.s32.totalorder %v4288, 0
    %vm4353 = vcmp.ne.s32.totalorder %v4289, 0
    %vm4354 = vcmp.ne.s32.totalorder %v4290, 0
    %vm4355 = vcmp.ne.s32.totalorder %v4291, 0
    %vm4356 = vcmp.ne.s32.totalorder %v4292, 0
    %vm4357 = vcmp.ne.s32.totalorder %v4293, 0
    %vm4358 = vcmp.ne.s32.totalorder %v4294, 0
    %vm4359 = vcmp.ne.s32.totalorder %v4295, 0
    %vm4360 = vcmp.ne.s32.totalorder %v4296, 0
    %vm4361 = vcmp.ne.s32.totalorder %v4297, 0
    %vm4362 = vcmp.ne.s32.totalorder %v4298, 0
    %vm4363 = vcmp.ne.s32.totalorder %v4299, 0
    %vm4364 = vcmp.ne.s32.totalorder %v4300, 0
    %vm4365 = vcmp.ne.s32.totalorder %v4301, 0
    %vm4366 = vcmp.ne.s32.totalorder %v4302, 0
    %vm4367 = vcmp.ne.s32.totalorder %v4303, 0
    %vm4368 = vcmp.ne.s32.totalorder %v4304, 0
    %vm4369 = vcmp.ne.s32.totalorder %v4305, 0
    %vm4370 = vcmp.ne.s32.totalorder %v4306, 0
    %vm4371 = vcmp.ne.s32.totalorder %v4307, 0
    %vm4372 = vcmp.ne.s32.totalorder %v4308, 0
    %vm4373 = vcmp.ne.s32.totalorder %v4309, 0
    %vm4374 = vcmp.ne.s32.totalorder %v4310, 0
    %vm4375 = vcmp.ne.s32.totalorder %v4311, 0
    %vm4376 = vcmp.ne.s32.totalorder %v4312, 0
    %vm4377 = vcmp.ne.s32.totalorder %v4313, 0
    %vm4378 = vcmp.ne.s32.totalorder %v4314, 0
    %vm4379 = vcmp.ne.s32.totalorder %v4315, 0
    %vm4380 = vcmp.ne.s32.totalorder %v4316, 0
    %vm4381 = vcmp.ne.s32.totalorder %v4317, 0
    %vm4382 = vcmp.ne.s32.totalorder %v4318, 0
    %vm4383 = vcmp.ne.s32.totalorder %v4319, 0
    %vm4384 = vcmp.ne.s32.totalorder %v4320, 0
    %vm4385 = vcmp.ne.s32.totalorder %v4321, 0
    %vm4386 = vcmp.ne.s32.totalorder %v4322, 0
    %vm4387 = vcmp.ne.s32.totalorder %v4323, 0
    %vm4388 = vcmp.ne.s32.totalorder %v4324, 0
    %vm4389 = vcmp.ne.s32.totalorder %v4325, 0
    %vm4390 = vcmp.ne.s32.totalorder %v4326, 0
    %vm4391 = vcmp.ne.s32.totalorder %v4327, 0
    %vm4392 = vcmp.ne.s32.totalorder %v4328, 0
    %vm4393 = vcmp.ne.s32.totalorder %v4329, 0
    %vm4394 = vcmp.ne.s32.totalorder %v4330, 0
    %vm4395 = vcmp.ne.s32.totalorder %v4331, 0
    %vm4396 = vcmp.ne.s32.totalorder %v4332, 0
    %vm4397 = vcmp.ne.s32.totalorder %v4333, 0
    %vm4398 = vcmp.ne.s32.totalorder %v4334, 0
    %vm4399 = vcmp.ne.s32.totalorder %v4335, 0
    %vm4400 = vcmp.ne.s32.totalorder %v4336, 0
    %vm4401 = vcmp.ne.s32.totalorder %v4337, 0
    %vm4402 = vcmp.ne.s32.totalorder %v4338, 0
    %vm4403 = vcmp.ne.s32.totalorder %v4339, 0
    %vm4404 = vcmp.ne.s32.totalorder %v4340, 0
    %vm4405 = vcmp.ne.s32.totalorder %v4341, 0
    %vm4406 = vcmp.ne.s32.totalorder %v4342, 0
    %vm4407 = vcmp.ne.s32.totalorder %v4343, 0
    %v4408 = vsel %vm4344, 2.0, 0.0
    %v4409 = vsel %vm4345, 2.0, 0.0
    %v4410 = vsel %vm4346, 2.0, 0.0
    %v4411 = vsel %vm4347, 2.0, 0.0
    %v4412 = vsel %vm4348, 2.0, 0.0
    %v4413 = vsel %vm4349, 2.0, 0.0
    %v4414 = vsel %vm4350, 2.0, 0.0
    %v4415 = vsel %vm4351, 2.0, 0.0
    %v4416 = vsel %vm4352, 2.0, 0.0
    %v4417 = vsel %vm4353, 2.0, 0.0
    %v4418 = vsel %vm4354, 2.0, 0.0
    %v4419 = vsel %vm4355, 2.0, 0.0
    %v4420 = vsel %vm4356, 2.0, 0.0
    %v4421 = vsel %vm4357, 2.0, 0.0
    %v4422 = vsel %vm4358, 2.0, 0.0
    %v4423 = vsel %vm4359, 2.0, 0.0
    %v4424 = vsel %vm4360, 2.0, 0.0
    %v4425 = vsel %vm4361, 2.0, 0.0
    %v4426 = vsel %vm4362, 2.0, 0.0
    %v4427 = vsel %vm4363, 2.0, 0.0
    %v4428 = vsel %vm4364, 2.0, 0.0
    %v4429 = vsel %vm4365, 2.0, 0.0
    %v4430 = vsel %vm4366, 2.0, 0.0
    %v4431 = vsel %vm4367, 2.0, 0.0
    %v4432 = vsel %vm4368, 2.0, 0.0
    %v4433 = vsel %vm4369, 2.0, 0.0
    %v4434 = vsel %vm4370, 2.0, 0.0
    %v4435 = vsel %vm4371, 2.0, 0.0
    %v4436 = vsel %vm4372, 2.0, 0.0
    %v4437 = vsel %vm4373, 2.0, 0.0
    %v4438 = vsel %vm4374, 2.0, 0.0
    %v4439 = vsel %vm4375, 2.0, 0.0
    %v4440 = vsel %vm4376, 2.0, 0.0
    %v4441 = vsel %vm4377, 2.0, 0.0
    %v4442 = vsel %vm4378, 2.0, 0.0
    %v4443 = vsel %vm4379, 2.0, 0.0
    %v4444 = vsel %vm4380, 2.0, 0.0
    %v4445 = vsel %vm4381, 2.0, 0.0
    %v4446 = vsel %vm4382, 2.0, 0.0
    %v4447 = vsel %vm4383, 2.0, 0.0
    %v4448 = vsel %vm4384, 2.0, 0.0
    %v4449 = vsel %vm4385, 2.0, 0.0
    %v4450 = vsel %vm4386, 2.0, 0.0
    %v4451 = vsel %vm4387, 2.0, 0.0
    %v4452 = vsel %vm4388, 2.0, 0.0
    %v4453 = vsel %vm4389, 2.0, 0.0
    %v4454 = vsel %vm4390, 2.0, 0.0
    %v4455 = vsel %vm4391, 2.0, 0.0
    %v4456 = vsel %vm4392, 2.0, 0.0
    %v4457 = vsel %vm4393, 2.0, 0.0
    %v4458 = vsel %vm4394, 2.0, 0.0
    %v4459 = vsel %vm4395, 2.0, 0.0
    %v4460 = vsel %vm4396, 2.0, 0.0
    %v4461 = vsel %vm4397, 2.0, 0.0
    %v4462 = vsel %vm4398, 2.0, 0.0
    %v4463 = vsel %vm4399, 2.0, 0.0
    %v4464 = vsel %vm4400, 2.0, 0.0
    %v4465 = vsel %vm4401, 2.0, 0.0
    %v4466 = vsel %vm4402, 2.0, 0.0
    %v4467 = vsel %vm4403, 2.0, 0.0
    %v4468 = vsel %vm4404, 2.0, 0.0
    %v4469 = vsel %vm4405, 2.0, 0.0
    %v4470 = vsel %vm4406, 2.0, 0.0
    %v4471 = vsel %vm4407, 2.0, 0.0
    %v4472 = vmul.f32 %v3536, %v4408
    %v4473 = vmul.f32 %v3537, %v4409
    %v4474 = vmul.f32 %v3538, %v4410
    %v4475 = vmul.f32 %v3539, %v4411
    %v4476 = vmul.f32 %v3540, %v4412
    %v4477 = vmul.f32 %v3541, %v4413
    %v4478 = vmul.f32 %v3542, %v4414
    %v4479 = vmul.f32 %v3543, %v4415
    %v4480 = vmul.f32 %v3544, %v4416
    %v4481 = vmul.f32 %v3545, %v4417
    %v4482 = vmul.f32 %v3546, %v4418
    %v4483 = vmul.f32 %v3547, %v4419
    %v4484 = vmul.f32 %v3548, %v4420
    %v4485 = vmul.f32 %v3549, %v4421
    %v4486 = vmul.f32 %v3550, %v4422
    %v4487 = vmul.f32 %v3551, %v4423
    %v4488 = vmul.f32 %v3552, %v4424
    %v4489 = vmul.f32 %v3553, %v4425
    %v4490 = vmul.f32 %v3554, %v4426
    %v4491 = vmul.f32 %v3555, %v4427
    %v4492 = vmul.f32 %v3556, %v4428
    %v4493 = vmul.f32 %v3557, %v4429
    %v4494 = vmul.f32 %v3558, %v4430
    %v4495 = vmul.f32 %v3559, %v4431
    %v4496 = vmul.f32 %v3560, %v4432
    %v4497 = vmul.f32 %v3561, %v4433
    %v4498 = vmul.f32 %v3562, %v4434
    %v4499 = vmul.f32 %v3563, %v4435
    %v4500 = vmul.f32 %v3564, %v4436
    %v4501 = vmul.f32 %v3565, %v4437
    %v4502 = vmul.f32 %v3566, %v4438
    %v4503 = vmul.f32 %v3567, %v4439
    %v4504 = vmul.f32 %v3568, %v4440
    %v4505 = vmul.f32 %v3569, %v4441
    %v4506 = vmul.f32 %v3570, %v4442
    %v4507 = vmul.f32 %v3571, %v4443
    %v4508 = vmul.f32 %v3572, %v4444
    %v4509 = vmul.f32 %v3573, %v4445
    %v4510 = vmul.f32 %v3574, %v4446
    %v4511 = vmul.f32 %v3575, %v4447
    %v4512 = vmul.f32 %v3576, %v4448
    %v4513 = vmul.f32 %v3577, %v4449
    %v4514 = vmul.f32 %v3578, %v4450
    %v4515 = vmul.f32 %v3579, %v4451
    %v4516 = vmul.f32 %v3580, %v4452
    %v4517 = vmul.f32 %v3581, %v4453
    %v4518 = vmul.f32 %v3582, %v4454
    %v4519 = vmul.f32 %v3583, %v4455
    %v4520 = vmul.f32 %v3584, %v4456
    %v4521 = vmul.f32 %v3585, %v4457
    %v4522 = vmul.f32 %v3586, %v4458
    %v4523 = vmul.f32 %v3587, %v4459
    %v4524 = vmul.f32 %v3588, %v4460
    %v4525 = vmul.f32 %v3589, %v4461
    %v4526 = vmul.f32 %v3590, %v4462
    %v4527 = vmul.f32 %v3591, %v4463
    %v4528 = vmul.f32 %v3592, %v4464
    %v4529 = vmul.f32 %v3593, %v4465
    %v4530 = vmul.f32 %v3594, %v4466
    %v4531 = vmul.f32 %v3595, %v4467
    %v4532 = vmul.f32 %v3596, %v4468
    %v4533 = vmul.f32 %v3597, %v4469
    %v4534 = vmul.f32 %v3598, %v4470
    %v4535 = vmul.f32 %v3599, %v4471
    %v4536 = vpack.c.bf16 %v4476, %v4472
    %v4537 = vpack.c.bf16 %v4477, %v4473
    %v4538 = vpack.c.bf16 %v4478, %v4474
    %v4539 = vpack.c.bf16 %v4479, %v4475
    %v4540 = vpack.c.bf16 %v4484, %v4480
    %v4541 = vpack.c.bf16 %v4485, %v4481
    %v4542 = vpack.c.bf16 %v4486, %v4482
    %v4543 = vpack.c.bf16 %v4487, %v4483
    %v4544 = vpack.c.bf16 %v4492, %v4488
    %v4545 = vpack.c.bf16 %v4493, %v4489
    %v4546 = vpack.c.bf16 %v4494, %v4490
    %v4547 = vpack.c.bf16 %v4495, %v4491
    %v4548 = vpack.c.bf16 %v4500, %v4496
    %v4549 = vpack.c.bf16 %v4501, %v4497
    %v4550 = vpack.c.bf16 %v4502, %v4498
    %v4551 = vpack.c.bf16 %v4503, %v4499
    %v4552 = vpack.c.bf16 %v4508, %v4504
    %v4553 = vpack.c.bf16 %v4509, %v4505
    %v4554 = vpack.c.bf16 %v4510, %v4506
    %v4555 = vpack.c.bf16 %v4511, %v4507
    %v4556 = vpack.c.bf16 %v4516, %v4512
    %v4557 = vpack.c.bf16 %v4517, %v4513
    %v4558 = vpack.c.bf16 %v4518, %v4514
    %v4559 = vpack.c.bf16 %v4519, %v4515
    %v4560 = vpack.c.bf16 %v4524, %v4520
    %v4561 = vpack.c.bf16 %v4525, %v4521
    %v4562 = vpack.c.bf16 %v4526, %v4522
    %v4563 = vpack.c.bf16 %v4527, %v4523
    %v4564 = vpack.c.bf16 %v4532, %v4528
    %v4565 = vpack.c.bf16 %v4533, %v4529
    %v4566 = vpack.c.bf16 %v4534, %v4530
    %v4567 = vpack.c.bf16 %v4535, %v4531
    %v4568 = vld [vmem:[#allocation10] sm:$0xf]
    %v4569 = vld [vmem:[#allocation10 + $0x4] sm:$0xf]
    %v4570 = vld [vmem:[#allocation10 + $0x8] sm:$0xf]
    %v4571 = vld [vmem:[#allocation10 + $0xc] sm:$0xf]
    %v4572 = vld [vmem:[#allocation10 + $0x10] sm:$0xf]
    %v4573 = vld [vmem:[#allocation10 + $0x14] sm:$0xf]
    %v4574 = vld [vmem:[#allocation10 + $0x18] sm:$0xf]
    %v4575 = vld [vmem:[#allocation10 + $0x1c] sm:$0xf]
    %v4576 = vld [vmem:[#allocation10 + $0x20] sm:$0xf]
    %v4577 = vld [vmem:[#allocation10 + $0x24] sm:$0xf]
    %v4578 = vld [vmem:[#allocation10 + $0x28] sm:$0xf]
    %v4579 = vld [vmem:[#allocation10 + $0x2c] sm:$0xf]
    %v4580 = vld [vmem:[#allocation10 + $0x30] sm:$0xf]
    %v4581 = vld [vmem:[#allocation10 + $0x34] sm:$0xf]
    %v4582 = vld [vmem:[#allocation10 + $0x38] sm:$0xf]
    %v4583 = vld [vmem:[#allocation10 + $0x3c] sm:$0xf]
    %v4584 = vld [vmem:[#allocation10 + $0x40] sm:$0xf]
    %v4585 = vld [vmem:[#allocation10 + $0x44] sm:$0xf]
    %v4586 = vld [vmem:[#allocation10 + $0x48] sm:$0xf]
    %v4587 = vld [vmem:[#allocation10 + $0x4c] sm:$0xf]
    %v4588 = vld [vmem:[#allocation10 + $0x50] sm:$0xf]
    %v4589 = vld [vmem:[#allocation10 + $0x54] sm:$0xf]
    %v4590 = vld [vmem:[#allocation10 + $0x58] sm:$0xf]
    %v4591 = vld [vmem:[#allocation10 + $0x5c] sm:$0xf]
    %v4592 = vld [vmem:[#allocation10 + $0x60] sm:$0xf]
    %v4593 = vld [vmem:[#allocation10 + $0x64] sm:$0xf]
    %v4594 = vld [vmem:[#allocation10 + $0x68] sm:$0xf]
    %v4595 = vld [vmem:[#allocation10 + $0x6c] sm:$0xf]
    %v4596 = vld [vmem:[#allocation10 + $0x70] sm:$0xf]
    %v4597 = vld [vmem:[#allocation10 + $0x74] sm:$0xf]
    %v4598 = vld [vmem:[#allocation10 + $0x78] sm:$0xf]
    %v4599 = vld [vmem:[#allocation10 + $0x7c] sm:$0xf]
    %v4600 = vld [vmem:[#allocation10 + $0x80] sm:$0xf]
    %v4601 = vld [vmem:[#allocation10 + $0x84] sm:$0xf]
    %v4602 = vld [vmem:[#allocation10 + $0x88] sm:$0xf]
    %v4603 = vld [vmem:[#allocation10 + $0x8c] sm:$0xf]
    %v4604 = vld [vmem:[#allocation10 + $0x90] sm:$0xf]
    %v4605 = vld [vmem:[#allocation10 + $0x94] sm:$0xf]
    %v4606 = vld [vmem:[#allocation10 + $0x98] sm:$0xf]
    %v4607 = vld [vmem:[#allocation10 + $0x9c] sm:$0xf]
    %v4608 = vld [vmem:[#allocation10 + $0xa0] sm:$0xf]
    %v4609 = vld [vmem:[#allocation10 + $0xa4] sm:$0xf]
    %v4610 = vld [vmem:[#allocation10 + $0xa8] sm:$0xf]
    %v4611 = vld [vmem:[#allocation10 + $0xac] sm:$0xf]
    %v4612 = vld [vmem:[#allocation10 + $0xb0] sm:$0xf]
    %v4613 = vld [vmem:[#allocation10 + $0xb4] sm:$0xf]
    %v4614 = vld [vmem:[#allocation10 + $0xb8] sm:$0xf]
    %v4615 = vld [vmem:[#allocation10 + $0xbc] sm:$0xf]
    %v4616 = vld [vmem:[#allocation10 + $0xc0] sm:$0xf]
    %v4617 = vld [vmem:[#allocation10 + $0xc4] sm:$0xf]
    %v4618 = vld [vmem:[#allocation10 + $0xc8] sm:$0xf]
    %v4619 = vld [vmem:[#allocation10 + $0xcc] sm:$0xf]
    %v4620 = vld [vmem:[#allocation10 + $0xd0] sm:$0xf]
    %v4621 = vld [vmem:[#allocation10 + $0xd4] sm:$0xf]
    %v4622 = vld [vmem:[#allocation10 + $0xd8] sm:$0xf]
    %v4623 = vld [vmem:[#allocation10 + $0xdc] sm:$0xf]
    %v4624 = vld [vmem:[#allocation10 + $0xe0] sm:$0xf]
    %v4625 = vld [vmem:[#allocation10 + $0xe4] sm:$0xf]
    %v4626 = vld [vmem:[#allocation10 + $0xe8] sm:$0xf]
    %v4627 = vld [vmem:[#allocation10 + $0xec] sm:$0xf]
    %v4628 = vld [vmem:[#allocation10 + $0xf0] sm:$0xf]
    %v4629 = vld [vmem:[#allocation10 + $0xf4] sm:$0xf]
    %v4630 = vld [vmem:[#allocation10 + $0xf8] sm:$0xf]
    %v4631 = vld [vmem:[#allocation10 + $0xfc] sm:$0xf]
    %v4632 = vld [vmem:[%s7] sm:$0x1]
    %v4634 = vlaneseq
    %v4635 = vshrl.u32 %v4634, 7
    %v4636 = vsub.s32 0, %v4635
    %v4637 = vrot.slane %v4632, %v4636
    %v4703 = vunpack.c.l.b16 %v4568
    %v4704 = vunpack.c.l.b16 %v4569
    %v4705 = vunpack.c.l.b16 %v4570
    %v4706 = vunpack.c.l.b16 %v4571
    %v4707 = vunpack.c.l.b16 %v4572
    %v4708 = vunpack.c.l.b16 %v4573
    %v4709 = vunpack.c.l.b16 %v4574
    %v4710 = vunpack.c.l.b16 %v4575
    %v4711 = vunpack.c.l.b16 %v4576
    %v4712 = vunpack.c.l.b16 %v4577
    %v4713 = vunpack.c.l.b16 %v4578
    %v4714 = vunpack.c.l.b16 %v4579
    %v4715 = vunpack.c.l.b16 %v4580
    %v4716 = vunpack.c.l.b16 %v4581
    %v4717 = vunpack.c.l.b16 %v4582
    %v4718 = vunpack.c.l.b16 %v4583
    %v4719 = vunpack.c.l.b16 %v4584
    %v4720 = vunpack.c.l.b16 %v4585
    %v4721 = vunpack.c.l.b16 %v4586
    %v4722 = vunpack.c.l.b16 %v4587
    %v4723 = vunpack.c.l.b16 %v4588
    %v4724 = vunpack.c.l.b16 %v4589
    %v4725 = vunpack.c.l.b16 %v4590
    %v4726 = vunpack.c.l.b16 %v4591
    %v4727 = vunpack.c.l.b16 %v4592
    %v4728 = vunpack.c.l.b16 %v4593
    %v4729 = vunpack.c.l.b16 %v4594
    %v4730 = vunpack.c.l.b16 %v4595
    %v4731 = vunpack.c.l.b16 %v4596
    %v4732 = vunpack.c.l.b16 %v4597
    %v4733 = vunpack.c.l.b16 %v4598
    %v4734 = vunpack.c.l.b16 %v4599
    %v4735 = vunpack.c.l.b16 %v4600
    %v4736 = vunpack.c.l.b16 %v4601
    %v4737 = vunpack.c.l.b16 %v4602
    %v4738 = vunpack.c.l.b16 %v4603
    %v4739 = vunpack.c.l.b16 %v4604
    %v4740 = vunpack.c.l.b16 %v4605
    %v4741 = vunpack.c.l.b16 %v4606
    %v4742 = vunpack.c.l.b16 %v4607
    %v4743 = vunpack.c.l.b16 %v4608
    %v4744 = vunpack.c.l.b16 %v4609
    %v4745 = vunpack.c.l.b16 %v4610
    %v4746 = vunpack.c.l.b16 %v4611
    %v4747 = vunpack.c.l.b16 %v4612
    %v4748 = vunpack.c.l.b16 %v4613
    %v4749 = vunpack.c.l.b16 %v4614
    %v4750 = vunpack.c.l.b16 %v4615
    %v4751 = vunpack.c.l.b16 %v4616
    %v4752 = vunpack.c.l.b16 %v4617
    %v4753 = vunpack.c.l.b16 %v4618
    %v4754 = vunpack.c.l.b16 %v4619
    %v4755 = vunpack.c.l.b16 %v4620
    %v4756 = vunpack.c.l.b16 %v4621
    %v4757 = vunpack.c.l.b16 %v4622
    %v4758 = vunpack.c.l.b16 %v4623
    %v4759 = vunpack.c.l.b16 %v4624
    %v4760 = vunpack.c.l.b16 %v4625
    %v4761 = vunpack.c.l.b16 %v4626
    %v4762 = vunpack.c.l.b16 %v4627
    %v4763 = vunpack.c.l.b16 %v4628
    %v4764 = vunpack.c.l.b16 %v4629
    %v4765 = vunpack.c.l.b16 %v4630
    %v4766 = vunpack.c.l.b16 %v4631
    %v4767 = vpack.c.b16 %v4704, %v4703
    %v4768 = vpack.c.b16 %v4706, %v4705
    %v4769 = vpack.c.b16 %v4708, %v4707
    %v4770 = vpack.c.b16 %v4710, %v4709
    %v4771 = vpack.c.b16 %v4712, %v4711
    %v4772 = vpack.c.b16 %v4714, %v4713
    %v4773 = vpack.c.b16 %v4716, %v4715
    %v4774 = vpack.c.b16 %v4718, %v4717
    %v4775 = vpack.c.b16 %v4720, %v4719
    %v4776 = vpack.c.b16 %v4722, %v4721
    %v4777 = vpack.c.b16 %v4724, %v4723
    %v4778 = vpack.c.b16 %v4726, %v4725
    %v4779 = vpack.c.b16 %v4728, %v4727
    %v4780 = vpack.c.b16 %v4730, %v4729
    %v4781 = vpack.c.b16 %v4732, %v4731
    %v4782 = vpack.c.b16 %v4734, %v4733
    %v4783 = vpack.c.b16 %v4736, %v4735
    %v4784 = vpack.c.b16 %v4738, %v4737
    %v4785 = vpack.c.b16 %v4740, %v4739
    %v4786 = vpack.c.b16 %v4742, %v4741
    %v4787 = vpack.c.b16 %v4744, %v4743
    %v4788 = vpack.c.b16 %v4746, %v4745
    %v4789 = vpack.c.b16 %v4748, %v4747
    %v4790 = vpack.c.b16 %v4750, %v4749
    %v4791 = vpack.c.b16 %v4752, %v4751
    %v4792 = vpack.c.b16 %v4754, %v4753
    %v4793 = vpack.c.b16 %v4756, %v4755
    %v4794 = vpack.c.b16 %v4758, %v4757
    %v4795 = vpack.c.b16 %v4760, %v4759
    %v4796 = vpack.c.b16 %v4762, %v4761
    %v4797 = vpack.c.b16 %v4764, %v4763
    %v4798 = vpack.c.b16 %v4766, %v4765
    %4831 = vmatprep.subr.bf16.mxu0 0
    %4832 = vmatpush1.bf16.msra.mxu0 %v4767
    %4833 = vmatprep.subr.bf16.mxu0 0
    %4834 = vmatpush1.bf16.msra.mxu0 %v4768
    %4835 = vmatprep.subr.bf16.mxu0 0
    %4836 = vmatpush1.bf16.msra.mxu0 %v4769
    %4837 = vmatprep.subr.bf16.mxu0 0
    %4838 = vmatpush1.bf16.msra.mxu0 %v4770
    %4839 = vmatprep.subr.bf16.mxu0 0
    %4840 = vmatpush1.bf16.msra.mxu0 %v4771
    %4841 = vmatprep.subr.bf16.mxu0 0
    %4842 = vmatpush1.bf16.msra.mxu0 %v4772
    %4843 = vmatprep.subr.bf16.mxu0 0
    %4844 = vmatpush1.bf16.msra.mxu0 %v4773
    %4845 = vmatprep.subr.bf16.mxu0 0
    %4846 = vmatpush1.bf16.msra.mxu0 %v4774
    %4847 = vmatprep.subr.bf16.mxu0 0
    %4848 = vmatpush1.bf16.msra.mxu0 %v4775
    %4849 = vmatprep.subr.bf16.mxu0 0
    %4850 = vmatpush1.bf16.msra.mxu0 %v4776
    %4851 = vmatprep.subr.bf16.mxu0 0
    %4852 = vmatpush1.bf16.msra.mxu0 %v4777
    %4853 = vmatprep.subr.bf16.mxu0 0
    %4854 = vmatpush1.bf16.msra.mxu0 %v4778
    %4855 = vmatprep.subr.bf16.mxu0 0
    %4856 = vmatpush1.bf16.msra.mxu0 %v4779
    %4857 = vmatprep.subr.bf16.mxu0 0
    %4858 = vmatpush1.bf16.msra.mxu0 %v4780
    %4859 = vmatprep.subr.bf16.mxu0 0
    %4860 = vmatpush1.bf16.msra.mxu0 %v4781
    %4861 = vmatprep.subr.bf16.mxu0 0
    %4862 = vmatpush1.bf16.msra.mxu0 %v4782
    %4863 = vmatprep.mubr.bf16.mxu0 %v4537
    %4864 = vmatmul.mubr.bf16.gmra.mrb[0].mxu0 %v4536
    %v4865 = vpop.f32.mrb[0].mxu0
    %v4866 = vadd.f32 %v4637, %v4865
    %v4867 = vpop.f32.mrb[0].mxu0
    %v4868 = vpop.f32.mrb[0].mxu0
    %v4869 = vadd.f32 %v4637, %v4868
    %v4870 = vpop.f32.mrb[0].mxu0
    %4871 = vmatprep.mubr.bf16.mxu0 %v4541
    %4872 = vmatmul.mubr.bf16.gmra.mrb[0].mxu0 %v4540
    %v4873 = vpop.f32.mrb[0].mxu0
    %v4874 = vadd.f32 %v4637, %v4873
    %v4875 = vpop.f32.mrb[0].mxu0
    %v4876 = vpop.f32.mrb[0].mxu0
    %v4877 = vadd.f32 %v4637, %v4876
    %v4878 = vpop.f32.mrb[0].mxu0
    %4879 = vmatprep.mubr.bf16.mxu0 %v4545
    %4880 = vmatmul.mubr.bf16.gmra.mrb[0].mxu0 %v4544
    %v4881 = vpop.f32.mrb[0].mxu0
    %v4882 = vadd.f32 %v4637, %v4881
    %v4883 = vpop.f32.mrb[0].mxu0
    %v4884 = vpop.f32.mrb[0].mxu0
    %v4885 = vadd.f32 %v4637, %v4884
    %v4886 = vpop.f32.mrb[0].mxu0
    %4887 = vmatprep.mubr.bf16.mxu0 %v4549
    %4888 = vmatmul.mubr.bf16.gmra.mrb[0].mxu0 %v4548
    %v4889 = vpop.f32.mrb[0].mxu0
    %v4890 = vadd.f32 %v4637, %v4889
    %v4891 = vpop.f32.mrb[0].mxu0
    %v4892 = vpop.f32.mrb[0].mxu0
    %v4893 = vadd.f32 %v4637, %v4892
    %v4894 = vpop.f32.mrb[0].mxu0
    %4895 = vmatprep.mubr.bf16.mxu0 %v4553
    %4896 = vmatmul.mubr.bf16.gmra.mrb[0].mxu0 %v4552
    %v4897 = vpop.f32.mrb[0].mxu0
    %v4898 = vadd.f32 %v4637, %v4897
    %v4899 = vpop.f32.mrb[0].mxu0
    %v4900 = vpop.f32.mrb[0].mxu0
    %v4901 = vadd.f32 %v4637, %v4900
    %v4902 = vpop.f32.mrb[0].mxu0
    %4903 = vmatprep.mubr.bf16.mxu0 %v4557
    %4904 = vmatmul.mubr.bf16.gmra.mrb[0].mxu0 %v4556
    %v4905 = vpop.f32.mrb[0].mxu0
    %v4906 = vadd.f32 %v4637, %v4905
    %v4907 = vpop.f32.mrb[0].mxu0
    %v4908 = vpop.f32.mrb[0].mxu0
    %v4909 = vadd.f32 %v4637, %v4908
    %v4910 = vpop.f32.mrb[0].mxu0
    %4911 = vmatprep.mubr.bf16.mxu0 %v4561
    %4912 = vmatmul.mubr.bf16.gmra.mrb[0].mxu0 %v4560
    %v4913 = vpop.f32.mrb[0].mxu0
    %v4914 = vadd.f32 %v4637, %v4913
    %v4915 = vpop.f32.mrb[0].mxu0
    %v4916 = vpop.f32.mrb[0].mxu0
    %v4917 = vadd.f32 %v4637, %v4916
    %v4918 = vpop.f32.mrb[0].mxu0
    %4919 = vmatprep.mubr.bf16.mxu0 %v4565
    %4920 = vmatmul.mubr.bf16.gmra.mrb[0].mxu0 %v4564
    %v4921 = vpop.f32.mrb[0].mxu0
    %v4922 = vadd.f32 %v4637, %v4921
    %v4923 = vpop.f32.mrb[0].mxu0
    %v4924 = vpop.f32.mrb[0].mxu0
    %v4925 = vadd.f32 %v4637, %v4924
    %v4926 = vpop.f32.mrb[0].mxu0
    %4927 = vdwg.mxu0
    %4928 = vmatprep.subr.bf16.mxu0 0
    %4929 = vmatpush1.bf16.msra.mxu0 %v4783
    %4930 = vmatprep.subr.bf16.mxu0 0
    %4931 = vmatpush1.bf16.msra.mxu0 %v4784
    %4932 = vmatprep.subr.bf16.mxu0 0
    %4933 = vmatpush1.bf16.msra.mxu0 %v4785
    %4934 = vmatprep.subr.bf16.mxu0 0
    %4935 = vmatpush1.bf16.msra.mxu0 %v4786
    %4936 = vmatprep.subr.bf16.mxu0 0
    %4937 = vmatpush1.bf16.msra.mxu0 %v4787
    %4938 = vmatprep.subr.bf16.mxu0 0
    %4939 = vmatpush1.bf16.msra.mxu0 %v4788
    %4940 = vmatprep.subr.bf16.mxu0 0
    %4941 = vmatpush1.bf16.msra.mxu0 %v4789
    %4942 = vmatprep.subr.bf16.mxu0 0
    %4943 = vmatpush1.bf16.msra.mxu0 %v4790
    %4944 = vmatprep.subr.bf16.mxu0 0
    %4945 = vmatpush1.bf16.msra.mxu0 %v4791
    %4946 = vmatprep.subr.bf16.mxu0 0
    %4947 = vmatpush1.bf16.msra.mxu0 %v4792
    %4948 = vmatprep.subr.bf16.mxu0 0
    %4949 = vmatpush1.bf16.msra.mxu0 %v4793
    %4950 = vmatprep.subr.bf16.mxu0 0
    %4951 = vmatpush1.bf16.msra.mxu0 %v4794
    %4952 = vmatprep.subr.bf16.mxu0 0
    %4953 = vmatpush1.bf16.msra.mxu0 %v4795
    %4954 = vmatprep.subr.bf16.mxu0 0
    %4955 = vmatpush1.bf16.msra.mxu0 %v4796
    %4956 = vmatprep.subr.bf16.mxu0 0
    %4957 = vmatpush1.bf16.msra.mxu0 %v4797
    %4958 = vmatprep.subr.bf16.mxu0 0
    %4959 = vmatpush1.bf16.msra.mxu0 %v4798
    %4960 = vmatprep.mubr.bf16.mxu0 %v4539
    %4961 = vmatmul.mubr.bf16.gmra.mrb[0].mxu0 %v4538
    %v4962 = vpop.f32.mrb[0].mxu0
    %v4963 = vadd.f32 %v4866, %v4962
    %v4964 = vpop.f32.mrb[0].mxu0
    %v4965 = vpop.f32.mrb[0].mxu0
    %v4966 = vadd.f32 %v4869, %v4965
    %v4967 = vpop.f32.mrb[0].mxu0
    %4968 = vmatprep.mubr.bf16.mxu0 %v4543
    %4969 = vmatmul.mubr.bf16.gmra.mrb[0].mxu0 %v4542
    %v4970 = vpop.f32.mrb[0].mxu0
    %v4971 = vadd.f32 %v4874, %v4970
    %v4972 = vpop.f32.mrb[0].mxu0
    %v4973 = vpop.f32.mrb[0].mxu0
    %v4974 = vadd.f32 %v4877, %v4973
    %v4975 = vpop.f32.mrb[0].mxu0
    %4976 = vmatprep.mubr.bf16.mxu0 %v4547
    %4977 = vmatmul.mubr.bf16.gmra.mrb[0].mxu0 %v4546
    %v4978 = vpop.f32.mrb[0].mxu0
    %v4979 = vadd.f32 %v4882, %v4978
    %v4980 = vpop.f32.mrb[0].mxu0
    %v4981 = vpop.f32.mrb[0].mxu0
    %v4982 = vadd.f32 %v4885, %v4981
    %v4983 = vpop.f32.mrb[0].mxu0
    %4984 = vmatprep.mubr.bf16.mxu0 %v4551
    %4985 = vmatmul.mubr.bf16.gmra.mrb[0].mxu0 %v4550
    %v4986 = vpop.f32.mrb[0].mxu0
    %v4987 = vadd.f32 %v4890, %v4986
    %v4988 = vpop.f32.mrb[0].mxu0
    %v4989 = vpop.f32.mrb[0].mxu0
    %v4990 = vadd.f32 %v4893, %v4989
    %v4991 = vpop.f32.mrb[0].mxu0
    %4992 = vmatprep.mubr.bf16.mxu0 %v4555
    %4993 = vmatmul.mubr.bf16.gmra.mrb[0].mxu0 %v4554
    %v4994 = vpop.f32.mrb[0].mxu0
    %v4995 = vadd.f32 %v4898, %v4994
    %v4996 = vpop.f32.mrb[0].mxu0
    %v4997 = vpop.f32.mrb[0].mxu0
    %v4998 = vadd.f32 %v4901, %v4997
    %v4999 = vpop.f32.mrb[0].mxu0
    %5000 = vmatprep.mubr.bf16.mxu0 %v4559
    %5001 = vmatmul.mubr.bf16.gmra.mrb[0].mxu0 %v4558
    %v5002 = vpop.f32.mrb[0].mxu0
    %v5003 = vadd.f32 %v4906, %v5002
    %v5004 = vpop.f32.mrb[0].mxu0
    %v5005 = vpop.f32.mrb[0].mxu0
    %v5006 = vadd.f32 %v4909, %v5005
    %v5007 = vpop.f32.mrb[0].mxu0
    %5008 = vmatprep.mubr.bf16.mxu0 %v4563
    %5009 = vmatmul.mubr.bf16.gmra.mrb[0].mxu0 %v4562
    %v5010 = vpop.f32.mrb[0].mxu0
    %v5011 = vadd.f32 %v4914, %v5010
    %v5012 = vpop.f32.mrb[0].mxu0
    %v5013 = vpop.f32.mrb[0].mxu0
    %v5014 = vadd.f32 %v4917, %v5013
    %v5015 = vpop.f32.mrb[0].mxu0
    %5016 = vmatprep.mubr.bf16.mxu0 %v4567
    %5017 = vmatmul.mubr.bf16.gmra.mrb[0].mxu0 %v4566
    %v5018 = vpop.f32.mrb[0].mxu0
    %v5019 = vadd.f32 %v4922, %v5018
    %v5020 = vpop.f32.mrb[0].mxu0
    %v5021 = vpop.f32.mrb[0].mxu0
    %v5022 = vadd.f32 %v4925, %v5021
    %v5023 = vpop.f32.mrb[0].mxu0
    %5024 = vdwg.mxu0
    %v5025 = vmax.f32 %v4963, 0.0
    %v5026 = vmax.f32 %v4966, 0.0
    %v5027 = vmax.f32 %v4971, 0.0
    %v5028 = vmax.f32 %v4974, 0.0
    %v5029 = vmax.f32 %v4979, 0.0
    %v5030 = vmax.f32 %v4982, 0.0
    %v5031 = vmax.f32 %v4987, 0.0
    %v5032 = vmax.f32 %v4990, 0.0
    %v5033 = vmax.f32 %v4995, 0.0
    %v5034 = vmax.f32 %v4998, 0.0
    %v5035 = vmax.f32 %v5003, 0.0
    %v5036 = vmax.f32 %v5006, 0.0
    %v5037 = vmax.f32 %v5011, 0.0
    %v5038 = vmax.f32 %v5014, 0.0
    %v5039 = vmax.f32 %v5019, 0.0
    %v5040 = vmax.f32 %v5022, 0.0
    %s5041 = sadd.s32 %s107, 11111
    %v5042 = vmul.u32 %v3602, 128
    %v5043 = vmul.u32 %v3603, 128
    %v5044 = vmul.u32 %v3604, 128
    %v5045 = vmul.u32 %v3605, 128
    %v5046 = vmul.u32 %v3606, 128
    %v5047 = vmul.u32 %v3607, 128
    %v5048 = vmul.u32 %v3608, 128
    %v5049 = vmul.u32 %v3609, 128
    %v5050 = vmul.u32 %v3610, 128
    %v5051 = vmul.u32 %v3611, 128
    %v5052 = vmul.u32 %v3612, 128
    %v5053 = vmul.u32 %v3613, 128
    %v5054 = vmul.u32 %v3614, 128
    %v5055 = vmul.u32 %v3615, 128
    %v5056 = vmul.u32 %v3616, 128
    %v5057 = vmul.u32 %v3617, 128
    %v5058 = vadd.s32 %v5042, %v3619
    %v5059 = vadd.s32 %v5043, %v3619
    %v5060 = vadd.s32 %v5044, %v3619
    %v5061 = vadd.s32 %v5045, %v3619
    %v5062 = vadd.s32 %v5046, %v3619
    %v5063 = vadd.s32 %v5047, %v3619
    %v5064 = vadd.s32 %v5048, %v3619
    %v5065 = vadd.s32 %v5049, %v3619
    %v5066 = vadd.s32 %v5050, %v3619
    %v5067 = vadd.s32 %v5051, %v3619
    %v5068 = vadd.s32 %v5052, %v3619
    %v5069 = vadd.s32 %v5053, %v3619
    %v5070 = vadd.s32 %v5054, %v3619
    %v5071 = vadd.s32 %v5055, %v3619
    %v5072 = vadd.s32 %v5056, %v3619
    %v5073 = vadd.s32 %v5057, %v3619
    %v5074 = vstv %s5041
    %v5075 = vadd.s32 %v5058, %v5074
    %v5076 = vadd.s32 %v5059, %v5074
    %v5077 = vadd.s32 %v5060, %v5074
    %v5078 = vadd.s32 %v5061, %v5074
    %v5079 = vadd.s32 %v5062, %v5074
    %v5080 = vadd.s32 %v5063, %v5074
    %v5081 = vadd.s32 %v5064, %v5074
    %v5082 = vadd.s32 %v5065, %v5074
    %v5083 = vadd.s32 %v5066, %v5074
    %v5084 = vadd.s32 %v5067, %v5074
    %v5085 = vadd.s32 %v5068, %v5074
    %v5086 = vadd.s32 %v5069, %v5074
    %v5087 = vadd.s32 %v5070, %v5074
    %v5088 = vadd.s32 %v5071, %v5074
    %v5089 = vadd.s32 %v5072, %v5074
    %v5090 = vadd.s32 %v5073, %v5074
    %v5091 = vshra.s32 %v5075, 16
    %v5092 = vshra.s32 %v5076, 16
    %v5093 = vshra.s32 %v5077, 16
    %v5094 = vshra.s32 %v5078, 16
    %v5095 = vshra.s32 %v5079, 16
    %v5096 = vshra.s32 %v5080, 16
    %v5097 = vshra.s32 %v5081, 16
    %v5098 = vshra.s32 %v5082, 16
    %v5099 = vshra.s32 %v5083, 16
    %v5100 = vshra.s32 %v5084, 16
    %v5101 = vshra.s32 %v5085, 16
    %v5102 = vshra.s32 %v5086, 16
    %v5103 = vshra.s32 %v5087, 16
    %v5104 = vshra.s32 %v5088, 16
    %v5105 = vshra.s32 %v5089, 16
    %v5106 = vshra.s32 %v5090, 16
    %v5107 = vxor.u32 %v5091, %v5075
    %v5108 = vxor.u32 %v5092, %v5076
    %v5109 = vxor.u32 %v5093, %v5077
    %v5110 = vxor.u32 %v5094, %v5078
    %v5111 = vxor.u32 %v5095, %v5079
    %v5112 = vxor.u32 %v5096, %v5080
    %v5113 = vxor.u32 %v5097, %v5081
    %v5114 = vxor.u32 %v5098, %v5082
    %v5115 = vxor.u32 %v5099, %v5083
    %v5116 = vxor.u32 %v5100, %v5084
    %v5117 = vxor.u32 %v5101, %v5085
    %v5118 = vxor.u32 %v5102, %v5086
    %v5119 = vxor.u32 %v5103, %v5087
    %v5120 = vxor.u32 %v5104, %v5088
    %v5121 = vxor.u32 %v5105, %v5089
    %v5122 = vxor.u32 %v5106, %v5090
    %v5123 = vmul.u32 %v5107, 73244475
    %v5124 = vmul.u32 %v5108, 73244475
    %v5125 = vmul.u32 %v5109, 73244475
    %v5126 = vmul.u32 %v5110, 73244475
    %v5127 = vmul.u32 %v5111, 73244475
    %v5128 = vmul.u32 %v5112, 73244475
    %v5129 = vmul.u32 %v5113, 73244475
    %v5130 = vmul.u32 %v5114, 73244475
    %v5131 = vmul.u32 %v5115, 73244475
    %v5132 = vmul.u32 %v5116, 73244475
    %v5133 = vmul.u32 %v5117, 73244475
    %v5134 = vmul.u32 %v5118, 73244475
    %v5135 = vmul.u32 %v5119, 73244475
    %v5136 = vmul.u32 %v5120, 73244475
    %v5137 = vmul.u32 %v5121, 73244475
    %v5138 = vmul.u32 %v5122, 73244475
    %v5139 = vshra.s32 %v5123, 16
    %v5140 = vshra.s32 %v5124, 16
    %v5141 = vshra.s32 %v5125, 16
    %v5142 = vshra.s32 %v5126, 16
    %v5143 = vshra.s32 %v5127, 16
    %v5144 = vshra.s32 %v5128, 16
    %v5145 = vshra.s32 %v5129, 16
    %v5146 = vshra.s32 %v5130, 16
    %v5147 = vshra.s32 %v5131, 16
    %v5148 = vshra.s32 %v5132, 16
    %v5149 = vshra.s32 %v5133, 16
    %v5150 = vshra.s32 %v5134, 16
    %v5151 = vshra.s32 %v5135, 16
    %v5152 = vshra.s32 %v5136, 16
    %v5153 = vshra.s32 %v5137, 16
    %v5154 = vshra.s32 %v5138, 16
    %v5155 = vxor.u32 %v5139, %v5123
    %v5156 = vxor.u32 %v5140, %v5124
    %v5157 = vxor.u32 %v5141, %v5125
    %v5158 = vxor.u32 %v5142, %v5126
    %v5159 = vxor.u32 %v5143, %v5127
    %v5160 = vxor.u32 %v5144, %v5128
    %v5161 = vxor.u32 %v5145, %v5129
    %v5162 = vxor.u32 %v5146, %v5130
    %v5163 = vxor.u32 %v5147, %v5131
    %v5164 = vxor.u32 %v5148, %v5132
    %v5165 = vxor.u32 %v5149, %v5133
    %v5166 = vxor.u32 %v5150, %v5134
    %v5167 = vxor.u32 %v5151, %v5135
    %v5168 = vxor.u32 %v5152, %v5136
    %v5169 = vxor.u32 %v5153, %v5137
    %v5170 = vxor.u32 %v5154, %v5138
    %v5171 = vmul.u32 %v5155, 73244475
    %v5172 = vmul.u32 %v5156, 73244475
    %v5173 = vmul.u32 %v5157, 73244475
    %v5174 = vmul.u32 %v5158, 73244475
    %v5175 = vmul.u32 %v5159, 73244475
    %v5176 = vmul.u32 %v5160, 73244475
    %v5177 = vmul.u32 %v5161, 73244475
    %v5178 = vmul.u32 %v5162, 73244475
    %v5179 = vmul.u32 %v5163, 73244475
    %v5180 = vmul.u32 %v5164, 73244475
    %v5181 = vmul.u32 %v5165, 73244475
    %v5182 = vmul.u32 %v5166, 73244475
    %v5183 = vmul.u32 %v5167, 73244475
    %v5184 = vmul.u32 %v5168, 73244475
    %v5185 = vmul.u32 %v5169, 73244475
    %v5186 = vmul.u32 %v5170, 73244475
    %v5187 = vshra.s32 %v5171, 16
    %v5188 = vshra.s32 %v5172, 16
    %v5189 = vshra.s32 %v5173, 16
    %v5190 = vshra.s32 %v5174, 16
    %v5191 = vshra.s32 %v5175, 16
    %v5192 = vshra.s32 %v5176, 16
    %v5193 = vshra.s32 %v5177, 16
    %v5194 = vshra.s32 %v5178, 16
    %v5195 = vshra.s32 %v5179, 16
    %v5196 = vshra.s32 %v5180, 16
    %v5197 = vshra.s32 %v5181, 16
    %v5198 = vshra.s32 %v5182, 16
    %v5199 = vshra.s32 %v5183, 16
    %v5200 = vshra.s32 %v5184, 16
    %v5201 = vshra.s32 %v5185, 16
    %v5202 = vshra.s32 %v5186, 16
    %v5203 = vxor.u32 %v5187, %v5171
    %v5204 = vxor.u32 %v5188, %v5172
    %v5205 = vxor.u32 %v5189, %v5173
    %v5206 = vxor.u32 %v5190, %v5174
    %v5207 = vxor.u32 %v5191, %v5175
    %v5208 = vxor.u32 %v5192, %v5176
    %v5209 = vxor.u32 %v5193, %v5177
    %v5210 = vxor.u32 %v5194, %v5178
    %v5211 = vxor.u32 %v5195, %v5179
    %v5212 = vxor.u32 %v5196, %v5180
    %v5213 = vxor.u32 %v5197, %v5181
    %v5214 = vxor.u32 %v5198, %v5182
    %v5215 = vxor.u32 %v5199, %v5183
    %v5216 = vxor.u32 %v5200, %v5184
    %v5217 = vxor.u32 %v5201, %v5185
    %v5218 = vxor.u32 %v5202, %v5186
    %v5219 = vand.u32 %v5203, 1
    %v5220 = vand.u32 %v5204, 1
    %v5221 = vand.u32 %v5205, 1
    %v5222 = vand.u32 %v5206, 1
    %v5223 = vand.u32 %v5207, 1
    %v5224 = vand.u32 %v5208, 1
    %v5225 = vand.u32 %v5209, 1
    %v5226 = vand.u32 %v5210, 1
    %v5227 = vand.u32 %v5211, 1
    %v5228 = vand.u32 %v5212, 1
    %v5229 = vand.u32 %v5213, 1
    %v5230 = vand.u32 %v5214, 1
    %v5231 = vand.u32 %v5215, 1
    %v5232 = vand.u32 %v5216, 1
    %v5233 = vand.u32 %v5217, 1
    %v5234 = vand.u32 %v5218, 1
    %vm5235 = vcmp.ne.s32.totalorder %v5219, 0
    %vm5236 = vcmp.ne.s32.totalorder %v5220, 0
    %vm5237 = vcmp.ne.s32.totalorder %v5221, 0
    %vm5238 = vcmp.ne.s32.totalorder %v5222, 0
    %vm5239 = vcmp.ne.s32.totalorder %v5223, 0
    %vm5240 = vcmp.ne.s32.totalorder %v5224, 0
    %vm5241 = vcmp.ne.s32.totalorder %v5225, 0
    %vm5242 = vcmp.ne.s32.totalorder %v5226, 0
    %vm5243 = vcmp.ne.s32.totalorder %v5227, 0
    %vm5244 = vcmp.ne.s32.totalorder %v5228, 0
    %vm5245 = vcmp.ne.s32.totalorder %v5229, 0
    %vm5246 = vcmp.ne.s32.totalorder %v5230, 0
    %vm5247 = vcmp.ne.s32.totalorder %v5231, 0
    %vm5248 = vcmp.ne.s32.totalorder %v5232, 0
    %vm5249 = vcmp.ne.s32.totalorder %v5233, 0
    %vm5250 = vcmp.ne.s32.totalorder %v5234, 0
    %v5251 = vsel %vm5235, 2.0, 0.0
    %v5252 = vsel %vm5236, 2.0, 0.0
    %v5253 = vsel %vm5237, 2.0, 0.0
    %v5254 = vsel %vm5238, 2.0, 0.0
    %v5255 = vsel %vm5239, 2.0, 0.0
    %v5256 = vsel %vm5240, 2.0, 0.0
    %v5257 = vsel %vm5241, 2.0, 0.0
    %v5258 = vsel %vm5242, 2.0, 0.0
    %v5259 = vsel %vm5243, 2.0, 0.0
    %v5260 = vsel %vm5244, 2.0, 0.0
    %v5261 = vsel %vm5245, 2.0, 0.0
    %v5262 = vsel %vm5246, 2.0, 0.0
    %v5263 = vsel %vm5247, 2.0, 0.0
    %v5264 = vsel %vm5248, 2.0, 0.0
    %v5265 = vsel %vm5249, 2.0, 0.0
    %v5266 = vsel %vm5250, 2.0, 0.0
    %v5267 = vmul.f32 %v5025, %v5251
    %v5268 = vmul.f32 %v5026, %v5252
    %v5269 = vmul.f32 %v5027, %v5253
    %v5270 = vmul.f32 %v5028, %v5254
    %v5271 = vmul.f32 %v5029, %v5255
    %v5272 = vmul.f32 %v5030, %v5256
    %v5273 = vmul.f32 %v5031, %v5257
    %v5274 = vmul.f32 %v5032, %v5258
    %v5275 = vmul.f32 %v5033, %v5259
    %v5276 = vmul.f32 %v5034, %v5260
    %v5277 = vmul.f32 %v5035, %v5261
    %v5278 = vmul.f32 %v5036, %v5262
    %v5279 = vmul.f32 %v5037, %v5263
    %v5280 = vmul.f32 %v5038, %v5264
    %v5281 = vmul.f32 %v5039, %v5265
    %v5282 = vmul.f32 %v5040, %v5266
    %v5283 = vpack.c.bf16 %v5268, %v5267
    %v5284 = vpack.c.bf16 %v5270, %v5269
    %v5285 = vpack.c.bf16 %v5272, %v5271
    %v5286 = vpack.c.bf16 %v5274, %v5273
    %v5287 = vpack.c.bf16 %v5276, %v5275
    %v5288 = vpack.c.bf16 %v5278, %v5277
    %v5289 = vpack.c.bf16 %v5280, %v5279
    %v5290 = vpack.c.bf16 %v5282, %v5281
    %v5291 = vld [vmem:[#allocation12] sm:$0xf]
    %v5292 = vld [vmem:[#allocation12 + $0x4] sm:$0xf]
    %v5293 = vld [vmem:[#allocation12 + $0x8] sm:$0xf]
    %v5294 = vld [vmem:[#allocation12 + $0xc] sm:$0xf]
    %v5295 = vld [vmem:[#allocation12 + $0x10] sm:$0xf]
    %v5296 = vld [vmem:[#allocation12 + $0x14] sm:$0xf]
    %v5297 = vld [vmem:[#allocation12 + $0x18] sm:$0xf]
    %v5298 = vld [vmem:[#allocation12 + $0x1c] sm:$0xf]
    %v5299 = vld [vmem:[#allocation12 + $0x20] sm:$0xf]
    %v5300 = vld [vmem:[#allocation12 + $0x24] sm:$0xf]
    %v5301 = vld [vmem:[#allocation12 + $0x28] sm:$0xf]
    %v5302 = vld [vmem:[#allocation12 + $0x2c] sm:$0xf]
    %v5303 = vld [vmem:[#allocation12 + $0x30] sm:$0xf]
    %v5304 = vld [vmem:[#allocation12 + $0x34] sm:$0xf]
    %v5305 = vld [vmem:[#allocation12 + $0x38] sm:$0xf]
    %v5306 = vld [vmem:[#allocation12 + $0x3c] sm:$0xf]
    %v5307 = vld [vmem:[%s9] sm:$0x1]
    %v5309 = vlaneseq
    %v5310 = vshrl.u32 %v5309, 7
    %v5311 = vsub.s32 0, %v5310
    %v5312 = vrot.slane %v5307, %v5311
    %v5330 = vunpack.c.l.b16 %v5291
    %v5331 = vunpack.c.l.b16 %v5292
    %v5332 = vunpack.c.l.b16 %v5293
    %v5333 = vunpack.c.l.b16 %v5294
    %v5334 = vunpack.c.l.b16 %v5295
    %v5335 = vunpack.c.l.b16 %v5296
    %v5336 = vunpack.c.l.b16 %v5297
    %v5337 = vunpack.c.l.b16 %v5298
    %v5338 = vunpack.c.l.b16 %v5299
    %v5339 = vunpack.c.l.b16 %v5300
    %v5340 = vunpack.c.l.b16 %v5301
    %v5341 = vunpack.c.l.b16 %v5302
    %v5342 = vunpack.c.l.b16 %v5303
    %v5343 = vunpack.c.l.b16 %v5304
    %v5344 = vunpack.c.l.b16 %v5305
    %v5345 = vunpack.c.l.b16 %v5306
    %v5346 = vpack.c.b16 %v5331, %v5330
    %v5347 = vpack.c.b16 %v5333, %v5332
    %v5348 = vpack.c.b16 %v5335, %v5334
    %v5349 = vpack.c.b16 %v5337, %v5336
    %v5350 = vpack.c.b16 %v5339, %v5338
    %v5351 = vpack.c.b16 %v5341, %v5340
    %v5352 = vpack.c.b16 %v5343, %v5342
    %v5353 = vpack.c.b16 %v5345, %v5344
    %5362 = vmatprep.subr.bf16.mxu0 0
    %5363 = vmatpush1.bf16.msra.mxu0 %v5346
    %5364 = vmatprep.subr.bf16.mxu0 0
    %5365 = vmatpush1.bf16.msra.mxu0 %v5347
    %5366 = vmatprep.subr.bf16.mxu0 0
    %5367 = vmatpush1.bf16.msra.mxu0 %v5348
    %5368 = vmatprep.subr.bf16.mxu0 0
    %5369 = vmatpush1.bf16.msra.mxu0 %v5349
    %5370 = vmatprep.subr.bf16.mxu0 0
    %5371 = vmatpush1.bf16.msra.mxu0 %v5350
    %5372 = vmatprep.subr.bf16.mxu0 0
    %5373 = vmatpush1.bf16.msra.mxu0 %v5351
    %5374 = vmatprep.subr.bf16.mxu0 0
    %5375 = vmatpush1.bf16.msra.mxu0 %v5352
    %5376 = vmatprep.subr.bf16.mxu0 0
    %5377 = vmatpush1.bf16.msra.mxu0 %v5353
    %5378 = vmatprep.subr.bf16.mxu0 0
    %5379 = vmatpush1.bf16.msra.mxu0 0
    %5380 = vmatprep.subr.bf16.mxu0 0
    %5381 = vmatpush1.bf16.msra.mxu0 0
    %5382 = vmatprep.subr.bf16.mxu0 0
    %5383 = vmatpush1.bf16.msra.mxu0 0
    %5384 = vmatprep.subr.bf16.mxu0 0
    %5385 = vmatpush1.bf16.msra.mxu0 0
    %5386 = vmatprep.subr.bf16.mxu0 0
    %5387 = vmatpush1.bf16.msra.mxu0 0
    %5388 = vmatprep.subr.bf16.mxu0 0
    %5389 = vmatpush1.bf16.msra.mxu0 0
    %5390 = vmatprep.subr.bf16.mxu0 0
    %5391 = vmatpush1.bf16.msra.mxu0 0
    %5392 = vmatprep.subr.bf16.mxu0 0
    %5393 = vmatpush1.bf16.msra.mxu0 0
    %5394 = vmatprep.mubr.bf16.mxu0 0
    %5395 = vmatmul.mubr.bf16.gmra.mrb[0].mxu0 %v5283
    %v5396 = vpop.f32.mrb[0].mxu0
    %v5397 = vadd.f32 %v5312, %v5396
    %v5398 = vpop.f32.mrb[0].mxu0
    %v5399 = vpop.f32.mrb[0].mxu0
    %v5400 = vadd.f32 %v5312, %v5399
    %v5401 = vpop.f32.mrb[0].mxu0
    %5402 = vmatprep.mubr.bf16.mxu0 0
    %5403 = vmatmul.mubr.bf16.gmra.mrb[0].mxu0 %v5284
    %v5404 = vpop.f32.mrb[0].mxu0
    %v5405 = vadd.f32 %v5312, %v5404
    %v5406 = vpop.f32.mrb[0].mxu0
    %v5407 = vpop.f32.mrb[0].mxu0
    %v5408 = vadd.f32 %v5312, %v5407
    %v5409 = vpop.f32.mrb[0].mxu0
    %5410 = vmatprep.mubr.bf16.mxu0 0
    %5411 = vmatmul.mubr.bf16.gmra.mrb[0].mxu0 %v5285
    %v5412 = vpop.f32.mrb[0].mxu0
    %v5413 = vadd.f32 %v5312, %v5412
    %v5414 = vpop.f32.mrb[0].mxu0
    %v5415 = vpop.f32.mrb[0].mxu0
    %v5416 = vadd.f32 %v5312, %v5415
    %v5417 = vpop.f32.mrb[0].mxu0
    %5418 = vmatprep.mubr.bf16.mxu0 0
    %5419 = vmatmul.mubr.bf16.gmra.mrb[0].mxu0 %v5286
    %v5420 = vpop.f32.mrb[0].mxu0
    %v5421 = vadd.f32 %v5312, %v5420
    %v5422 = vpop.f32.mrb[0].mxu0
    %v5423 = vpop.f32.mrb[0].mxu0
    %v5424 = vadd.f32 %v5312, %v5423
    %v5425 = vpop.f32.mrb[0].mxu0
    %5426 = vmatprep.mubr.bf16.mxu0 0
    %5427 = vmatmul.mubr.bf16.gmra.mrb[0].mxu0 %v5287
    %v5428 = vpop.f32.mrb[0].mxu0
    %v5429 = vadd.f32 %v5312, %v5428
    %v5430 = vpop.f32.mrb[0].mxu0
    %v5431 = vpop.f32.mrb[0].mxu0
    %v5432 = vadd.f32 %v5312, %v5431
    %v5433 = vpop.f32.mrb[0].mxu0
    %5434 = vmatprep.mubr.bf16.mxu0 0
    %5435 = vmatmul.mubr.bf16.gmra.mrb[0].mxu0 %v5288
    %v5436 = vpop.f32.mrb[0].mxu0
    %v5437 = vadd.f32 %v5312, %v5436
    %v5438 = vpop.f32.mrb[0].mxu0
    %v5439 = vpop.f32.mrb[0].mxu0
    %v5440 = vadd.f32 %v5312, %v5439
    %v5441 = vpop.f32.mrb[0].mxu0
    %5442 = vmatprep.mubr.bf16.mxu0 0
    %5443 = vmatmul.mubr.bf16.gmra.mrb[0].mxu0 %v5289
    %v5444 = vpop.f32.mrb[0].mxu0
    %v5445 = vadd.f32 %v5312, %v5444
    %v5446 = vpop.f32.mrb[0].mxu0
    %v5447 = vpop.f32.mrb[0].mxu0
    %v5448 = vadd.f32 %v5312, %v5447
    %v5449 = vpop.f32.mrb[0].mxu0
    %5450 = vmatprep.mubr.bf16.mxu0 0
    %5451 = vmatmul.mubr.bf16.gmra.mrb[0].mxu0 %v5290
    %v5452 = vpop.f32.mrb[0].mxu0
    %v5453 = vadd.f32 %v5312, %v5452
    %v5454 = vpop.f32.mrb[0].mxu0
    %v5455 = vpop.f32.mrb[0].mxu0
    %v5456 = vadd.f32 %v5312, %v5455
    %v5457 = vpop.f32.mrb[0].mxu0
    %5458 = vdwg.mxu0
    %5459 = vst [vmem:[#allocation13] sm:$0xff] %v5397
    %5460 = vst [vmem:[#allocation13 + $0x8] sm:$0xff] %v5400
    %5461 = vst [vmem:[#allocation13 + $0x10] sm:$0xff] %v5405
    %5462 = vst [vmem:[#allocation13 + $0x18] sm:$0xff] %v5408
    %5463 = vst [vmem:[#allocation13 + $0x20] sm:$0xff] %v5413
    %5464 = vst [vmem:[#allocation13 + $0x28] sm:$0xff] %v5416
    %5465 = vst [vmem:[#allocation13 + $0x30] sm:$0xff] %v5421
    %5466 = vst [vmem:[#allocation13 + $0x38] sm:$0xff] %v5424
    %5467 = vst [vmem:[#allocation13 + $0x40] sm:$0xff] %v5429
    %5468 = vst [vmem:[#allocation13 + $0x48] sm:$0xff] %v5432
    %5469 = vst [vmem:[#allocation13 + $0x50] sm:$0xff] %v5437
    %5470 = vst [vmem:[#allocation13 + $0x58] sm:$0xff] %v5440
    %5471 = vst [vmem:[#allocation13 + $0x60] sm:$0xff] %v5445
    %5472 = vst [vmem:[#allocation13 + $0x68] sm:$0xff] %v5448
    %5473 = vst [vmem:[#allocation13 + $0x70] sm:$0xff] %v5453
    %5474 = vst [vmem:[#allocation13 + $0x78] sm:$0xff] %v5456
    // Predicated region
    $region58: #{tpu_custom_call.1} parent=1 // pred_check
      _
    $region59: #{tpu_custom_call.1} parent=1 // pred_check_branch
      %5476 = sbr.rel (0) target = $region61
    $region60: #{tpu_custom_call.1} parent=1 // pred_region
      %s5478 = ssub.s32 2048, 2048
      %5479 = vsyncadd [#allocation6], %s5478
      %s5480 = sshll.u32 [#allocation13], 4
      %s5481 = int_to_ptr.vmem [resolvable:$true] %s5480
      %5486 = dma.vmem_to_hbm [thread:$0]  %s5481, 2048, %s10, [#allocation6], 128, 128, 8
    $region61: #{tpu_custom_call.1} parent=1 // pred_fallthru
      _
    // Predicated region
    $region62: #{tpu_custom_call.1} parent=1 // pred_check
      _
    $region63: #{tpu_custom_call.1} parent=1 // pred_check_branch
      %5488 = sbr.rel (0) target = $region65
    $region64: #{tpu_custom_call.1} parent=1 // pred_region
      %5489 = dma.done [#allocation6], 2048
    $region65: #{tpu_custom_call.1} parent=1 // pred_fallthru
      _
    %5490 = vsyncpa [#allocation5], 1
    %5491 = vsyncpa [#allocation8], 1
    %5492 = vsyncpa [#allocation11], 1
    %5493 = vsyncpa [#allocation6], 1

</llo_original>
